<compile_context>
chip_gen: v7x
topology: tpu7x:2x2x1
jax: 0.10.0
libtpu: 0.0.40
codegen_flags: <defaults>
</compile_context>

<pallas_src>
import jax
import jax.numpy as jnp
import numpy as np
from jax import lax
from jax.experimental import pallas as pl
from jax.experimental.pallas import tpu as pltpu

_LANE = 128   # lanes per vreg
_SUB = 8      # sublanes per vreg


def _round_up(x, m):
    return ((x + m - 1) // m) * m


# ----------------------------------------------------------------------------
# Fused Pallas kernel: [folded Linear] -> L x BiGRU (+ 'Lower' residual)
#                      -> output-point gather -> per-point Linear heads
# ----------------------------------------------------------------------------

def _make_fused_kernel(*, S, Bp, H, HIN, GB, L, out_fw, out_bw, lower):
    """Builds the fused kernel body for a static model configuration.

    Packed layouts (see pack_params):
      h      : (Bp, HIN)   = [h_fw(0:H) | h_bw(H:2H) | 0 pad]
      W_hh^T : (HIN, 2*GB) block-diagonal, cols [fw r|z|n|pad | bw r|z|n|pad]
      W_ih^T : (Kin, 2*GB) same column layout (front Linear folded in for layer 0)
      heads  : (n_heads, HIN, Cp), fw weights rows 0:H, bw rows H:2H, rest zero
    """
    H2 = 2 * H
    GW = 2 * GB

    def kernel(*refs):
        x_ref = refs[0]                                    # (S*Bp, D) bf16
        layer_refs = [refs[1 + 4 * l: 5 + 4 * l] for l in range(L)]
        head_wt_ref = refs[1 + 4 * L]                      # (n_heads, HIN, Cp) f32
        head_b_ref = refs[2 + 4 * L]                       # (n_heads, 1, Cp)   f32
        logits_ref = refs[3 + 4 * L]                       # (n_heads, Bp, Cp)  f32
        gi_f_scr, gi_b_scr, out_f_scr, out_b_scr = refs[4 + 4 * L:]

        pad_w = HIN - H2
        h_pad = jnp.zeros((Bp, pad_w), jnp.float32) if pad_w else None
        seq_pad = jnp.zeros((S, Bp, pad_w), jnp.float32) if pad_w else None

        def gru_gates(gi_blk, gh_blk, h_prev):
            # PyTorch GRU gate math for one direction.  gi/gh blocks are 128-lane
            # aligned refs/values; the H-wide gate slices are value-level slices.
            r = jax.nn.sigmoid(gi_blk[:, 0:H] + gh_blk[:, 0:H])
            z = jax.nn.sigmoid(gi_blk[:, H:2 * H] + gh_blk[:, H:2 * H])
            n = jnp.tanh(gi_blk[:, 2 * H:3 * H] + r * gh_blk[:, 2 * H:3 * H])
            return (1.0 - z) * n + z * h_prev

        h = jnp.zeros((Bp, HIN), jnp.float32)              # [h_fw | h_bw | 0]
        cur_f = None
        cur_b = None

        for l in range(L):
            wih_ref, whh_ref, bih_ref, bhh_ref = layer_refs[l]

            # (1) Hoisted input projection: ONE bf16 MXU matmul for the whole
            #     sequence and both directions, off the serial critical path.
            if l == 0:
                x_in = x_ref[...]                                      # bf16
            else:
                parts = [cur_f, cur_b] + ([seq_pad] if seq_pad is not None else [])
                x_in = (jnp.concatenate(parts, axis=-1)
                        .reshape(S * Bp, HIN).astype(jnp.bfloat16))
            gi = (jnp.dot(x_in, wih_ref[...],
                          preferred_element_type=jnp.float32) + bih_ref[...])
            gi_f_scr[...] = gi[:, 0:GB].reshape(S, Bp, GB)
            gi_b_scr[...] = gi[:, GB:GW].reshape(S, Bp, GB)

            whh = whh_ref[...]                                         # bf16 (HIN, GW)
            bhh = bhh_ref[...]                                         # f32  (1, GW)

            # (2) Serial recurrence: one fused fw+bw recurrent matmul per step.
            def step(t, h):
                gh = (jnp.dot(h.astype(jnp.bfloat16), whh,
                              preferred_element_type=jnp.float32) + bhh)
                h_f = gru_gates(gi_f_scr[t], gh[:, 0:GB], h[:, 0:H])
                h_b = gru_gates(gi_b_scr[S - 1 - t], gh[:, GB:GW], h[:, H:H2])
                out_f_scr[t] = h_f                                     # full-row stores
                out_b_scr[S - 1 - t] = h_b
                parts = [h_f, h_b] + ([h_pad] if h_pad is not None else [])
                return jnp.concatenate(parts, axis=-1)

            # S is small & static -> fully unroll so the scheduler overlaps MXU
            # pushes, EUP sigmoid/tanh and the per-step stores across iterations.
            h = lax.fori_loop(0, S, step, h, unroll=True)

            # (3) Layer chaining (+ 'Lower' residual), all on VMEM-resident values.
            if lower and l > 0:
                cur_f = cur_f + out_f_scr[...]
                cur_b = cur_b + out_b_scr[...]
            else:
                cur_f = out_f_scr[...]
                cur_b = out_b_scr[...]

        # (4) Output-point gather + all heads (static time indices, still in-kernel).
        zeros_h = jnp.zeros((Bp, H), jnp.float32)
        g_pad = jnp.zeros((Bp, pad_w), jnp.float32) if pad_w else None
        for k, (t_fw, t_bw) in enumerate(zip(out_fw, out_bw)):
            g_f = cur_f[t_fw] if t_fw is not None else zeros_h
            g_b = cur_b[t_bw] if t_bw is not None else zeros_h
            parts = [g_f, g_b] + ([g_pad] if g_pad is not None else [])
            g = jnp.concatenate(parts, axis=-1)                        # (Bp, HIN)
            logits_ref[k] = (jnp.dot(g, head_wt_ref[k],
                                     preferred_element_type=jnp.float32)
                             + head_b_ref[k]).astype(logits_ref.dtype)

    return kernel


# ----------------------------------------------------------------------------
# Parameter init (PyTorch layout) and packing into TPU-friendly layouts
# ----------------------------------------------------------------------------

def init_params(key, cfg):
    H = cfg['num_units']
    F = cfg['feature_size']
    D = cfg['input_dim']
    C = cfg['num_classes']
    L = cfg['num_layers']
    keys = iter(jax.random.split(key, 64))

    def u(k, shape, fan_in):
        bound = 1.0 / np.sqrt(fan_in)
        return jax.random.uniform(k, shape, jnp.float32, -bound, bound)

    params = {
        'linear_w': u(next(keys), (F, D), D),
        'linear_b': u(next(keys), (F,), D),
        'gru': [],
        'out_w': [],
        'out_b': [],
    }
    for l in range(L):
        in_l = F if l == 0 else 2 * H
        params['gru'].append({
            'wih': u(next(keys), (2, 3 * H, in_l), H),
            'whh': u(next(keys), (2, 3 * H, H), H),
            'bih': u(next(keys), (2, 3 * H), H),
            'bhh': u(next(keys), (2, 3 * H), H),
        })
    for t_fw, t_bw in zip(cfg['output_points_fw'], cfg['output_points_bw']):
        d = 2 * H if (t_fw is not None and t_bw is not None) else H
        params['out_w'].append(u(next(keys), (C, d), d))
        params['out_b'].append(u(next(keys), (C,), d))
    return params


def pack_params(params, cfg):
    """Pack PyTorch-layout params into compact, padded, pre-transposed TPU layouts."""
    H = cfg['num_units']
    C = cfg['num_classes']
    D = cfg['input_dim']
    H2 = 2 * H
    HIN = _round_up(H2, _LANE)        # packed hidden lane width
    GB = _round_up(3 * H, _LANE)      # per-direction gate block width
    GW = 2 * GB
    Cp = _round_up(C, _LANE)

    lin_w = params['linear_w']        # (F, D)
    lin_b = params['linear_b']        # (F,)

    packed = {'gru': []}
    for l, layer in enumerate(params['gru']):
        whh_raw, bhh_raw = layer['whh'], layer['bhh']          # (2,3H,H), (2,3H)
        if l == 0:
            # Fold the front nn.Linear into layer-0's input projection:
            # (x @ Wl^T + bl) @ Wih^T + bih == x @ (Wih Wl)^T + (Wih bl + bih)
            wih_raw = jnp.einsum('dgf,fi->dgi', layer['wih'], lin_w)   # (2, 3H, D)
            bih_raw = layer['bih'] + jnp.einsum('dgf,f->dg', layer['wih'], lin_b)
            kin = D
            row_map = [(0, 0, D)]
        else:
            wih_raw, bih_raw = layer['wih'], layer['bih']              # (2, 3H, 2H)
            kin = HIN
            row_map = [(0, 0, H), (H, H, H)]   # fw input -> rows 0:H, bw -> rows H:2H
        wih_t = jnp.zeros((kin, GW), jnp.float32)
        whh_t = jnp.zeros((HIN, GW), jnp.float32)
        bih_p = jnp.zeros((1, GW), jnp.float32)
        bhh_p = jnp.zeros((1, GW), jnp.float32)
        for d in range(2):                      # direction
            for g in range(3):                  # gate r / z / n
                c0 = d * GB + g * H
                w_g = wih_raw[d, g * H:(g + 1) * H, :]          # (H, kin_raw)
                for src, dst, width in row_map:
                    wih_t = wih_t.at[dst:dst + width, c0:c0 + H].set(
                        w_g[:, src:src + width].T)
                u_g = whh_raw[d, g * H:(g + 1) * H, :]          # (H, H)
                whh_t = whh_t.at[d * H:(d + 1) * H, c0:c0 + H].set(u_g.T)
                bih_p = bih_p.at[0, c0:c0 + H].set(bih_raw[d, g * H:(g + 1) * H])
                bhh_p = bhh_p.at[0, c0:c0 + H].set(bhh_raw[d, g * H:(g + 1) * H])
        packed['gru'].append({'wih_t': wih_t.astype(jnp.bfloat16),
                              'whh_t': whh_t.astype(jnp.bfloat16),
                              'bih': bih_p, 'bhh': bhh_p})

    # Output heads: unify every head to a (HIN -> Cp) padded weight; unused rows/cols
    # are zero so None output points contribute nothing.
    fw, bw = cfg['output_points_fw'], cfg['output_points_bw']
    n_heads = len(fw)
    head_wt = jnp.zeros((n_heads, HIN, Cp), jnp.float32)
    head_b = jnp.zeros((n_heads, 1, Cp), jnp.float32)
    for k, (t_fw, t_bw) in enumerate(zip(fw, bw)):
        w = params['out_w'][k]
        if t_fw is not None and t_bw is not None:
            head_wt = head_wt.at[k, 0:H, 0:C].set(w[:, :H].T)
            head_wt = head_wt.at[k, H:H2, 0:C].set(w[:, H:].T)
        elif t_fw is not None:
            head_wt = head_wt.at[k, 0:H, 0:C].set(w.T)
        else:
            head_wt = head_wt.at[k, H:H2, 0:C].set(w.T)
        head_b = head_b.at[k, 0, 0:C].set(params['out_b'][k])
    packed['head_wt'] = head_wt
    packed['head_b'] = head_b
    return packed


# ----------------------------------------------------------------------------
# Forward pass: one fused pallas_call, thin XLA glue around it
# ----------------------------------------------------------------------------

def gru_model_forward(packed, x, cfg, type_model):
    """Pallas implementation of GRUModel.forward.  x: (batch, seq, input_dim)."""
    H = cfg['num_units']
    C = cfg['num_classes']
    L = cfg['num_layers']
    out_fw = tuple(cfg['output_points_fw'])
    out_bw = tuple(cfg['output_points_bw'])
    n_heads = len(out_fw)
    B, S, D = x.shape
    Bp = _round_up(B, _SUB)           # pad batch to full sublanes
    HIN = _round_up(2 * H, _LANE)
    GB = _round_up(3 * H, _LANE)
    Cp = _round_up(C, _LANE)

    # Only XLA glue left: tiny input transpose/pad + the final unpad slice.
    xt = jnp.swapaxes(x, 0, 1).astype(jnp.float32)            # (S, B, D)
    if Bp != B:
        xt = jnp.pad(xt, ((0, 0), (0, Bp - B), (0, 0)))
    x2d = xt.reshape(S * Bp, D).astype(jnp.bfloat16)

    kernel = _make_fused_kernel(S=S, Bp=Bp, H=H, HIN=HIN, GB=GB, L=L,
                                out_fw=out_fw, out_bw=out_bw,
                                lower=(type_model == 'Lower'))

    vmem = pl.BlockSpec(memory_space=pltpu.MemorySpace.VMEM)
    args = [x2d]
    for lp in packed['gru']:
        args += [lp['wih_t'], lp['whh_t'], lp['bih'], lp['bhh']]
    args += [packed['head_wt'], packed['head_b']]

    # TODO(synk): if H/S/B are scaled up, the (S,Bp,GB) gi scratches are the first
    # thing to outgrow VMEM (v7x: 64 MiB) - tile the time axis with a grid /
    # emit_pipeline or store gi in bf16 at that point.
    logits = pl.pallas_call(
        kernel,
        out_shape=jax.ShapeDtypeStruct((n_heads, Bp, Cp), jnp.float32),
        in_specs=[vmem] * len(args),
        out_specs=vmem,
        scratch_shapes=[pltpu.VMEM((S, Bp, GB), jnp.float32),   # hoisted gi, forward
                        pltpu.VMEM((S, Bp, GB), jnp.float32),   # hoisted gi, backward
                        pltpu.VMEM((S, Bp, H), jnp.float32),    # per-step fw outputs
                        pltpu.VMEM((S, Bp, H), jnp.float32)],   # per-step bw outputs
    )(*args)

    return [logits[k, :B, :C] for k in range(n_heads)]


# ----------------------------------------------------------------------------
# Pure-JAX reference (mirrors PyTorch semantics) for a sanity check
# ----------------------------------------------------------------------------

def _gru_dir_ref(x_seq, wih, whh, bih, bhh, h0, reverse):
    H = whh.shape[1]

    def step(h, x_t):
        gi = x_t @ wih.T + bih
        gh = h @ whh.T + bhh
        r = jax.nn.sigmoid(gi[:, :H] + gh[:, :H])
        z = jax.nn.sigmoid(gi[:, H:2 * H] + gh[:, H:2 * H])
        n = jnp.tanh(gi[:, 2 * H:] + r * gh[:, 2 * H:])
        h_new = (1.0 - z) * n + z * h
        return h_new, h_new

    xs = x_seq[::-1] if reverse else x_seq
    h_last, outs = lax.scan(step, h0, xs)
    if reverse:
        outs = outs[::-1]
    return outs, h_last


def gru_model_forward_ref(params, x, cfg, type_model):
    H = cfg['num_units']
    inp = jnp.swapaxes(x, 0, 1)
    cur = inp @ params['linear_w'].T + params['linear_b']
    B = x.shape[0]
    hidden = jnp.zeros((2, B, H), jnp.float32)
    # NOTE: like the PyTorch module, layer i's final state seeds layer i+1.
    for i, layer in enumerate(params['gru']):
        of, hf = _gru_dir_ref(cur, layer['wih'][0], layer['whh'][0],
                              layer['bih'][0], layer['bhh'][0], hidden[0], False)
        ob, hb = _gru_dir_ref(cur, layer['wih'][1], layer['whh'][1],
                              layer['bih'][1], layer['bhh'][1], hidden[1], True)
        out = jnp.concatenate([of, ob], axis=-1)
        hidden = jnp.stack([hf, hb])
        if type_model == 'Lower' and i > 0:
            cur = cur + out
        else:
            cur = out
    logits = []
    for idx, (t_fw, t_bw) in enumerate(zip(cfg['output_points_fw'],
                                           cfg['output_points_bw'])):
        parts = []
        if t_fw is not None:
            parts.append(cur[t_fw, :, :H])
        if t_bw is not None:
            parts.append(cur[t_bw, :, H:])
        gg = jnp.concatenate(parts, axis=1)
        logits.append(gg @ params['out_w'][idx].T + params['out_b'][idx])
    return logits


# ----------------------------------------------------------------------------

if __name__ == "__main__":
    model_config = {
        'input_dim': 16,
        'num_units': 32,          # hidden_units
        'num_classes': 5,
        'num_outputs': 3,
        'num_layers': 2,
        'feature_size': 32,
        'num_inputs': 8,          # sequence length
        'output_points_fw': [3, 7, None],
        'output_points_bw': [0, None, 4],
        'region': 'test',
    }
    type_model = 'Lower'

    key = jax.random.PRNGKey(0)
    k_param, k_x = jax.random.split(key)
    params = init_params(k_param, model_config)
    packed = pack_params(params, model_config)

    batch, seq = 2, model_config['num_inputs']
    x = jax.random.normal(k_x, (batch, seq, model_config['input_dim']),
                          dtype=jnp.float32)

    fwd = jax.jit(lambda p, xx: gru_model_forward(p, xx, model_config, type_model))
    logits = fwd(packed, x)
    logits = [jax.block_until_ready(l) for l in logits]

    # Sanity check against a pure-JAX f32 reference of the PyTorch forward.
    # Tolerance is loosened vs. an all-f32 kernel because the MXU operands are bf16
    # and rounding compounds over S steps x 2 layers of the recurrence.
    logits_ref = gru_model_forward_ref(params, x, model_config, type_model)
    for a, b in zip(logits, logits_ref):
        assert a.shape == b.shape
        np.testing.assert_allclose(np.asarray(a), np.asarray(b),
                                   rtol=5e-2, atol=5e-2)

    print("KERNEL_OK")
</pallas_src>

<mosaic_0001>
module attributes {stable_mosaic.version = 11 : i64} {
  func.func @kernel(%arg0: memref<64x16xbf16, #tpu.memory_space<vmem>>, %arg1: memref<16x256xbf16, #tpu.memory_space<vmem>>, %arg2: memref<128x256xbf16, #tpu.memory_space<vmem>>, %arg3: memref<1x256xf32, #tpu.memory_space<vmem>>, %arg4: memref<1x256xf32, #tpu.memory_space<vmem>>, %arg5: memref<128x256xbf16, #tpu.memory_space<vmem>>, %arg6: memref<128x256xbf16, #tpu.memory_space<vmem>>, %arg7: memref<1x256xf32, #tpu.memory_space<vmem>>, %arg8: memref<1x256xf32, #tpu.memory_space<vmem>>, %arg9: memref<3x128x128xf32, #tpu.memory_space<vmem>>, %arg10: memref<3x1x128xf32, #tpu.memory_space<vmem>>, %arg11: memref<3x8x128xf32, #tpu.memory_space<vmem>>, %arg12: memref<8x8x128xf32, #tpu.memory_space<vmem>>, %arg13: memref<8x8x128xf32, #tpu.memory_space<vmem>>, %arg14: memref<8x8x32xf32, #tpu.memory_space<vmem>>, %arg15: memref<8x8x32xf32, #tpu.memory_space<vmem>>) attributes {dimension_semantics = [], scalar_prefetch = 0 : i64, scratch_operands = 4 : i64, tpu.core_type = #tpu.core_type<tc>} {
    %cst = arith.constant 0.000000e+00 : f32
    %0 = vector.broadcast %cst : f32 to vector<8x64xf32>
    %cst_0 = arith.constant 0.000000e+00 : f32
    %1 = vector.broadcast %cst_0 : f32 to vector<8x8x64xf32>
    %cst_1 = arith.constant 0.000000e+00 : f32
    %2 = vector.broadcast %cst_1 : f32 to vector<8x128xf32>
    %c0 = arith.constant 0 : index
    %c0_2 = arith.constant 0 : index
    %3 = vector.load %arg0[%c0, %c0_2] : memref<64x16xbf16, #tpu.memory_space<vmem>>, vector<64x16xbf16>
    %c0_3 = arith.constant 0 : index
    %c0_4 = arith.constant 0 : index
    %4 = vector.load %arg1[%c0_3, %c0_4] : memref<16x256xbf16, #tpu.memory_space<vmem>>, vector<16x256xbf16>
    %cst_5 = arith.constant dense<0.000000e+00> : vector<64x256xf32>
    %5 = tpu.matmul %3, %4, %cst_5 {dimension_numbers = #tpu.dot_dimension_numbers<[1], [0], [0], [1], [0, 0, 1, 1], [], []>} : vector<64x16xbf16>, vector<16x256xbf16>, vector<64x256xf32> -> vector<64x256xf32>
    %c0_6 = arith.constant 0 : index
    %c0_7 = arith.constant 0 : index
    %6 = vector.load %arg3[%c0_6, %c0_7] : memref<1x256xf32, #tpu.memory_space<vmem>>, vector<1x256xf32>
    %7 = vector.broadcast %6 : vector<1x256xf32> to vector<64x256xf32>
    %8 = arith.addf %5, %7 : vector<64x256xf32>
    %9 = vector.extract_strided_slice %8 {offsets = [0, 0], sizes = [64, 128], strides = [1, 1]} : vector<64x256xf32> to vector<64x128xf32>
    %10 = vector.shape_cast %9 : vector<64x128xf32> to vector<8x8x128xf32>
    %c0_8 = arith.constant 0 : index
    %c0_9 = arith.constant 0 : index
    %c0_10 = arith.constant 0 : index
    %11 = vector.load %arg12[%c0_8, %c0_9, %c0_10] : memref<8x8x128xf32, #tpu.memory_space<vmem>>, vector<8x8x128xf32>
    tpu.vector_store %arg12[%c0_8, %c0_9, %c0_10], %10 {strides = array<i32>} : memref<8x8x128xf32, #tpu.memory_space<vmem>>, vector<8x8x128xf32>,
    %12 = vector.extract_strided_slice %8 {offsets = [0, 128], sizes = [64, 128], strides = [1, 1]} : vector<64x256xf32> to vector<64x128xf32>
    %13 = vector.shape_cast %12 : vector<64x128xf32> to vector<8x8x128xf32>
    %c0_11 = arith.constant 0 : index
    %c0_12 = arith.constant 0 : index
    %c0_13 = arith.constant 0 : index
    %14 = vector.load %arg13[%c0_11, %c0_12, %c0_13] : memref<8x8x128xf32, #tpu.memory_space<vmem>>, vector<8x8x128xf32>
    tpu.vector_store %arg13[%c0_11, %c0_12, %c0_13], %13 {strides = array<i32>} : memref<8x8x128xf32, #tpu.memory_space<vmem>>, vector<8x8x128xf32>,
    %c0_14 = arith.constant 0 : index
    %c0_15 = arith.constant 0 : index
    %15 = vector.load %arg2[%c0_14, %c0_15] : memref<128x256xbf16, #tpu.memory_space<vmem>>, vector<128x256xbf16>
    %c0_16 = arith.constant 0 : index
    %c0_17 = arith.constant 0 : index
    %16 = vector.load %arg4[%c0_16, %c0_17] : memref<1x256xf32, #tpu.memory_space<vmem>>, vector<1x256xf32>
    %c0_i32 = arith.constant 0 : i32
    %17 = arith.truncf %2 : vector<8x128xf32> to vector<8x128xbf16>
    %cst_18 = arith.constant dense<0.000000e+00> : vector<8x256xf32>
    %18 = tpu.matmul %17, %15, %cst_18 {dimension_numbers = #tpu.dot_dimension_numbers<[1], [0], [0], [1], [0, 0, 1, 1], [], []>} : vector<8x128xbf16>, vector<128x256xbf16>, vector<8x256xf32> -> vector<8x256xf32>
    %19 = vector.broadcast %16 : vector<1x256xf32> to vector<8x256xf32>
    %20 = arith.addf %18, %19 : vector<8x256xf32>
    %21 = arith.index_cast %c0_i32 : i32 to index
    %c0_19 = arith.constant 0 : index
    %c0_20 = arith.constant 0 : index
    %22 = vector.load %arg12[%21, %c0_19, %c0_20] : memref<8x8x128xf32, #tpu.memory_space<vmem>>, vector<1x8x128xf32>
    %23 = vector.shape_cast %22 : vector<1x8x128xf32> to vector<8x128xf32>
    %24 = vector.extract_strided_slice %20 {offsets = [0, 0], sizes = [8, 128], strides = [1, 1]} : vector<8x256xf32> to vector<8x128xf32>
    %25 = vector.extract_strided_slice %2 {offsets = [0, 0], sizes = [8, 32], strides = [1, 1]} : vector<8x128xf32> to vector<8x32xf32>
    %26 = vector.extract_strided_slice %23 {offsets = [0, 0], sizes = [8, 32], strides = [1, 1]} : vector<8x128xf32> to vector<8x32xf32>
    %27 = vector.extract_strided_slice %24 {offsets = [0, 0], sizes = [8, 32], strides = [1, 1]} : vector<8x128xf32> to vector<8x32xf32>
    %28 = arith.addf %26, %27 : vector<8x32xf32>
    %29 = arith.negf %28 : vector<8x32xf32>
    %30 = math.exp %29 : vector<8x32xf32>
    %cst_21 = arith.constant 1.000000e+00 : f32
    %31 = vector.broadcast %cst_21 : f32 to vector<8x32xf32>
    %32 = arith.addf %31, %30 : vector<8x32xf32>
    %33 = arith.divf %31, %32 : vector<8x32xf32>
    %34 = vector.extract_strided_slice %23 {offsets = [0, 32], sizes = [8, 32], strides = [1, 1]} : vector<8x128xf32> to vector<8x32xf32>
    %35 = vector.extract_strided_slice %24 {offsets = [0, 32], sizes = [8, 32], strides = [1, 1]} : vector<8x128xf32> to vector<8x32xf32>
    %36 = arith.addf %34, %35 : vector<8x32xf32>
    %37 = arith.negf %36 : vector<8x32xf32>
    %38 = math.exp %37 : vector<8x32xf32>
    %cst_22 = arith.constant 1.000000e+00 : f32
    %39 = vector.broadcast %cst_22 : f32 to vector<8x32xf32>
    %40 = arith.addf %39, %38 : vector<8x32xf32>
    %41 = arith.divf %39, %40 : vector<8x32xf32>
    %42 = vector.extract_strided_slice %23 {offsets = [0, 64], sizes = [8, 32], strides = [1, 1]} : vector<8x128xf32> to vector<8x32xf32>
    %43 = vector.extract_strided_slice %24 {offsets = [0, 64], sizes = [8, 32], strides = [1, 1]} : vector<8x128xf32> to vector<8x32xf32>
    %44 = arith.mulf %33, %43 : vector<8x32xf32>
    %45 = arith.addf %42, %44 : vector<8x32xf32>
    %46 = math.tanh %45 : vector<8x32xf32>
    %cst_23 = arith.constant 1.000000e+00 : f32
    %47 = vector.broadcast %cst_23 : f32 to vector<8x32xf32>
    %48 = arith.subf %47, %41 : vector<8x32xf32>
    %49 = arith.mulf %48, %46 : vector<8x32xf32>
    %50 = arith.mulf %41, %25 : vector<8x32xf32>
    %51 = arith.addf %49, %50 : vector<8x32xf32>
    %c7_i32 = arith.constant 7 : i32
    %52 = arith.subi %c7_i32, %c0_i32 : i32
    %53 = arith.index_cast %52 : i32 to index
    %c0_24 = arith.constant 0 : index
    %c0_25 = arith.constant 0 : index
    %54 = vector.load %arg13[%53, %c0_24, %c0_25] : memref<8x8x128xf32, #tpu.memory_space<vmem>>, vector<1x8x128xf32>
    %55 = vector.shape_cast %54 : vector<1x8x128xf32> to vector<8x128xf32>
    %56 = vector.extract_strided_slice %20 {offsets = [0, 128], sizes = [8, 128], strides = [1, 1]} : vector<8x256xf32> to vector<8x128xf32>
    %57 = vector.extract_strided_slice %2 {offsets = [0, 32], sizes = [8, 32], strides = [1, 1]} : vector<8x128xf32> to vector<8x32xf32>
    %58 = vector.extract_strided_slice %55 {offsets = [0, 0], sizes = [8, 32], strides = [1, 1]} : vector<8x128xf32> to vector<8x32xf32>
    %59 = vector.extract_strided_slice %56 {offsets = [0, 0], sizes = [8, 32], strides = [1, 1]} : vector<8x128xf32> to vector<8x32xf32>
    %60 = arith.addf %58, %59 : vector<8x32xf32>
    %61 = arith.negf %60 : vector<8x32xf32>
    %62 = math.exp %61 : vector<8x32xf32>
    %cst_26 = arith.constant 1.000000e+00 : f32
    %63 = vector.broadcast %cst_26 : f32 to vector<8x32xf32>
    %64 = arith.addf %63, %62 : vector<8x32xf32>
    %65 = arith.divf %63, %64 : vector<8x32xf32>
    %66 = vector.extract_strided_slice %55 {offsets = [0, 32], sizes = [8, 32], strides = [1, 1]} : vector<8x128xf32> to vector<8x32xf32>
    %67 = vector.extract_strided_slice %56 {offsets = [0, 32], sizes = [8, 32], strides = [1, 1]} : vector<8x128xf32> to vector<8x32xf32>
    %68 = arith.addf %66, %67 : vector<8x32xf32>
    %69 = arith.negf %68 : vector<8x32xf32>
    %70 = math.exp %69 : vector<8x32xf32>
    %cst_27 = arith.constant 1.000000e+00 : f32
    %71 = vector.broadcast %cst_27 : f32 to vector<8x32xf32>
    %72 = arith.addf %71, %70 : vector<8x32xf32>
    %73 = arith.divf %71, %72 : vector<8x32xf32>
    %74 = vector.extract_strided_slice %55 {offsets = [0, 64], sizes = [8, 32], strides = [1, 1]} : vector<8x128xf32> to vector<8x32xf32>
    %75 = vector.extract_strided_slice %56 {offsets = [0, 64], sizes = [8, 32], strides = [1, 1]} : vector<8x128xf32> to vector<8x32xf32>
    %76 = arith.mulf %65, %75 : vector<8x32xf32>
    %77 = arith.addf %74, %76 : vector<8x32xf32>
    %78 = math.tanh %77 : vector<8x32xf32>
    %cst_28 = arith.constant 1.000000e+00 : f32
    %79 = vector.broadcast %cst_28 : f32 to vector<8x32xf32>
    %80 = arith.subf %79, %73 : vector<8x32xf32>
    %81 = arith.mulf %80, %78 : vector<8x32xf32>
    %82 = arith.mulf %73, %57 : vector<8x32xf32>
    %83 = arith.addf %81, %82 : vector<8x32xf32>
    %84 = arith.index_cast %c0_i32 : i32 to index
    %c0_29 = arith.constant 0 : index
    %c0_30 = arith.constant 0 : index
    %85 = vector.load %arg14[%84, %c0_29, %c0_30] : memref<8x8x32xf32, #tpu.memory_space<vmem>>, vector<1x8x32xf32>
    %86 = vector.shape_cast %85 : vector<1x8x32xf32> to vector<8x32xf32>
    %87 = vector.shape_cast %51 : vector<8x32xf32> to vector<1x8x32xf32>
    tpu.vector_store %arg14[%84, %c0_29, %c0_30], %87 {strides = array<i32>} : memref<8x8x32xf32, #tpu.memory_space<vmem>>, vector<1x8x32xf32>,
    %c7_i32_31 = arith.constant 7 : i32
    %88 = arith.subi %c7_i32_31, %c0_i32 : i32
    %89 = arith.index_cast %88 : i32 to index
    %c0_32 = arith.constant 0 : index
    %c0_33 = arith.constant 0 : index
    %90 = vector.load %arg15[%89, %c0_32, %c0_33] : memref<8x8x32xf32, #tpu.memory_space<vmem>>, vector<1x8x32xf32>
    %91 = vector.shape_cast %90 : vector<1x8x32xf32> to vector<8x32xf32>
    %92 = vector.shape_cast %83 : vector<8x32xf32> to vector<1x8x32xf32>
    tpu.vector_store %arg15[%89, %c0_32, %c0_33], %92 {strides = array<i32>} : memref<8x8x32xf32, #tpu.memory_space<vmem>>, vector<1x8x32xf32>,
    %93 = tpu.concatenate %51, %83, %0 in 1 : vector<8x32xf32>, vector<8x32xf32>, vector<8x64xf32> -> vector<8x128xf32>
    %c1_i32 = arith.constant 1 : i32
    %94 = arith.truncf %93 : vector<8x128xf32> to vector<8x128xbf16>
    %cst_34 = arith.constant dense<0.000000e+00> : vector<8x256xf32>
    %95 = tpu.matmul %94, %15, %cst_34 {dimension_numbers = #tpu.dot_dimension_numbers<[1], [0], [0], [1], [0, 0, 1, 1], [], []>} : vector<8x128xbf16>, vector<128x256xbf16>, vector<8x256xf32> -> vector<8x256xf32>
    %96 = vector.broadcast %16 : vector<1x256xf32> to vector<8x256xf32>
    %97 = arith.addf %95, %96 : vector<8x256xf32>
    %98 = arith.index_cast %c1_i32 : i32 to index
    %c0_35 = arith.constant 0 : index
    %c0_36 = arith.constant 0 : index
    %99 = vector.load %arg12[%98, %c0_35, %c0_36] : memref<8x8x128xf32, #tpu.memory_space<vmem>>, vector<1x8x128xf32>
    %100 = vector.shape_cast %99 : vector<1x8x128xf32> to vector<8x128xf32>
    %101 = vector.extract_strided_slice %97 {offsets = [0, 0], sizes = [8, 128], strides = [1, 1]} : vector<8x256xf32> to vector<8x128xf32>
    %102 = vector.extract_strided_slice %93 {offsets = [0, 0], sizes = [8, 32], strides = [1, 1]} : vector<8x128xf32> to vector<8x32xf32>
    %103 = vector.extract_strided_slice %100 {offsets = [0, 0], sizes = [8, 32], strides = [1, 1]} : vector<8x128xf32> to vector<8x32xf32>
    %104 = vector.extract_strided_slice %101 {offsets = [0, 0], sizes = [8, 32], strides = [1, 1]} : vector<8x128xf32> to vector<8x32xf32>
    %105 = arith.addf %103, %104 : vector<8x32xf32>
    %106 = arith.negf %105 : vector<8x32xf32>
    %107 = math.exp %106 : vector<8x32xf32>
    %cst_37 = arith.constant 1.000000e+00 : f32
    %108 = vector.broadcast %cst_37 : f32 to vector<8x32xf32>
    %109 = arith.addf %108, %107 : vector<8x32xf32>
    %110 = arith.divf %108, %109 : vector<8x32xf32>
    %111 = vector.extract_strided_slice %100 {offsets = [0, 32], sizes = [8, 32], strides = [1, 1]} : vector<8x128xf32> to vector<8x32xf32>
    %112 = vector.extract_strided_slice %101 {offsets = [0, 32], sizes = [8, 32], strides = [1, 1]} : vector<8x128xf32> to vector<8x32xf32>
    %113 = arith.addf %111, %112 : vector<8x32xf32>
    %114 = arith.negf %113 : vector<8x32xf32>
    %115 = math.exp %114 : vector<8x32xf32>
    %cst_38 = arith.constant 1.000000e+00 : f32
    %116 = vector.broadcast %cst_38 : f32 to vector<8x32xf32>
    %117 = arith.addf %116, %115 : vector<8x32xf32>
    %118 = arith.divf %116, %117 : vector<8x32xf32>
    %119 = vector.extract_strided_slice %100 {offsets = [0, 64], sizes = [8, 32], strides = [1, 1]} : vector<8x128xf32> to vector<8x32xf32>
    %120 = vector.extract_strided_slice %101 {offsets = [0, 64], sizes = [8, 32], strides = [1, 1]} : vector<8x128xf32> to vector<8x32xf32>
    %121 = arith.mulf %110, %120 : vector<8x32xf32>
    %122 = arith.addf %119, %121 : vector<8x32xf32>
    %123 = math.tanh %122 : vector<8x32xf32>
    %cst_39 = arith.constant 1.000000e+00 : f32
    %124 = vector.broadcast %cst_39 : f32 to vector<8x32xf32>
    %125 = arith.subf %124, %118 : vector<8x32xf32>
    %126 = arith.mulf %125, %123 : vector<8x32xf32>
    %127 = arith.mulf %118, %102 : vector<8x32xf32>
    %128 = arith.addf %126, %127 : vector<8x32xf32>
    %c7_i32_40 = arith.constant 7 : i32
    %129 = arith.subi %c7_i32_40, %c1_i32 : i32
    %130 = arith.index_cast %129 : i32 to index
    %c0_41 = arith.constant 0 : index
    %c0_42 = arith.constant 0 : index
    %131 = vector.load %arg13[%130, %c0_41, %c0_42] : memref<8x8x128xf32, #tpu.memory_space<vmem>>, vector<1x8x128xf32>
    %132 = vector.shape_cast %131 : vector<1x8x128xf32> to vector<8x128xf32>
    %133 = vector.extract_strided_slice %97 {offsets = [0, 128], sizes = [8, 128], strides = [1, 1]} : vector<8x256xf32> to vector<8x128xf32>
    %134 = vector.extract_strided_slice %93 {offsets = [0, 32], sizes = [8, 32], strides = [1, 1]} : vector<8x128xf32> to vector<8x32xf32>
    %135 = vector.extract_strided_slice %132 {offsets = [0, 0], sizes = [8, 32], strides = [1, 1]} : vector<8x128xf32> to vector<8x32xf32>
    %136 = vector.extract_strided_slice %133 {offsets = [0, 0], sizes = [8, 32], strides = [1, 1]} : vector<8x128xf32> to vector<8x32xf32>
    %137 = arith.addf %135, %136 : vector<8x32xf32>
    %138 = arith.negf %137 : vector<8x32xf32>
    %139 = math.exp %138 : vector<8x32xf32>
    %cst_43 = arith.constant 1.000000e+00 : f32
    %140 = vector.broadcast %cst_43 : f32 to vector<8x32xf32>
    %141 = arith.addf %140, %139 : vector<8x32xf32>
    %142 = arith.divf %140, %141 : vector<8x32xf32>
    %143 = vector.extract_strided_slice %132 {offsets = [0, 32], sizes = [8, 32], strides = [1, 1]} : vector<8x128xf32> to vector<8x32xf32>
    %144 = vector.extract_strided_slice %133 {offsets = [0, 32], sizes = [8, 32], strides = [1, 1]} : vector<8x128xf32> to vector<8x32xf32>
    %145 = arith.addf %143, %144 : vector<8x32xf32>
    %146 = arith.negf %145 : vector<8x32xf32>
    %147 = math.exp %146 : vector<8x32xf32>
    %cst_44 = arith.constant 1.000000e+00 : f32
    %148 = vector.broadcast %cst_44 : f32 to vector<8x32xf32>
    %149 = arith.addf %148, %147 : vector<8x32xf32>
    %150 = arith.divf %148, %149 : vector<8x32xf32>
    %151 = vector.extract_strided_slice %132 {offsets = [0, 64], sizes = [8, 32], strides = [1, 1]} : vector<8x128xf32> to vector<8x32xf32>
    %152 = vector.extract_strided_slice %133 {offsets = [0, 64], sizes = [8, 32], strides = [1, 1]} : vector<8x128xf32> to vector<8x32xf32>
    %153 = arith.mulf %142, %152 : vector<8x32xf32>
    %154 = arith.addf %151, %153 : vector<8x32xf32>
    %155 = math.tanh %154 : vector<8x32xf32>
    %cst_45 = arith.constant 1.000000e+00 : f32
    %156 = vector.broadcast %cst_45 : f32 to vector<8x32xf32>
    %157 = arith.subf %156, %150 : vector<8x32xf32>
    %158 = arith.mulf %157, %155 : vector<8x32xf32>
    %159 = arith.mulf %150, %134 : vector<8x32xf32>
    %160 = arith.addf %158, %159 : vector<8x32xf32>
    %161 = arith.index_cast %c1_i32 : i32 to index
    %c0_46 = arith.constant 0 : index
    %c0_47 = arith.constant 0 : index
    %162 = vector.load %arg14[%161, %c0_46, %c0_47] : memref<8x8x32xf32, #tpu.memory_space<vmem>>, vector<1x8x32xf32>
    %163 = vector.shape_cast %162 : vector<1x8x32xf32> to vector<8x32xf32>
    %164 = vector.shape_cast %128 : vector<8x32xf32> to vector<1x8x32xf32>
    tpu.vector_store %arg14[%161, %c0_46, %c0_47], %164 {strides = array<i32>} : memref<8x8x32xf32, #tpu.memory_space<vmem>>, vector<1x8x32xf32>,
    %c7_i32_48 = arith.constant 7 : i32
    %165 = arith.subi %c7_i32_48, %c1_i32 : i32
    %166 = arith.index_cast %165 : i32 to index
    %c0_49 = arith.constant 0 : index
    %c0_50 = arith.constant 0 : index
    %167 = vector.load %arg15[%166, %c0_49, %c0_50] : memref<8x8x32xf32, #tpu.memory_space<vmem>>, vector<1x8x32xf32>
    %168 = vector.shape_cast %167 : vector<1x8x32xf32> to vector<8x32xf32>
    %169 = vector.shape_cast %160 : vector<8x32xf32> to vector<1x8x32xf32>
    tpu.vector_store %arg15[%166, %c0_49, %c0_50], %169 {strides = array<i32>} : memref<8x8x32xf32, #tpu.memory_space<vmem>>, vector<1x8x32xf32>,
    %170 = tpu.concatenate %128, %160, %0 in 1 : vector<8x32xf32>, vector<8x32xf32>, vector<8x64xf32> -> vector<8x128xf32>
    %c2_i32 = arith.constant 2 : i32
    %171 = arith.truncf %170 : vector<8x128xf32> to vector<8x128xbf16>
    %cst_51 = arith.constant dense<0.000000e+00> : vector<8x256xf32>
    %172 = tpu.matmul %171, %15, %cst_51 {dimension_numbers = #tpu.dot_dimension_numbers<[1], [0], [0], [1], [0, 0, 1, 1], [], []>} : vector<8x128xbf16>, vector<128x256xbf16>, vector<8x256xf32> -> vector<8x256xf32>
    %173 = vector.broadcast %16 : vector<1x256xf32> to vector<8x256xf32>
    %174 = arith.addf %172, %173 : vector<8x256xf32>
    %175 = arith.index_cast %c2_i32 : i32 to index
    %c0_52 = arith.constant 0 : index
    %c0_53 = arith.constant 0 : index
    %176 = vector.load %arg12[%175, %c0_52, %c0_53] : memref<8x8x128xf32, #tpu.memory_space<vmem>>, vector<1x8x128xf32>
    %177 = vector.shape_cast %176 : vector<1x8x128xf32> to vector<8x128xf32>
    %178 = vector.extract_strided_slice %174 {offsets = [0, 0], sizes = [8, 128], strides = [1, 1]} : vector<8x256xf32> to vector<8x128xf32>
    %179 = vector.extract_strided_slice %170 {offsets = [0, 0], sizes = [8, 32], strides = [1, 1]} : vector<8x128xf32> to vector<8x32xf32>
    %180 = vector.extract_strided_slice %177 {offsets = [0, 0], sizes = [8, 32], strides = [1, 1]} : vector<8x128xf32> to vector<8x32xf32>
    %181 = vector.extract_strided_slice %178 {offsets = [0, 0], sizes = [8, 32], strides = [1, 1]} : vector<8x128xf32> to vector<8x32xf32>
    %182 = arith.addf %180, %181 : vector<8x32xf32>
    %183 = arith.negf %182 : vector<8x32xf32>
    %184 = math.exp %183 : vector<8x32xf32>
    %cst_54 = arith.constant 1.000000e+00 : f32
    %185 = vector.broadcast %cst_54 : f32 to vector<8x32xf32>
    %186 = arith.addf %185, %184 : vector<8x32xf32>
    %187 = arith.divf %185, %186 : vector<8x32xf32>
    %188 = vector.extract_strided_slice %177 {offsets = [0, 32], sizes = [8, 32], strides = [1, 1]} : vector<8x128xf32> to vector<8x32xf32>
    %189 = vector.extract_strided_slice %178 {offsets = [0, 32], sizes = [8, 32], strides = [1, 1]} : vector<8x128xf32> to vector<8x32xf32>
    %190 = arith.addf %188, %189 : vector<8x32xf32>
    %191 = arith.negf %190 : vector<8x32xf32>
    %192 = math.exp %191 : vector<8x32xf32>
    %cst_55 = arith.constant 1.000000e+00 : f32
    %193 = vector.broadcast %cst_55 : f32 to vector<8x32xf32>
    %194 = arith.addf %193, %192 : vector<8x32xf32>
    %195 = arith.divf %193, %194 : vector<8x32xf32>
    %196 = vector.extract_strided_slice %177 {offsets = [0, 64], sizes = [8, 32], strides = [1, 1]} : vector<8x128xf32> to vector<8x32xf32>
    %197 = vector.extract_strided_slice %178 {offsets = [0, 64], sizes = [8, 32], strides = [1, 1]} : vector<8x128xf32> to vector<8x32xf32>
    %198 = arith.mulf %187, %197 : vector<8x32xf32>
    %199 = arith.addf %196, %198 : vector<8x32xf32>
    %200 = math.tanh %199 : vector<8x32xf32>
    %cst_56 = arith.constant 1.000000e+00 : f32
    %201 = vector.broadcast %cst_56 : f32 to vector<8x32xf32>
    %202 = arith.subf %201, %195 : vector<8x32xf32>
    %203 = arith.mulf %202, %200 : vector<8x32xf32>
    %204 = arith.mulf %195, %179 : vector<8x32xf32>
    %205 = arith.addf %203, %204 : vector<8x32xf32>
    %c7_i32_57 = arith.constant 7 : i32
    %206 = arith.subi %c7_i32_57, %c2_i32 : i32
    %207 = arith.index_cast %206 : i32 to index
    %c0_58 = arith.constant 0 : index
    %c0_59 = arith.constant 0 : index
    %208 = vector.load %arg13[%207, %c0_58, %c0_59] : memref<8x8x128xf32, #tpu.memory_space<vmem>>, vector<1x8x128xf32>
    %209 = vector.shape_cast %208 : vector<1x8x128xf32> to vector<8x128xf32>
    %210 = vector.extract_strided_slice %174 {offsets = [0, 128], sizes = [8, 128], strides = [1, 1]} : vector<8x256xf32> to vector<8x128xf32>
    %211 = vector.extract_strided_slice %170 {offsets = [0, 32], sizes = [8, 32], strides = [1, 1]} : vector<8x128xf32> to vector<8x32xf32>
    %212 = vector.extract_strided_slice %209 {offsets = [0, 0], sizes = [8, 32], strides = [1, 1]} : vector<8x128xf32> to vector<8x32xf32>
    %213 = vector.extract_strided_slice %210 {offsets = [0, 0], sizes = [8, 32], strides = [1, 1]} : vector<8x128xf32> to vector<8x32xf32>
    %214 = arith.addf %212, %213 : vector<8x32xf32>
    %215 = arith.negf %214 : vector<8x32xf32>
    %216 = math.exp %215 : vector<8x32xf32>
    %cst_60 = arith.constant 1.000000e+00 : f32
    %217 = vector.broadcast %cst_60 : f32 to vector<8x32xf32>
    %218 = arith.addf %217, %216 : vector<8x32xf32>
    %219 = arith.divf %217, %218 : vector<8x32xf32>
    %220 = vector.extract_strided_slice %209 {offsets = [0, 32], sizes = [8, 32], strides = [1, 1]} : vector<8x128xf32> to vector<8x32xf32>
    %221 = vector.extract_strided_slice %210 {offsets = [0, 32], sizes = [8, 32], strides = [1, 1]} : vector<8x128xf32> to vector<8x32xf32>
    %222 = arith.addf %220, %221 : vector<8x32xf32>
    %223 = arith.negf %222 : vector<8x32xf32>
    %224 = math.exp %223 : vector<8x32xf32>
    %cst_61 = arith.constant 1.000000e+00 : f32
    %225 = vector.broadcast %cst_61 : f32 to vector<8x32xf32>
    %226 = arith.addf %225, %224 : vector<8x32xf32>
    %227 = arith.divf %225, %226 : vector<8x32xf32>
    %228 = vector.extract_strided_slice %209 {offsets = [0, 64], sizes = [8, 32], strides = [1, 1]} : vector<8x128xf32> to vector<8x32xf32>
    %229 = vector.extract_strided_slice %210 {offsets = [0, 64], sizes = [8, 32], strides = [1, 1]} : vector<8x128xf32> to vector<8x32xf32>
    %230 = arith.mulf %219, %229 : vector<8x32xf32>
    %231 = arith.addf %228, %230 : vector<8x32xf32>
    %232 = math.tanh %231 : vector<8x32xf32>
    %cst_62 = arith.constant 1.000000e+00 : f32
    %233 = vector.broadcast %cst_62 : f32 to vector<8x32xf32>
    %234 = arith.subf %233, %227 : vector<8x32xf32>
    %235 = arith.mulf %234, %232 : vector<8x32xf32>
    %236 = arith.mulf %227, %211 : vector<8x32xf32>
    %237 = arith.addf %235, %236 : vector<8x32xf32>
    %238 = arith.index_cast %c2_i32 : i32 to index
    %c0_63 = arith.constant 0 : index
    %c0_64 = arith.constant 0 : index
    %239 = vector.load %arg14[%238, %c0_63, %c0_64] : memref<8x8x32xf32, #tpu.memory_space<vmem>>, vector<1x8x32xf32>
    %240 = vector.shape_cast %239 : vector<1x8x32xf32> to vector<8x32xf32>
    %241 = vector.shape_cast %205 : vector<8x32xf32> to vector<1x8x32xf32>
    tpu.vector_store %arg14[%238, %c0_63, %c0_64], %241 {strides = array<i32>} : memref<8x8x32xf32, #tpu.memory_space<vmem>>, vector<1x8x32xf32>,
    %c7_i32_65 = arith.constant 7 : i32
    %242 = arith.subi %c7_i32_65, %c2_i32 : i32
    %243 = arith.index_cast %242 : i32 to index
    %c0_66 = arith.constant 0 : index
    %c0_67 = arith.constant 0 : index
    %244 = vector.load %arg15[%243, %c0_66, %c0_67] : memref<8x8x32xf32, #tpu.memory_space<vmem>>, vector<1x8x32xf32>
    %245 = vector.shape_cast %244 : vector<1x8x32xf32> to vector<8x32xf32>
    %246 = vector.shape_cast %237 : vector<8x32xf32> to vector<1x8x32xf32>
    tpu.vector_store %arg15[%243, %c0_66, %c0_67], %246 {strides = array<i32>} : memref<8x8x32xf32, #tpu.memory_space<vmem>>, vector<1x8x32xf32>,
    %247 = tpu.concatenate %205, %237, %0 in 1 : vector<8x32xf32>, vector<8x32xf32>, vector<8x64xf32> -> vector<8x128xf32>
    %c3_i32 = arith.constant 3 : i32
    %248 = arith.truncf %247 : vector<8x128xf32> to vector<8x128xbf16>
    %cst_68 = arith.constant dense<0.000000e+00> : vector<8x256xf32>
    %249 = tpu.matmul %248, %15, %cst_68 {dimension_numbers = #tpu.dot_dimension_numbers<[1], [0], [0], [1], [0, 0, 1, 1], [], []>} : vector<8x128xbf16>, vector<128x256xbf16>, vector<8x256xf32> -> vector<8x256xf32>
    %250 = vector.broadcast %16 : vector<1x256xf32> to vector<8x256xf32>
    %251 = arith.addf %249, %250 : vector<8x256xf32>
    %252 = arith.index_cast %c3_i32 : i32 to index
    %c0_69 = arith.constant 0 : index
    %c0_70 = arith.constant 0 : index
    %253 = vector.load %arg12[%252, %c0_69, %c0_70] : memref<8x8x128xf32, #tpu.memory_space<vmem>>, vector<1x8x128xf32>
    %254 = vector.shape_cast %253 : vector<1x8x128xf32> to vector<8x128xf32>
    %255 = vector.extract_strided_slice %251 {offsets = [0, 0], sizes = [8, 128], strides = [1, 1]} : vector<8x256xf32> to vector<8x128xf32>
    %256 = vector.extract_strided_slice %247 {offsets = [0, 0], sizes = [8, 32], strides = [1, 1]} : vector<8x128xf32> to vector<8x32xf32>
    %257 = vector.extract_strided_slice %254 {offsets = [0, 0], sizes = [8, 32], strides = [1, 1]} : vector<8x128xf32> to vector<8x32xf32>
    %258 = vector.extract_strided_slice %255 {offsets = [0, 0], sizes = [8, 32], strides = [1, 1]} : vector<8x128xf32> to vector<8x32xf32>
    %259 = arith.addf %257, %258 : vector<8x32xf32>
    %260 = arith.negf %259 : vector<8x32xf32>
    %261 = math.exp %260 : vector<8x32xf32>
    %cst_71 = arith.constant 1.000000e+00 : f32
    %262 = vector.broadcast %cst_71 : f32 to vector<8x32xf32>
    %263 = arith.addf %262, %261 : vector<8x32xf32>
    %264 = arith.divf %262, %263 : vector<8x32xf32>
    %265 = vector.extract_strided_slice %254 {offsets = [0, 32], sizes = [8, 32], strides = [1, 1]} : vector<8x128xf32> to vector<8x32xf32>
    %266 = vector.extract_strided_slice %255 {offsets = [0, 32], sizes = [8, 32], strides = [1, 1]} : vector<8x128xf32> to vector<8x32xf32>
    %267 = arith.addf %265, %266 : vector<8x32xf32>
    %268 = arith.negf %267 : vector<8x32xf32>
    %269 = math.exp %268 : vector<8x32xf32>
    %cst_72 = arith.constant 1.000000e+00 : f32
    %270 = vector.broadcast %cst_72 : f32 to vector<8x32xf32>
    %271 = arith.addf %270, %269 : vector<8x32xf32>
    %272 = arith.divf %270, %271 : vector<8x32xf32>
    %273 = vector.extract_strided_slice %254 {offsets = [0, 64], sizes = [8, 32], strides = [1, 1]} : vector<8x128xf32> to vector<8x32xf32>
    %274 = vector.extract_strided_slice %255 {offsets = [0, 64], sizes = [8, 32], strides = [1, 1]} : vector<8x128xf32> to vector<8x32xf32>
    %275 = arith.mulf %264, %274 : vector<8x32xf32>
    %276 = arith.addf %273, %275 : vector<8x32xf32>
    %277 = math.tanh %276 : vector<8x32xf32>
    %cst_73 = arith.constant 1.000000e+00 : f32
    %278 = vector.broadcast %cst_73 : f32 to vector<8x32xf32>
    %279 = arith.subf %278, %272 : vector<8x32xf32>
    %280 = arith.mulf %279, %277 : vector<8x32xf32>
    %281 = arith.mulf %272, %256 : vector<8x32xf32>
    %282 = arith.addf %280, %281 : vector<8x32xf32>
    %c7_i32_74 = arith.constant 7 : i32
    %283 = arith.subi %c7_i32_74, %c3_i32 : i32
    %284 = arith.index_cast %283 : i32 to index
    %c0_75 = arith.constant 0 : index
    %c0_76 = arith.constant 0 : index
    %285 = vector.load %arg13[%284, %c0_75, %c0_76] : memref<8x8x128xf32, #tpu.memory_space<vmem>>, vector<1x8x128xf32>
    %286 = vector.shape_cast %285 : vector<1x8x128xf32> to vector<8x128xf32>
    %287 = vector.extract_strided_slice %251 {offsets = [0, 128], sizes = [8, 128], strides = [1, 1]} : vector<8x256xf32> to vector<8x128xf32>
    %288 = vector.extract_strided_slice %247 {offsets = [0, 32], sizes = [8, 32], strides = [1, 1]} : vector<8x128xf32> to vector<8x32xf32>
    %289 = vector.extract_strided_slice %286 {offsets = [0, 0], sizes = [8, 32], strides = [1, 1]} : vector<8x128xf32> to vector<8x32xf32>
    %290 = vector.extract_strided_slice %287 {offsets = [0, 0], sizes = [8, 32], strides = [1, 1]} : vector<8x128xf32> to vector<8x32xf32>
    %291 = arith.addf %289, %290 : vector<8x32xf32>
    %292 = arith.negf %291 : vector<8x32xf32>
    %293 = math.exp %292 : vector<8x32xf32>
    %cst_77 = arith.constant 1.000000e+00 : f32
    %294 = vector.broadcast %cst_77 : f32 to vector<8x32xf32>
    %295 = arith.addf %294, %293 : vector<8x32xf32>
    %296 = arith.divf %294, %295 : vector<8x32xf32>
    %297 = vector.extract_strided_slice %286 {offsets = [0, 32], sizes = [8, 32], strides = [1, 1]} : vector<8x128xf32> to vector<8x32xf32>
    %298 = vector.extract_strided_slice %287 {offsets = [0, 32], sizes = [8, 32], strides = [1, 1]} : vector<8x128xf32> to vector<8x32xf32>
    %299 = arith.addf %297, %298 : vector<8x32xf32>
    %300 = arith.negf %299 : vector<8x32xf32>
    %301 = math.exp %300 : vector<8x32xf32>
    %cst_78 = arith.constant 1.000000e+00 : f32
    %302 = vector.broadcast %cst_78 : f32 to vector<8x32xf32>
    %303 = arith.addf %302, %301 : vector<8x32xf32>
    %304 = arith.divf %302, %303 : vector<8x32xf32>
    %305 = vector.extract_strided_slice %286 {offsets = [0, 64], sizes = [8, 32], strides = [1, 1]} : vector<8x128xf32> to vector<8x32xf32>
    %306 = vector.extract_strided_slice %287 {offsets = [0, 64], sizes = [8, 32], strides = [1, 1]} : vector<8x128xf32> to vector<8x32xf32>
    %307 = arith.mulf %296, %306 : vector<8x32xf32>
    %308 = arith.addf %305, %307 : vector<8x32xf32>
    %309 = math.tanh %308 : vector<8x32xf32>
    %cst_79 = arith.constant 1.000000e+00 : f32
    %310 = vector.broadcast %cst_79 : f32 to vector<8x32xf32>
    %311 = arith.subf %310, %304 : vector<8x32xf32>
    %312 = arith.mulf %311, %309 : vector<8x32xf32>
    %313 = arith.mulf %304, %288 : vector<8x32xf32>
    %314 = arith.addf %312, %313 : vector<8x32xf32>
    %315 = arith.index_cast %c3_i32 : i32 to index
    %c0_80 = arith.constant 0 : index
    %c0_81 = arith.constant 0 : index
    %316 = vector.load %arg14[%315, %c0_80, %c0_81] : memref<8x8x32xf32, #tpu.memory_space<vmem>>, vector<1x8x32xf32>
    %317 = vector.shape_cast %316 : vector<1x8x32xf32> to vector<8x32xf32>
    %318 = vector.shape_cast %282 : vector<8x32xf32> to vector<1x8x32xf32>
    tpu.vector_store %arg14[%315, %c0_80, %c0_81], %318 {strides = array<i32>} : memref<8x8x32xf32, #tpu.memory_space<vmem>>, vector<1x8x32xf32>,
    %c7_i32_82 = arith.constant 7 : i32
    %319 = arith.subi %c7_i32_82, %c3_i32 : i32
    %320 = arith.index_cast %319 : i32 to index
    %c0_83 = arith.constant 0 : index
    %c0_84 = arith.constant 0 : index
    %321 = vector.load %arg15[%320, %c0_83, %c0_84] : memref<8x8x32xf32, #tpu.memory_space<vmem>>, vector<1x8x32xf32>
    %322 = vector.shape_cast %321 : vector<1x8x32xf32> to vector<8x32xf32>
    %323 = vector.shape_cast %314 : vector<8x32xf32> to vector<1x8x32xf32>
    tpu.vector_store %arg15[%320, %c0_83, %c0_84], %323 {strides = array<i32>} : memref<8x8x32xf32, #tpu.memory_space<vmem>>, vector<1x8x32xf32>,
    %324 = tpu.concatenate %282, %314, %0 in 1 : vector<8x32xf32>, vector<8x32xf32>, vector<8x64xf32> -> vector<8x128xf32>
    %c4_i32 = arith.constant 4 : i32
    %325 = arith.truncf %324 : vector<8x128xf32> to vector<8x128xbf16>
    %cst_85 = arith.constant dense<0.000000e+00> : vector<8x256xf32>
    %326 = tpu.matmul %325, %15, %cst_85 {dimension_numbers = #tpu.dot_dimension_numbers<[1], [0], [0], [1], [0, 0, 1, 1], [], []>} : vector<8x128xbf16>, vector<128x256xbf16>, vector<8x256xf32> -> vector<8x256xf32>
    %327 = vector.broadcast %16 : vector<1x256xf32> to vector<8x256xf32>
    %328 = arith.addf %326, %327 : vector<8x256xf32>
    %329 = arith.index_cast %c4_i32 : i32 to index
    %c0_86 = arith.constant 0 : index
    %c0_87 = arith.constant 0 : index
    %330 = vector.load %arg12[%329, %c0_86, %c0_87] : memref<8x8x128xf32, #tpu.memory_space<vmem>>, vector<1x8x128xf32>
    %331 = vector.shape_cast %330 : vector<1x8x128xf32> to vector<8x128xf32>
    %332 = vector.extract_strided_slice %328 {offsets = [0, 0], sizes = [8, 128], strides = [1, 1]} : vector<8x256xf32> to vector<8x128xf32>
    %333 = vector.extract_strided_slice %324 {offsets = [0, 0], sizes = [8, 32], strides = [1, 1]} : vector<8x128xf32> to vector<8x32xf32>
    %334 = vector.extract_strided_slice %331 {offsets = [0, 0], sizes = [8, 32], strides = [1, 1]} : vector<8x128xf32> to vector<8x32xf32>
    %335 = vector.extract_strided_slice %332 {offsets = [0, 0], sizes = [8, 32], strides = [1, 1]} : vector<8x128xf32> to vector<8x32xf32>
    %336 = arith.addf %334, %335 : vector<8x32xf32>
    %337 = arith.negf %336 : vector<8x32xf32>
    %338 = math.exp %337 : vector<8x32xf32>
    %cst_88 = arith.constant 1.000000e+00 : f32
    %339 = vector.broadcast %cst_88 : f32 to vector<8x32xf32>
    %340 = arith.addf %339, %338 : vector<8x32xf32>
    %341 = arith.divf %339, %340 : vector<8x32xf32>
    %342 = vector.extract_strided_slice %331 {offsets = [0, 32], sizes = [8, 32], strides = [1, 1]} : vector<8x128xf32> to vector<8x32xf32>
    %343 = vector.extract_strided_slice %332 {offsets = [0, 32], sizes = [8, 32], strides = [1, 1]} : vector<8x128xf32> to vector<8x32xf32>
    %344 = arith.addf %342, %343 : vector<8x32xf32>
    %345 = arith.negf %344 : vector<8x32xf32>
    %346 = math.exp %345 : vector<8x32xf32>
    %cst_89 = arith.constant 1.000000e+00 : f32
    %347 = vector.broadcast %cst_89 : f32 to vector<8x32xf32>
    %348 = arith.addf %347, %346 : vector<8x32xf32>
    %349 = arith.divf %347, %348 : vector<8x32xf32>
    %350 = vector.extract_strided_slice %331 {offsets = [0, 64], sizes = [8, 32], strides = [1, 1]} : vector<8x128xf32> to vector<8x32xf32>
    %351 = vector.extract_strided_slice %332 {offsets = [0, 64], sizes = [8, 32], strides = [1, 1]} : vector<8x128xf32> to vector<8x32xf32>
    %352 = arith.mulf %341, %351 : vector<8x32xf32>
    %353 = arith.addf %350, %352 : vector<8x32xf32>
    %354 = math.tanh %353 : vector<8x32xf32>
    %cst_90 = arith.constant 1.000000e+00 : f32
    %355 = vector.broadcast %cst_90 : f32 to vector<8x32xf32>
    %356 = arith.subf %355, %349 : vector<8x32xf32>
    %357 = arith.mulf %356, %354 : vector<8x32xf32>
    %358 = arith.mulf %349, %333 : vector<8x32xf32>
    %359 = arith.addf %357, %358 : vector<8x32xf32>
    %c7_i32_91 = arith.constant 7 : i32
    %360 = arith.subi %c7_i32_91, %c4_i32 : i32
    %361 = arith.index_cast %360 : i32 to index
    %c0_92 = arith.constant 0 : index
    %c0_93 = arith.constant 0 : index
    %362 = vector.load %arg13[%361, %c0_92, %c0_93] : memref<8x8x128xf32, #tpu.memory_space<vmem>>, vector<1x8x128xf32>
    %363 = vector.shape_cast %362 : vector<1x8x128xf32> to vector<8x128xf32>
    %364 = vector.extract_strided_slice %328 {offsets = [0, 128], sizes = [8, 128], strides = [1, 1]} : vector<8x256xf32> to vector<8x128xf32>
    %365 = vector.extract_strided_slice %324 {offsets = [0, 32], sizes = [8, 32], strides = [1, 1]} : vector<8x128xf32> to vector<8x32xf32>
    %366 = vector.extract_strided_slice %363 {offsets = [0, 0], sizes = [8, 32], strides = [1, 1]} : vector<8x128xf32> to vector<8x32xf32>
    %367 = vector.extract_strided_slice %364 {offsets = [0, 0], sizes = [8, 32], strides = [1, 1]} : vector<8x128xf32> to vector<8x32xf32>
    %368 = arith.addf %366, %367 : vector<8x32xf32>
    %369 = arith.negf %368 : vector<8x32xf32>
    %370 = math.exp %369 : vector<8x32xf32>
    %cst_94 = arith.constant 1.000000e+00 : f32
    %371 = vector.broadcast %cst_94 : f32 to vector<8x32xf32>
    %372 = arith.addf %371, %370 : vector<8x32xf32>
    %373 = arith.divf %371, %372 : vector<8x32xf32>
    %374 = vector.extract_strided_slice %363 {offsets = [0, 32], sizes = [8, 32], strides = [1, 1]} : vector<8x128xf32> to vector<8x32xf32>
    %375 = vector.extract_strided_slice %364 {offsets = [0, 32], sizes = [8, 32], strides = [1, 1]} : vector<8x128xf32> to vector<8x32xf32>
    %376 = arith.addf %374, %375 : vector<8x32xf32>
    %377 = arith.negf %376 : vector<8x32xf32>
    %378 = math.exp %377 : vector<8x32xf32>
    %cst_95 = arith.constant 1.000000e+00 : f32
    %379 = vector.broadcast %cst_95 : f32 to vector<8x32xf32>
    %380 = arith.addf %379, %378 : vector<8x32xf32>
    %381 = arith.divf %379, %380 : vector<8x32xf32>
    %382 = vector.extract_strided_slice %363 {offsets = [0, 64], sizes = [8, 32], strides = [1, 1]} : vector<8x128xf32> to vector<8x32xf32>
    %383 = vector.extract_strided_slice %364 {offsets = [0, 64], sizes = [8, 32], strides = [1, 1]} : vector<8x128xf32> to vector<8x32xf32>
    %384 = arith.mulf %373, %383 : vector<8x32xf32>
    %385 = arith.addf %382, %384 : vector<8x32xf32>
    %386 = math.tanh %385 : vector<8x32xf32>
    %cst_96 = arith.constant 1.000000e+00 : f32
    %387 = vector.broadcast %cst_96 : f32 to vector<8x32xf32>
    %388 = arith.subf %387, %381 : vector<8x32xf32>
    %389 = arith.mulf %388, %386 : vector<8x32xf32>
    %390 = arith.mulf %381, %365 : vector<8x32xf32>
    %391 = arith.addf %389, %390 : vector<8x32xf32>
    %392 = arith.index_cast %c4_i32 : i32 to index
    %c0_97 = arith.constant 0 : index
    %c0_98 = arith.constant 0 : index
    %393 = vector.load %arg14[%392, %c0_97, %c0_98] : memref<8x8x32xf32, #tpu.memory_space<vmem>>, vector<1x8x32xf32>
    %394 = vector.shape_cast %393 : vector<1x8x32xf32> to vector<8x32xf32>
    %395 = vector.shape_cast %359 : vector<8x32xf32> to vector<1x8x32xf32>
    tpu.vector_store %arg14[%392, %c0_97, %c0_98], %395 {strides = array<i32>} : memref<8x8x32xf32, #tpu.memory_space<vmem>>, vector<1x8x32xf32>,
    %c7_i32_99 = arith.constant 7 : i32
    %396 = arith.subi %c7_i32_99, %c4_i32 : i32
    %397 = arith.index_cast %396 : i32 to index
    %c0_100 = arith.constant 0 : index
    %c0_101 = arith.constant 0 : index
    %398 = vector.load %arg15[%397, %c0_100, %c0_101] : memref<8x8x32xf32, #tpu.memory_space<vmem>>, vector<1x8x32xf32>
    %399 = vector.shape_cast %398 : vector<1x8x32xf32> to vector<8x32xf32>
    %400 = vector.shape_cast %391 : vector<8x32xf32> to vector<1x8x32xf32>
    tpu.vector_store %arg15[%397, %c0_100, %c0_101], %400 {strides = array<i32>} : memref<8x8x32xf32, #tpu.memory_space<vmem>>, vector<1x8x32xf32>,
    %401 = tpu.concatenate %359, %391, %0 in 1 : vector<8x32xf32>, vector<8x32xf32>, vector<8x64xf32> -> vector<8x128xf32>
    %c5_i32 = arith.constant 5 : i32
    %402 = arith.truncf %401 : vector<8x128xf32> to vector<8x128xbf16>
    %cst_102 = arith.constant dense<0.000000e+00> : vector<8x256xf32>
    %403 = tpu.matmul %402, %15, %cst_102 {dimension_numbers = #tpu.dot_dimension_numbers<[1], [0], [0], [1], [0, 0, 1, 1], [], []>} : vector<8x128xbf16>, vector<128x256xbf16>, vector<8x256xf32> -> vector<8x256xf32>
    %404 = vector.broadcast %16 : vector<1x256xf32> to vector<8x256xf32>
    %405 = arith.addf %403, %404 : vector<8x256xf32>
    %406 = arith.index_cast %c5_i32 : i32 to index
    %c0_103 = arith.constant 0 : index
    %c0_104 = arith.constant 0 : index
    %407 = vector.load %arg12[%406, %c0_103, %c0_104] : memref<8x8x128xf32, #tpu.memory_space<vmem>>, vector<1x8x128xf32>
    %408 = vector.shape_cast %407 : vector<1x8x128xf32> to vector<8x128xf32>
    %409 = vector.extract_strided_slice %405 {offsets = [0, 0], sizes = [8, 128], strides = [1, 1]} : vector<8x256xf32> to vector<8x128xf32>
    %410 = vector.extract_strided_slice %401 {offsets = [0, 0], sizes = [8, 32], strides = [1, 1]} : vector<8x128xf32> to vector<8x32xf32>
    %411 = vector.extract_strided_slice %408 {offsets = [0, 0], sizes = [8, 32], strides = [1, 1]} : vector<8x128xf32> to vector<8x32xf32>
    %412 = vector.extract_strided_slice %409 {offsets = [0, 0], sizes = [8, 32], strides = [1, 1]} : vector<8x128xf32> to vector<8x32xf32>
    %413 = arith.addf %411, %412 : vector<8x32xf32>
    %414 = arith.negf %413 : vector<8x32xf32>
    %415 = math.exp %414 : vector<8x32xf32>
    %cst_105 = arith.constant 1.000000e+00 : f32
    %416 = vector.broadcast %cst_105 : f32 to vector<8x32xf32>
    %417 = arith.addf %416, %415 : vector<8x32xf32>
    %418 = arith.divf %416, %417 : vector<8x32xf32>
    %419 = vector.extract_strided_slice %408 {offsets = [0, 32], sizes = [8, 32], strides = [1, 1]} : vector<8x128xf32> to vector<8x32xf32>
    %420 = vector.extract_strided_slice %409 {offsets = [0, 32], sizes = [8, 32], strides = [1, 1]} : vector<8x128xf32> to vector<8x32xf32>
    %421 = arith.addf %419, %420 : vector<8x32xf32>
    %422 = arith.negf %421 : vector<8x32xf32>
    %423 = math.exp %422 : vector<8x32xf32>
    %cst_106 = arith.constant 1.000000e+00 : f32
    %424 = vector.broadcast %cst_106 : f32 to vector<8x32xf32>
    %425 = arith.addf %424, %423 : vector<8x32xf32>
    %426 = arith.divf %424, %425 : vector<8x32xf32>
    %427 = vector.extract_strided_slice %408 {offsets = [0, 64], sizes = [8, 32], strides = [1, 1]} : vector<8x128xf32> to vector<8x32xf32>
    %428 = vector.extract_strided_slice %409 {offsets = [0, 64], sizes = [8, 32], strides = [1, 1]} : vector<8x128xf32> to vector<8x32xf32>
    %429 = arith.mulf %418, %428 : vector<8x32xf32>
    %430 = arith.addf %427, %429 : vector<8x32xf32>
    %431 = math.tanh %430 : vector<8x32xf32>
    %cst_107 = arith.constant 1.000000e+00 : f32
    %432 = vector.broadcast %cst_107 : f32 to vector<8x32xf32>
    %433 = arith.subf %432, %426 : vector<8x32xf32>
    %434 = arith.mulf %433, %431 : vector<8x32xf32>
    %435 = arith.mulf %426, %410 : vector<8x32xf32>
    %436 = arith.addf %434, %435 : vector<8x32xf32>
    %c7_i32_108 = arith.constant 7 : i32
    %437 = arith.subi %c7_i32_108, %c5_i32 : i32
    %438 = arith.index_cast %437 : i32 to index
    %c0_109 = arith.constant 0 : index
    %c0_110 = arith.constant 0 : index
    %439 = vector.load %arg13[%438, %c0_109, %c0_110] : memref<8x8x128xf32, #tpu.memory_space<vmem>>, vector<1x8x128xf32>
    %440 = vector.shape_cast %439 : vector<1x8x128xf32> to vector<8x128xf32>
    %441 = vector.extract_strided_slice %405 {offsets = [0, 128], sizes = [8, 128], strides = [1, 1]} : vector<8x256xf32> to vector<8x128xf32>
    %442 = vector.extract_strided_slice %401 {offsets = [0, 32], sizes = [8, 32], strides = [1, 1]} : vector<8x128xf32> to vector<8x32xf32>
    %443 = vector.extract_strided_slice %440 {offsets = [0, 0], sizes = [8, 32], strides = [1, 1]} : vector<8x128xf32> to vector<8x32xf32>
    %444 = vector.extract_strided_slice %441 {offsets = [0, 0], sizes = [8, 32], strides = [1, 1]} : vector<8x128xf32> to vector<8x32xf32>
    %445 = arith.addf %443, %444 : vector<8x32xf32>
    %446 = arith.negf %445 : vector<8x32xf32>
    %447 = math.exp %446 : vector<8x32xf32>
    %cst_111 = arith.constant 1.000000e+00 : f32
    %448 = vector.broadcast %cst_111 : f32 to vector<8x32xf32>
    %449 = arith.addf %448, %447 : vector<8x32xf32>
    %450 = arith.divf %448, %449 : vector<8x32xf32>
    %451 = vector.extract_strided_slice %440 {offsets = [0, 32], sizes = [8, 32], strides = [1, 1]} : vector<8x128xf32> to vector<8x32xf32>
    %452 = vector.extract_strided_slice %441 {offsets = [0, 32], sizes = [8, 32], strides = [1, 1]} : vector<8x128xf32> to vector<8x32xf32>
    %453 = arith.addf %451, %452 : vector<8x32xf32>
    %454 = arith.negf %453 : vector<8x32xf32>
    %455 = math.exp %454 : vector<8x32xf32>
    %cst_112 = arith.constant 1.000000e+00 : f32
    %456 = vector.broadcast %cst_112 : f32 to vector<8x32xf32>
    %457 = arith.addf %456, %455 : vector<8x32xf32>
    %458 = arith.divf %456, %457 : vector<8x32xf32>
    %459 = vector.extract_strided_slice %440 {offsets = [0, 64], sizes = [8, 32], strides = [1, 1]} : vector<8x128xf32> to vector<8x32xf32>
    %460 = vector.extract_strided_slice %441 {offsets = [0, 64], sizes = [8, 32], strides = [1, 1]} : vector<8x128xf32> to vector<8x32xf32>
    %461 = arith.mulf %450, %460 : vector<8x32xf32>
    %462 = arith.addf %459, %461 : vector<8x32xf32>
    %463 = math.tanh %462 : vector<8x32xf32>
    %cst_113 = arith.constant 1.000000e+00 : f32
    %464 = vector.broadcast %cst_113 : f32 to vector<8x32xf32>
    %465 = arith.subf %464, %458 : vector<8x32xf32>
    %466 = arith.mulf %465, %463 : vector<8x32xf32>
    %467 = arith.mulf %458, %442 : vector<8x32xf32>
    %468 = arith.addf %466, %467 : vector<8x32xf32>
    %469 = arith.index_cast %c5_i32 : i32 to index
    %c0_114 = arith.constant 0 : index
    %c0_115 = arith.constant 0 : index
    %470 = vector.load %arg14[%469, %c0_114, %c0_115] : memref<8x8x32xf32, #tpu.memory_space<vmem>>, vector<1x8x32xf32>
    %471 = vector.shape_cast %470 : vector<1x8x32xf32> to vector<8x32xf32>
    %472 = vector.shape_cast %436 : vector<8x32xf32> to vector<1x8x32xf32>
    tpu.vector_store %arg14[%469, %c0_114, %c0_115], %472 {strides = array<i32>} : memref<8x8x32xf32, #tpu.memory_space<vmem>>, vector<1x8x32xf32>,
    %c7_i32_116 = arith.constant 7 : i32
    %473 = arith.subi %c7_i32_116, %c5_i32 : i32
    %474 = arith.index_cast %473 : i32 to index
    %c0_117 = arith.constant 0 : index
    %c0_118 = arith.constant 0 : index
    %475 = vector.load %arg15[%474, %c0_117, %c0_118] : memref<8x8x32xf32, #tpu.memory_space<vmem>>, vector<1x8x32xf32>
    %476 = vector.shape_cast %475 : vector<1x8x32xf32> to vector<8x32xf32>
    %477 = vector.shape_cast %468 : vector<8x32xf32> to vector<1x8x32xf32>
    tpu.vector_store %arg15[%474, %c0_117, %c0_118], %477 {strides = array<i32>} : memref<8x8x32xf32, #tpu.memory_space<vmem>>, vector<1x8x32xf32>,
    %478 = tpu.concatenate %436, %468, %0 in 1 : vector<8x32xf32>, vector<8x32xf32>, vector<8x64xf32> -> vector<8x128xf32>
    %c6_i32 = arith.constant 6 : i32
    %479 = arith.truncf %478 : vector<8x128xf32> to vector<8x128xbf16>
    %cst_119 = arith.constant dense<0.000000e+00> : vector<8x256xf32>
    %480 = tpu.matmul %479, %15, %cst_119 {dimension_numbers = #tpu.dot_dimension_numbers<[1], [0], [0], [1], [0, 0, 1, 1], [], []>} : vector<8x128xbf16>, vector<128x256xbf16>, vector<8x256xf32> -> vector<8x256xf32>
    %481 = vector.broadcast %16 : vector<1x256xf32> to vector<8x256xf32>
    %482 = arith.addf %480, %481 : vector<8x256xf32>
    %483 = arith.index_cast %c6_i32 : i32 to index
    %c0_120 = arith.constant 0 : index
    %c0_121 = arith.constant 0 : index
    %484 = vector.load %arg12[%483, %c0_120, %c0_121] : memref<8x8x128xf32, #tpu.memory_space<vmem>>, vector<1x8x128xf32>
    %485 = vector.shape_cast %484 : vector<1x8x128xf32> to vector<8x128xf32>
    %486 = vector.extract_strided_slice %482 {offsets = [0, 0], sizes = [8, 128], strides = [1, 1]} : vector<8x256xf32> to vector<8x128xf32>
    %487 = vector.extract_strided_slice %478 {offsets = [0, 0], sizes = [8, 32], strides = [1, 1]} : vector<8x128xf32> to vector<8x32xf32>
    %488 = vector.extract_strided_slice %485 {offsets = [0, 0], sizes = [8, 32], strides = [1, 1]} : vector<8x128xf32> to vector<8x32xf32>
    %489 = vector.extract_strided_slice %486 {offsets = [0, 0], sizes = [8, 32], strides = [1, 1]} : vector<8x128xf32> to vector<8x32xf32>
    %490 = arith.addf %488, %489 : vector<8x32xf32>
    %491 = arith.negf %490 : vector<8x32xf32>
    %492 = math.exp %491 : vector<8x32xf32>
    %cst_122 = arith.constant 1.000000e+00 : f32
    %493 = vector.broadcast %cst_122 : f32 to vector<8x32xf32>
    %494 = arith.addf %493, %492 : vector<8x32xf32>
    %495 = arith.divf %493, %494 : vector<8x32xf32>
    %496 = vector.extract_strided_slice %485 {offsets = [0, 32], sizes = [8, 32], strides = [1, 1]} : vector<8x128xf32> to vector<8x32xf32>
    %497 = vector.extract_strided_slice %486 {offsets = [0, 32], sizes = [8, 32], strides = [1, 1]} : vector<8x128xf32> to vector<8x32xf32>
    %498 = arith.addf %496, %497 : vector<8x32xf32>
    %499 = arith.negf %498 : vector<8x32xf32>
    %500 = math.exp %499 : vector<8x32xf32>
    %cst_123 = arith.constant 1.000000e+00 : f32
    %501 = vector.broadcast %cst_123 : f32 to vector<8x32xf32>
    %502 = arith.addf %501, %500 : vector<8x32xf32>
    %503 = arith.divf %501, %502 : vector<8x32xf32>
    %504 = vector.extract_strided_slice %485 {offsets = [0, 64], sizes = [8, 32], strides = [1, 1]} : vector<8x128xf32> to vector<8x32xf32>
    %505 = vector.extract_strided_slice %486 {offsets = [0, 64], sizes = [8, 32], strides = [1, 1]} : vector<8x128xf32> to vector<8x32xf32>
    %506 = arith.mulf %495, %505 : vector<8x32xf32>
    %507 = arith.addf %504, %506 : vector<8x32xf32>
    %508 = math.tanh %507 : vector<8x32xf32>
    %cst_124 = arith.constant 1.000000e+00 : f32
    %509 = vector.broadcast %cst_124 : f32 to vector<8x32xf32>
    %510 = arith.subf %509, %503 : vector<8x32xf32>
    %511 = arith.mulf %510, %508 : vector<8x32xf32>
    %512 = arith.mulf %503, %487 : vector<8x32xf32>
    %513 = arith.addf %511, %512 : vector<8x32xf32>
    %c7_i32_125 = arith.constant 7 : i32
    %514 = arith.subi %c7_i32_125, %c6_i32 : i32
    %515 = arith.index_cast %514 : i32 to index
    %c0_126 = arith.constant 0 : index
    %c0_127 = arith.constant 0 : index
    %516 = vector.load %arg13[%515, %c0_126, %c0_127] : memref<8x8x128xf32, #tpu.memory_space<vmem>>, vector<1x8x128xf32>
    %517 = vector.shape_cast %516 : vector<1x8x128xf32> to vector<8x128xf32>
    %518 = vector.extract_strided_slice %482 {offsets = [0, 128], sizes = [8, 128], strides = [1, 1]} : vector<8x256xf32> to vector<8x128xf32>
    %519 = vector.extract_strided_slice %478 {offsets = [0, 32], sizes = [8, 32], strides = [1, 1]} : vector<8x128xf32> to vector<8x32xf32>
    %520 = vector.extract_strided_slice %517 {offsets = [0, 0], sizes = [8, 32], strides = [1, 1]} : vector<8x128xf32> to vector<8x32xf32>
    %521 = vector.extract_strided_slice %518 {offsets = [0, 0], sizes = [8, 32], strides = [1, 1]} : vector<8x128xf32> to vector<8x32xf32>
    %522 = arith.addf %520, %521 : vector<8x32xf32>
    %523 = arith.negf %522 : vector<8x32xf32>
    %524 = math.exp %523 : vector<8x32xf32>
    %cst_128 = arith.constant 1.000000e+00 : f32
    %525 = vector.broadcast %cst_128 : f32 to vector<8x32xf32>
    %526 = arith.addf %525, %524 : vector<8x32xf32>
    %527 = arith.divf %525, %526 : vector<8x32xf32>
    %528 = vector.extract_strided_slice %517 {offsets = [0, 32], sizes = [8, 32], strides = [1, 1]} : vector<8x128xf32> to vector<8x32xf32>
    %529 = vector.extract_strided_slice %518 {offsets = [0, 32], sizes = [8, 32], strides = [1, 1]} : vector<8x128xf32> to vector<8x32xf32>
    %530 = arith.addf %528, %529 : vector<8x32xf32>
    %531 = arith.negf %530 : vector<8x32xf32>
    %532 = math.exp %531 : vector<8x32xf32>
    %cst_129 = arith.constant 1.000000e+00 : f32
    %533 = vector.broadcast %cst_129 : f32 to vector<8x32xf32>
    %534 = arith.addf %533, %532 : vector<8x32xf32>
    %535 = arith.divf %533, %534 : vector<8x32xf32>
    %536 = vector.extract_strided_slice %517 {offsets = [0, 64], sizes = [8, 32], strides = [1, 1]} : vector<8x128xf32> to vector<8x32xf32>
    %537 = vector.extract_strided_slice %518 {offsets = [0, 64], sizes = [8, 32], strides = [1, 1]} : vector<8x128xf32> to vector<8x32xf32>
    %538 = arith.mulf %527, %537 : vector<8x32xf32>
    %539 = arith.addf %536, %538 : vector<8x32xf32>
    %540 = math.tanh %539 : vector<8x32xf32>
    %cst_130 = arith.constant 1.000000e+00 : f32
    %541 = vector.broadcast %cst_130 : f32 to vector<8x32xf32>
    %542 = arith.subf %541, %535 : vector<8x32xf32>
    %543 = arith.mulf %542, %540 : vector<8x32xf32>
    %544 = arith.mulf %535, %519 : vector<8x32xf32>
    %545 = arith.addf %543, %544 : vector<8x32xf32>
    %546 = arith.index_cast %c6_i32 : i32 to index
    %c0_131 = arith.constant 0 : index
    %c0_132 = arith.constant 0 : index
    %547 = vector.load %arg14[%546, %c0_131, %c0_132] : memref<8x8x32xf32, #tpu.memory_space<vmem>>, vector<1x8x32xf32>
    %548 = vector.shape_cast %547 : vector<1x8x32xf32> to vector<8x32xf32>
    %549 = vector.shape_cast %513 : vector<8x32xf32> to vector<1x8x32xf32>
    tpu.vector_store %arg14[%546, %c0_131, %c0_132], %549 {strides = array<i32>} : memref<8x8x32xf32, #tpu.memory_space<vmem>>, vector<1x8x32xf32>,
    %c7_i32_133 = arith.constant 7 : i32
    %550 = arith.subi %c7_i32_133, %c6_i32 : i32
    %551 = arith.index_cast %550 : i32 to index
    %c0_134 = arith.constant 0 : index
    %c0_135 = arith.constant 0 : index
    %552 = vector.load %arg15[%551, %c0_134, %c0_135] : memref<8x8x32xf32, #tpu.memory_space<vmem>>, vector<1x8x32xf32>
    %553 = vector.shape_cast %552 : vector<1x8x32xf32> to vector<8x32xf32>
    %554 = vector.shape_cast %545 : vector<8x32xf32> to vector<1x8x32xf32>
    tpu.vector_store %arg15[%551, %c0_134, %c0_135], %554 {strides = array<i32>} : memref<8x8x32xf32, #tpu.memory_space<vmem>>, vector<1x8x32xf32>,
    %555 = tpu.concatenate %513, %545, %0 in 1 : vector<8x32xf32>, vector<8x32xf32>, vector<8x64xf32> -> vector<8x128xf32>
    %c7_i32_136 = arith.constant 7 : i32
    %556 = arith.truncf %555 : vector<8x128xf32> to vector<8x128xbf16>
    %cst_137 = arith.constant dense<0.000000e+00> : vector<8x256xf32>
    %557 = tpu.matmul %556, %15, %cst_137 {dimension_numbers = #tpu.dot_dimension_numbers<[1], [0], [0], [1], [0, 0, 1, 1], [], []>} : vector<8x128xbf16>, vector<128x256xbf16>, vector<8x256xf32> -> vector<8x256xf32>
    %558 = vector.broadcast %16 : vector<1x256xf32> to vector<8x256xf32>
    %559 = arith.addf %557, %558 : vector<8x256xf32>
    %560 = arith.index_cast %c7_i32_136 : i32 to index
    %c0_138 = arith.constant 0 : index
    %c0_139 = arith.constant 0 : index
    %561 = vector.load %arg12[%560, %c0_138, %c0_139] : memref<8x8x128xf32, #tpu.memory_space<vmem>>, vector<1x8x128xf32>
    %562 = vector.shape_cast %561 : vector<1x8x128xf32> to vector<8x128xf32>
    %563 = vector.extract_strided_slice %559 {offsets = [0, 0], sizes = [8, 128], strides = [1, 1]} : vector<8x256xf32> to vector<8x128xf32>
    %564 = vector.extract_strided_slice %555 {offsets = [0, 0], sizes = [8, 32], strides = [1, 1]} : vector<8x128xf32> to vector<8x32xf32>
    %565 = vector.extract_strided_slice %562 {offsets = [0, 0], sizes = [8, 32], strides = [1, 1]} : vector<8x128xf32> to vector<8x32xf32>
    %566 = vector.extract_strided_slice %563 {offsets = [0, 0], sizes = [8, 32], strides = [1, 1]} : vector<8x128xf32> to vector<8x32xf32>
    %567 = arith.addf %565, %566 : vector<8x32xf32>
    %568 = arith.negf %567 : vector<8x32xf32>
    %569 = math.exp %568 : vector<8x32xf32>
    %cst_140 = arith.constant 1.000000e+00 : f32
    %570 = vector.broadcast %cst_140 : f32 to vector<8x32xf32>
    %571 = arith.addf %570, %569 : vector<8x32xf32>
    %572 = arith.divf %570, %571 : vector<8x32xf32>
    %573 = vector.extract_strided_slice %562 {offsets = [0, 32], sizes = [8, 32], strides = [1, 1]} : vector<8x128xf32> to vector<8x32xf32>
    %574 = vector.extract_strided_slice %563 {offsets = [0, 32], sizes = [8, 32], strides = [1, 1]} : vector<8x128xf32> to vector<8x32xf32>
    %575 = arith.addf %573, %574 : vector<8x32xf32>
    %576 = arith.negf %575 : vector<8x32xf32>
    %577 = math.exp %576 : vector<8x32xf32>
    %cst_141 = arith.constant 1.000000e+00 : f32
    %578 = vector.broadcast %cst_141 : f32 to vector<8x32xf32>
    %579 = arith.addf %578, %577 : vector<8x32xf32>
    %580 = arith.divf %578, %579 : vector<8x32xf32>
    %581 = vector.extract_strided_slice %562 {offsets = [0, 64], sizes = [8, 32], strides = [1, 1]} : vector<8x128xf32> to vector<8x32xf32>
    %582 = vector.extract_strided_slice %563 {offsets = [0, 64], sizes = [8, 32], strides = [1, 1]} : vector<8x128xf32> to vector<8x32xf32>
    %583 = arith.mulf %572, %582 : vector<8x32xf32>
    %584 = arith.addf %581, %583 : vector<8x32xf32>
    %585 = math.tanh %584 : vector<8x32xf32>
    %cst_142 = arith.constant 1.000000e+00 : f32
    %586 = vector.broadcast %cst_142 : f32 to vector<8x32xf32>
    %587 = arith.subf %586, %580 : vector<8x32xf32>
    %588 = arith.mulf %587, %585 : vector<8x32xf32>
    %589 = arith.mulf %580, %564 : vector<8x32xf32>
    %590 = arith.addf %588, %589 : vector<8x32xf32>
    %c7_i32_143 = arith.constant 7 : i32
    %591 = arith.subi %c7_i32_143, %c7_i32_136 : i32
    %592 = arith.index_cast %591 : i32 to index
    %c0_144 = arith.constant 0 : index
    %c0_145 = arith.constant 0 : index
    %593 = vector.load %arg13[%592, %c0_144, %c0_145] : memref<8x8x128xf32, #tpu.memory_space<vmem>>, vector<1x8x128xf32>
    %594 = vector.shape_cast %593 : vector<1x8x128xf32> to vector<8x128xf32>
    %595 = vector.extract_strided_slice %559 {offsets = [0, 128], sizes = [8, 128], strides = [1, 1]} : vector<8x256xf32> to vector<8x128xf32>
    %596 = vector.extract_strided_slice %555 {offsets = [0, 32], sizes = [8, 32], strides = [1, 1]} : vector<8x128xf32> to vector<8x32xf32>
    %597 = vector.extract_strided_slice %594 {offsets = [0, 0], sizes = [8, 32], strides = [1, 1]} : vector<8x128xf32> to vector<8x32xf32>
    %598 = vector.extract_strided_slice %595 {offsets = [0, 0], sizes = [8, 32], strides = [1, 1]} : vector<8x128xf32> to vector<8x32xf32>
    %599 = arith.addf %597, %598 : vector<8x32xf32>
    %600 = arith.negf %599 : vector<8x32xf32>
    %601 = math.exp %600 : vector<8x32xf32>
    %cst_146 = arith.constant 1.000000e+00 : f32
    %602 = vector.broadcast %cst_146 : f32 to vector<8x32xf32>
    %603 = arith.addf %602, %601 : vector<8x32xf32>
    %604 = arith.divf %602, %603 : vector<8x32xf32>
    %605 = vector.extract_strided_slice %594 {offsets = [0, 32], sizes = [8, 32], strides = [1, 1]} : vector<8x128xf32> to vector<8x32xf32>
    %606 = vector.extract_strided_slice %595 {offsets = [0, 32], sizes = [8, 32], strides = [1, 1]} : vector<8x128xf32> to vector<8x32xf32>
    %607 = arith.addf %605, %606 : vector<8x32xf32>
    %608 = arith.negf %607 : vector<8x32xf32>
    %609 = math.exp %608 : vector<8x32xf32>
    %cst_147 = arith.constant 1.000000e+00 : f32
    %610 = vector.broadcast %cst_147 : f32 to vector<8x32xf32>
    %611 = arith.addf %610, %609 : vector<8x32xf32>
    %612 = arith.divf %610, %611 : vector<8x32xf32>
    %613 = vector.extract_strided_slice %594 {offsets = [0, 64], sizes = [8, 32], strides = [1, 1]} : vector<8x128xf32> to vector<8x32xf32>
    %614 = vector.extract_strided_slice %595 {offsets = [0, 64], sizes = [8, 32], strides = [1, 1]} : vector<8x128xf32> to vector<8x32xf32>
    %615 = arith.mulf %604, %614 : vector<8x32xf32>
    %616 = arith.addf %613, %615 : vector<8x32xf32>
    %617 = math.tanh %616 : vector<8x32xf32>
    %cst_148 = arith.constant 1.000000e+00 : f32
    %618 = vector.broadcast %cst_148 : f32 to vector<8x32xf32>
    %619 = arith.subf %618, %612 : vector<8x32xf32>
    %620 = arith.mulf %619, %617 : vector<8x32xf32>
    %621 = arith.mulf %612, %596 : vector<8x32xf32>
    %622 = arith.addf %620, %621 : vector<8x32xf32>
    %623 = arith.index_cast %c7_i32_136 : i32 to index
    %c0_149 = arith.constant 0 : index
    %c0_150 = arith.constant 0 : index
    %624 = vector.load %arg14[%623, %c0_149, %c0_150] : memref<8x8x32xf32, #tpu.memory_space<vmem>>, vector<1x8x32xf32>
    %625 = vector.shape_cast %624 : vector<1x8x32xf32> to vector<8x32xf32>
    %626 = vector.shape_cast %590 : vector<8x32xf32> to vector<1x8x32xf32>
    tpu.vector_store %arg14[%623, %c0_149, %c0_150], %626 {strides = array<i32>} : memref<8x8x32xf32, #tpu.memory_space<vmem>>, vector<1x8x32xf32>,
    %c7_i32_151 = arith.constant 7 : i32
    %627 = arith.subi %c7_i32_151, %c7_i32_136 : i32
    %628 = arith.index_cast %627 : i32 to index
    %c0_152 = arith.constant 0 : index
    %c0_153 = arith.constant 0 : index
    %629 = vector.load %arg15[%628, %c0_152, %c0_153] : memref<8x8x32xf32, #tpu.memory_space<vmem>>, vector<1x8x32xf32>
    %630 = vector.shape_cast %629 : vector<1x8x32xf32> to vector<8x32xf32>
    %631 = vector.shape_cast %622 : vector<8x32xf32> to vector<1x8x32xf32>
    tpu.vector_store %arg15[%628, %c0_152, %c0_153], %631 {strides = array<i32>} : memref<8x8x32xf32, #tpu.memory_space<vmem>>, vector<1x8x32xf32>,
    %632 = tpu.concatenate %590, %622, %0 in 1 : vector<8x32xf32>, vector<8x32xf32>, vector<8x64xf32> -> vector<8x128xf32>
    %c8_i32 = arith.constant 8 : i32
    %c0_154 = arith.constant 0 : index
    %c0_155 = arith.constant 0 : index
    %c0_156 = arith.constant 0 : index
    %633 = vector.load %arg14[%c0_154, %c0_155, %c0_156] : memref<8x8x32xf32, #tpu.memory_space<vmem>>, vector<8x8x32xf32>
    %c0_157 = arith.constant 0 : index
    %c0_158 = arith.constant 0 : index
    %c0_159 = arith.constant 0 : index
    %634 = vector.load %arg15[%c0_157, %c0_158, %c0_159] : memref<8x8x32xf32, #tpu.memory_space<vmem>>, vector<8x8x32xf32>
    %635 = tpu.concatenate %633, %634, %1 in 2 : vector<8x8x32xf32>, vector<8x8x32xf32>, vector<8x8x64xf32> -> vector<8x8x128xf32>
    %636 = vector.shape_cast %635 : vector<8x8x128xf32> to vector<64x128xf32>
    %637 = arith.truncf %636 : vector<64x128xf32> to vector<64x128xbf16>
    %c0_160 = arith.constant 0 : index
    %c0_161 = arith.constant 0 : index
    %638 = vector.load %arg5[%c0_160, %c0_161] : memref<128x256xbf16, #tpu.memory_space<vmem>>, vector<128x256xbf16>
    %cst_162 = arith.constant dense<0.000000e+00> : vector<64x256xf32>
    %639 = tpu.matmul %637, %638, %cst_162 {dimension_numbers = #tpu.dot_dimension_numbers<[1], [0], [0], [1], [0, 0, 1, 1], [], []>} : vector<64x128xbf16>, vector<128x256xbf16>, vector<64x256xf32> -> vector<64x256xf32>
    %c0_163 = arith.constant 0 : index
    %c0_164 = arith.constant 0 : index
    %640 = vector.load %arg7[%c0_163, %c0_164] : memref<1x256xf32, #tpu.memory_space<vmem>>, vector<1x256xf32>
    %641 = vector.broadcast %640 : vector<1x256xf32> to vector<64x256xf32>
    %642 = arith.addf %639, %641 : vector<64x256xf32>
    %643 = vector.extract_strided_slice %642 {offsets = [0, 0], sizes = [64, 128], strides = [1, 1]} : vector<64x256xf32> to vector<64x128xf32>
    %644 = vector.shape_cast %643 : vector<64x128xf32> to vector<8x8x128xf32>
    %c0_165 = arith.constant 0 : index
    %c0_166 = arith.constant 0 : index
    %c0_167 = arith.constant 0 : index
    %645 = vector.load %arg12[%c0_165, %c0_166, %c0_167] : memref<8x8x128xf32, #tpu.memory_space<vmem>>, vector<8x8x128xf32>
    tpu.vector_store %arg12[%c0_165, %c0_166, %c0_167], %644 {strides = array<i32>} : memref<8x8x128xf32, #tpu.memory_space<vmem>>, vector<8x8x128xf32>,
    %646 = vector.extract_strided_slice %642 {offsets = [0, 128], sizes = [64, 128], strides = [1, 1]} : vector<64x256xf32> to vector<64x128xf32>
    %647 = vector.shape_cast %646 : vector<64x128xf32> to vector<8x8x128xf32>
    %c0_168 = arith.constant 0 : index
    %c0_169 = arith.constant 0 : index
    %c0_170 = arith.constant 0 : index
    %648 = vector.load %arg13[%c0_168, %c0_169, %c0_170] : memref<8x8x128xf32, #tpu.memory_space<vmem>>, vector<8x8x128xf32>
    tpu.vector_store %arg13[%c0_168, %c0_169, %c0_170], %647 {strides = array<i32>} : memref<8x8x128xf32, #tpu.memory_space<vmem>>, vector<8x8x128xf32>,
    %c0_171 = arith.constant 0 : index
    %c0_172 = arith.constant 0 : index
    %649 = vector.load %arg6[%c0_171, %c0_172] : memref<128x256xbf16, #tpu.memory_space<vmem>>, vector<128x256xbf16>
    %c0_173 = arith.constant 0 : index
    %c0_174 = arith.constant 0 : index
    %650 = vector.load %arg8[%c0_173, %c0_174] : memref<1x256xf32, #tpu.memory_space<vmem>>, vector<1x256xf32>
    %c0_i32_175 = arith.constant 0 : i32
    %651 = arith.truncf %632 : vector<8x128xf32> to vector<8x128xbf16>
    %cst_176 = arith.constant dense<0.000000e+00> : vector<8x256xf32>
    %652 = tpu.matmul %651, %649, %cst_176 {dimension_numbers = #tpu.dot_dimension_numbers<[1], [0], [0], [1], [0, 0, 1, 1], [], []>} : vector<8x128xbf16>, vector<128x256xbf16>, vector<8x256xf32> -> vector<8x256xf32>
    %653 = vector.broadcast %650 : vector<1x256xf32> to vector<8x256xf32>
    %654 = arith.addf %652, %653 : vector<8x256xf32>
    %655 = arith.index_cast %c0_i32_175 : i32 to index
    %c0_177 = arith.constant 0 : index
    %c0_178 = arith.constant 0 : index
    %656 = vector.load %arg12[%655, %c0_177, %c0_178] : memref<8x8x128xf32, #tpu.memory_space<vmem>>, vector<1x8x128xf32>
    %657 = vector.shape_cast %656 : vector<1x8x128xf32> to vector<8x128xf32>
    %658 = vector.extract_strided_slice %654 {offsets = [0, 0], sizes = [8, 128], strides = [1, 1]} : vector<8x256xf32> to vector<8x128xf32>
    %659 = vector.extract_strided_slice %632 {offsets = [0, 0], sizes = [8, 32], strides = [1, 1]} : vector<8x128xf32> to vector<8x32xf32>
    %660 = vector.extract_strided_slice %657 {offsets = [0, 0], sizes = [8, 32], strides = [1, 1]} : vector<8x128xf32> to vector<8x32xf32>
    %661 = vector.extract_strided_slice %658 {offsets = [0, 0], sizes = [8, 32], strides = [1, 1]} : vector<8x128xf32> to vector<8x32xf32>
    %662 = arith.addf %660, %661 : vector<8x32xf32>
    %663 = arith.negf %662 : vector<8x32xf32>
    %664 = math.exp %663 : vector<8x32xf32>
    %cst_179 = arith.constant 1.000000e+00 : f32
    %665 = vector.broadcast %cst_179 : f32 to vector<8x32xf32>
    %666 = arith.addf %665, %664 : vector<8x32xf32>
    %667 = arith.divf %665, %666 : vector<8x32xf32>
    %668 = vector.extract_strided_slice %657 {offsets = [0, 32], sizes = [8, 32], strides = [1, 1]} : vector<8x128xf32> to vector<8x32xf32>
    %669 = vector.extract_strided_slice %658 {offsets = [0, 32], sizes = [8, 32], strides = [1, 1]} : vector<8x128xf32> to vector<8x32xf32>
    %670 = arith.addf %668, %669 : vector<8x32xf32>
    %671 = arith.negf %670 : vector<8x32xf32>
    %672 = math.exp %671 : vector<8x32xf32>
    %cst_180 = arith.constant 1.000000e+00 : f32
    %673 = vector.broadcast %cst_180 : f32 to vector<8x32xf32>
    %674 = arith.addf %673, %672 : vector<8x32xf32>
    %675 = arith.divf %673, %674 : vector<8x32xf32>
    %676 = vector.extract_strided_slice %657 {offsets = [0, 64], sizes = [8, 32], strides = [1, 1]} : vector<8x128xf32> to vector<8x32xf32>
    %677 = vector.extract_strided_slice %658 {offsets = [0, 64], sizes = [8, 32], strides = [1, 1]} : vector<8x128xf32> to vector<8x32xf32>
    %678 = arith.mulf %667, %677 : vector<8x32xf32>
    %679 = arith.addf %676, %678 : vector<8x32xf32>
    %680 = math.tanh %679 : vector<8x32xf32>
    %cst_181 = arith.constant 1.000000e+00 : f32
    %681 = vector.broadcast %cst_181 : f32 to vector<8x32xf32>
    %682 = arith.subf %681, %675 : vector<8x32xf32>
    %683 = arith.mulf %682, %680 : vector<8x32xf32>
    %684 = arith.mulf %675, %659 : vector<8x32xf32>
    %685 = arith.addf %683, %684 : vector<8x32xf32>
    %c7_i32_182 = arith.constant 7 : i32
    %686 = arith.subi %c7_i32_182, %c0_i32_175 : i32
    %687 = arith.index_cast %686 : i32 to index
    %c0_183 = arith.constant 0 : index
    %c0_184 = arith.constant 0 : index
    %688 = vector.load %arg13[%687, %c0_183, %c0_184] : memref<8x8x128xf32, #tpu.memory_space<vmem>>, vector<1x8x128xf32>
    %689 = vector.shape_cast %688 : vector<1x8x128xf32> to vector<8x128xf32>
    %690 = vector.extract_strided_slice %654 {offsets = [0, 128], sizes = [8, 128], strides = [1, 1]} : vector<8x256xf32> to vector<8x128xf32>
    %691 = vector.extract_strided_slice %632 {offsets = [0, 32], sizes = [8, 32], strides = [1, 1]} : vector<8x128xf32> to vector<8x32xf32>
    %692 = vector.extract_strided_slice %689 {offsets = [0, 0], sizes = [8, 32], strides = [1, 1]} : vector<8x128xf32> to vector<8x32xf32>
    %693 = vector.extract_strided_slice %690 {offsets = [0, 0], sizes = [8, 32], strides = [1, 1]} : vector<8x128xf32> to vector<8x32xf32>
    %694 = arith.addf %692, %693 : vector<8x32xf32>
    %695 = arith.negf %694 : vector<8x32xf32>
    %696 = math.exp %695 : vector<8x32xf32>
    %cst_185 = arith.constant 1.000000e+00 : f32
    %697 = vector.broadcast %cst_185 : f32 to vector<8x32xf32>
    %698 = arith.addf %697, %696 : vector<8x32xf32>
    %699 = arith.divf %697, %698 : vector<8x32xf32>
    %700 = vector.extract_strided_slice %689 {offsets = [0, 32], sizes = [8, 32], strides = [1, 1]} : vector<8x128xf32> to vector<8x32xf32>
    %701 = vector.extract_strided_slice %690 {offsets = [0, 32], sizes = [8, 32], strides = [1, 1]} : vector<8x128xf32> to vector<8x32xf32>
    %702 = arith.addf %700, %701 : vector<8x32xf32>
    %703 = arith.negf %702 : vector<8x32xf32>
    %704 = math.exp %703 : vector<8x32xf32>
    %cst_186 = arith.constant 1.000000e+00 : f32
    %705 = vector.broadcast %cst_186 : f32 to vector<8x32xf32>
    %706 = arith.addf %705, %704 : vector<8x32xf32>
    %707 = arith.divf %705, %706 : vector<8x32xf32>
    %708 = vector.extract_strided_slice %689 {offsets = [0, 64], sizes = [8, 32], strides = [1, 1]} : vector<8x128xf32> to vector<8x32xf32>
    %709 = vector.extract_strided_slice %690 {offsets = [0, 64], sizes = [8, 32], strides = [1, 1]} : vector<8x128xf32> to vector<8x32xf32>
    %710 = arith.mulf %699, %709 : vector<8x32xf32>
    %711 = arith.addf %708, %710 : vector<8x32xf32>
    %712 = math.tanh %711 : vector<8x32xf32>
    %cst_187 = arith.constant 1.000000e+00 : f32
    %713 = vector.broadcast %cst_187 : f32 to vector<8x32xf32>
    %714 = arith.subf %713, %707 : vector<8x32xf32>
    %715 = arith.mulf %714, %712 : vector<8x32xf32>
    %716 = arith.mulf %707, %691 : vector<8x32xf32>
    %717 = arith.addf %715, %716 : vector<8x32xf32>
    %718 = arith.index_cast %c0_i32_175 : i32 to index
    %c0_188 = arith.constant 0 : index
    %c0_189 = arith.constant 0 : index
    %719 = vector.load %arg14[%718, %c0_188, %c0_189] : memref<8x8x32xf32, #tpu.memory_space<vmem>>, vector<1x8x32xf32>
    %720 = vector.shape_cast %719 : vector<1x8x32xf32> to vector<8x32xf32>
    %721 = vector.shape_cast %685 : vector<8x32xf32> to vector<1x8x32xf32>
    tpu.vector_store %arg14[%718, %c0_188, %c0_189], %721 {strides = array<i32>} : memref<8x8x32xf32, #tpu.memory_space<vmem>>, vector<1x8x32xf32>,
    %c7_i32_190 = arith.constant 7 : i32
    %722 = arith.subi %c7_i32_190, %c0_i32_175 : i32
    %723 = arith.index_cast %722 : i32 to index
    %c0_191 = arith.constant 0 : index
    %c0_192 = arith.constant 0 : index
    %724 = vector.load %arg15[%723, %c0_191, %c0_192] : memref<8x8x32xf32, #tpu.memory_space<vmem>>, vector<1x8x32xf32>
    %725 = vector.shape_cast %724 : vector<1x8x32xf32> to vector<8x32xf32>
    %726 = vector.shape_cast %717 : vector<8x32xf32> to vector<1x8x32xf32>
    tpu.vector_store %arg15[%723, %c0_191, %c0_192], %726 {strides = array<i32>} : memref<8x8x32xf32, #tpu.memory_space<vmem>>, vector<1x8x32xf32>,
    %727 = tpu.concatenate %685, %717, %0 in 1 : vector<8x32xf32>, vector<8x32xf32>, vector<8x64xf32> -> vector<8x128xf32>
    %c1_i32_193 = arith.constant 1 : i32
    %728 = arith.truncf %727 : vector<8x128xf32> to vector<8x128xbf16>
    %cst_194 = arith.constant dense<0.000000e+00> : vector<8x256xf32>
    %729 = tpu.matmul %728, %649, %cst_194 {dimension_numbers = #tpu.dot_dimension_numbers<[1], [0], [0], [1], [0, 0, 1, 1], [], []>} : vector<8x128xbf16>, vector<128x256xbf16>, vector<8x256xf32> -> vector<8x256xf32>
    %730 = vector.broadcast %650 : vector<1x256xf32> to vector<8x256xf32>
    %731 = arith.addf %729, %730 : vector<8x256xf32>
    %732 = arith.index_cast %c1_i32_193 : i32 to index
    %c0_195 = arith.constant 0 : index
    %c0_196 = arith.constant 0 : index
    %733 = vector.load %arg12[%732, %c0_195, %c0_196] : memref<8x8x128xf32, #tpu.memory_space<vmem>>, vector<1x8x128xf32>
    %734 = vector.shape_cast %733 : vector<1x8x128xf32> to vector<8x128xf32>
    %735 = vector.extract_strided_slice %731 {offsets = [0, 0], sizes = [8, 128], strides = [1, 1]} : vector<8x256xf32> to vector<8x128xf32>
    %736 = vector.extract_strided_slice %727 {offsets = [0, 0], sizes = [8, 32], strides = [1, 1]} : vector<8x128xf32> to vector<8x32xf32>
    %737 = vector.extract_strided_slice %734 {offsets = [0, 0], sizes = [8, 32], strides = [1, 1]} : vector<8x128xf32> to vector<8x32xf32>
    %738 = vector.extract_strided_slice %735 {offsets = [0, 0], sizes = [8, 32], strides = [1, 1]} : vector<8x128xf32> to vector<8x32xf32>
    %739 = arith.addf %737, %738 : vector<8x32xf32>
    %740 = arith.negf %739 : vector<8x32xf32>
    %741 = math.exp %740 : vector<8x32xf32>
    %cst_197 = arith.constant 1.000000e+00 : f32
    %742 = vector.broadcast %cst_197 : f32 to vector<8x32xf32>
    %743 = arith.addf %742, %741 : vector<8x32xf32>
    %744 = arith.divf %742, %743 : vector<8x32xf32>
    %745 = vector.extract_strided_slice %734 {offsets = [0, 32], sizes = [8, 32], strides = [1, 1]} : vector<8x128xf32> to vector<8x32xf32>
    %746 = vector.extract_strided_slice %735 {offsets = [0, 32], sizes = [8, 32], strides = [1, 1]} : vector<8x128xf32> to vector<8x32xf32>
    %747 = arith.addf %745, %746 : vector<8x32xf32>
    %748 = arith.negf %747 : vector<8x32xf32>
    %749 = math.exp %748 : vector<8x32xf32>
    %cst_198 = arith.constant 1.000000e+00 : f32
    %750 = vector.broadcast %cst_198 : f32 to vector<8x32xf32>
    %751 = arith.addf %750, %749 : vector<8x32xf32>
    %752 = arith.divf %750, %751 : vector<8x32xf32>
    %753 = vector.extract_strided_slice %734 {offsets = [0, 64], sizes = [8, 32], strides = [1, 1]} : vector<8x128xf32> to vector<8x32xf32>
    %754 = vector.extract_strided_slice %735 {offsets = [0, 64], sizes = [8, 32], strides = [1, 1]} : vector<8x128xf32> to vector<8x32xf32>
    %755 = arith.mulf %744, %754 : vector<8x32xf32>
    %756 = arith.addf %753, %755 : vector<8x32xf32>
    %757 = math.tanh %756 : vector<8x32xf32>
    %cst_199 = arith.constant 1.000000e+00 : f32
    %758 = vector.broadcast %cst_199 : f32 to vector<8x32xf32>
    %759 = arith.subf %758, %752 : vector<8x32xf32>
    %760 = arith.mulf %759, %757 : vector<8x32xf32>
    %761 = arith.mulf %752, %736 : vector<8x32xf32>
    %762 = arith.addf %760, %761 : vector<8x32xf32>
    %c7_i32_200 = arith.constant 7 : i32
    %763 = arith.subi %c7_i32_200, %c1_i32_193 : i32
    %764 = arith.index_cast %763 : i32 to index
    %c0_201 = arith.constant 0 : index
    %c0_202 = arith.constant 0 : index
    %765 = vector.load %arg13[%764, %c0_201, %c0_202] : memref<8x8x128xf32, #tpu.memory_space<vmem>>, vector<1x8x128xf32>
    %766 = vector.shape_cast %765 : vector<1x8x128xf32> to vector<8x128xf32>
    %767 = vector.extract_strided_slice %731 {offsets = [0, 128], sizes = [8, 128], strides = [1, 1]} : vector<8x256xf32> to vector<8x128xf32>
    %768 = vector.extract_strided_slice %727 {offsets = [0, 32], sizes = [8, 32], strides = [1, 1]} : vector<8x128xf32> to vector<8x32xf32>
    %769 = vector.extract_strided_slice %766 {offsets = [0, 0], sizes = [8, 32], strides = [1, 1]} : vector<8x128xf32> to vector<8x32xf32>
    %770 = vector.extract_strided_slice %767 {offsets = [0, 0], sizes = [8, 32], strides = [1, 1]} : vector<8x128xf32> to vector<8x32xf32>
    %771 = arith.addf %769, %770 : vector<8x32xf32>
    %772 = arith.negf %771 : vector<8x32xf32>
    %773 = math.exp %772 : vector<8x32xf32>
    %cst_203 = arith.constant 1.000000e+00 : f32
    %774 = vector.broadcast %cst_203 : f32 to vector<8x32xf32>
    %775 = arith.addf %774, %773 : vector<8x32xf32>
    %776 = arith.divf %774, %775 : vector<8x32xf32>
    %777 = vector.extract_strided_slice %766 {offsets = [0, 32], sizes = [8, 32], strides = [1, 1]} : vector<8x128xf32> to vector<8x32xf32>
    %778 = vector.extract_strided_slice %767 {offsets = [0, 32], sizes = [8, 32], strides = [1, 1]} : vector<8x128xf32> to vector<8x32xf32>
    %779 = arith.addf %777, %778 : vector<8x32xf32>
    %780 = arith.negf %779 : vector<8x32xf32>
    %781 = math.exp %780 : vector<8x32xf32>
    %cst_204 = arith.constant 1.000000e+00 : f32
    %782 = vector.broadcast %cst_204 : f32 to vector<8x32xf32>
    %783 = arith.addf %782, %781 : vector<8x32xf32>
    %784 = arith.divf %782, %783 : vector<8x32xf32>
    %785 = vector.extract_strided_slice %766 {offsets = [0, 64], sizes = [8, 32], strides = [1, 1]} : vector<8x128xf32> to vector<8x32xf32>
    %786 = vector.extract_strided_slice %767 {offsets = [0, 64], sizes = [8, 32], strides = [1, 1]} : vector<8x128xf32> to vector<8x32xf32>
    %787 = arith.mulf %776, %786 : vector<8x32xf32>
    %788 = arith.addf %785, %787 : vector<8x32xf32>
    %789 = math.tanh %788 : vector<8x32xf32>
    %cst_205 = arith.constant 1.000000e+00 : f32
    %790 = vector.broadcast %cst_205 : f32 to vector<8x32xf32>
    %791 = arith.subf %790, %784 : vector<8x32xf32>
    %792 = arith.mulf %791, %789 : vector<8x32xf32>
    %793 = arith.mulf %784, %768 : vector<8x32xf32>
    %794 = arith.addf %792, %793 : vector<8x32xf32>
    %795 = arith.index_cast %c1_i32_193 : i32 to index
    %c0_206 = arith.constant 0 : index
    %c0_207 = arith.constant 0 : index
    %796 = vector.load %arg14[%795, %c0_206, %c0_207] : memref<8x8x32xf32, #tpu.memory_space<vmem>>, vector<1x8x32xf32>
    %797 = vector.shape_cast %796 : vector<1x8x32xf32> to vector<8x32xf32>
    %798 = vector.shape_cast %762 : vector<8x32xf32> to vector<1x8x32xf32>
    tpu.vector_store %arg14[%795, %c0_206, %c0_207], %798 {strides = array<i32>} : memref<8x8x32xf32, #tpu.memory_space<vmem>>, vector<1x8x32xf32>,
    %c7_i32_208 = arith.constant 7 : i32
    %799 = arith.subi %c7_i32_208, %c1_i32_193 : i32
    %800 = arith.index_cast %799 : i32 to index
    %c0_209 = arith.constant 0 : index
    %c0_210 = arith.constant 0 : index
    %801 = vector.load %arg15[%800, %c0_209, %c0_210] : memref<8x8x32xf32, #tpu.memory_space<vmem>>, vector<1x8x32xf32>
    %802 = vector.shape_cast %801 : vector<1x8x32xf32> to vector<8x32xf32>
    %803 = vector.shape_cast %794 : vector<8x32xf32> to vector<1x8x32xf32>
    tpu.vector_store %arg15[%800, %c0_209, %c0_210], %803 {strides = array<i32>} : memref<8x8x32xf32, #tpu.memory_space<vmem>>, vector<1x8x32xf32>,
    %804 = tpu.concatenate %762, %794, %0 in 1 : vector<8x32xf32>, vector<8x32xf32>, vector<8x64xf32> -> vector<8x128xf32>
    %c2_i32_211 = arith.constant 2 : i32
    %805 = arith.truncf %804 : vector<8x128xf32> to vector<8x128xbf16>
    %cst_212 = arith.constant dense<0.000000e+00> : vector<8x256xf32>
    %806 = tpu.matmul %805, %649, %cst_212 {dimension_numbers = #tpu.dot_dimension_numbers<[1], [0], [0], [1], [0, 0, 1, 1], [], []>} : vector<8x128xbf16>, vector<128x256xbf16>, vector<8x256xf32> -> vector<8x256xf32>
    %807 = vector.broadcast %650 : vector<1x256xf32> to vector<8x256xf32>
    %808 = arith.addf %806, %807 : vector<8x256xf32>
    %809 = arith.index_cast %c2_i32_211 : i32 to index
    %c0_213 = arith.constant 0 : index
    %c0_214 = arith.constant 0 : index
    %810 = vector.load %arg12[%809, %c0_213, %c0_214] : memref<8x8x128xf32, #tpu.memory_space<vmem>>, vector<1x8x128xf32>
    %811 = vector.shape_cast %810 : vector<1x8x128xf32> to vector<8x128xf32>
    %812 = vector.extract_strided_slice %808 {offsets = [0, 0], sizes = [8, 128], strides = [1, 1]} : vector<8x256xf32> to vector<8x128xf32>
    %813 = vector.extract_strided_slice %804 {offsets = [0, 0], sizes = [8, 32], strides = [1, 1]} : vector<8x128xf32> to vector<8x32xf32>
    %814 = vector.extract_strided_slice %811 {offsets = [0, 0], sizes = [8, 32], strides = [1, 1]} : vector<8x128xf32> to vector<8x32xf32>
    %815 = vector.extract_strided_slice %812 {offsets = [0, 0], sizes = [8, 32], strides = [1, 1]} : vector<8x128xf32> to vector<8x32xf32>
    %816 = arith.addf %814, %815 : vector<8x32xf32>
    %817 = arith.negf %816 : vector<8x32xf32>
    %818 = math.exp %817 : vector<8x32xf32>
    %cst_215 = arith.constant 1.000000e+00 : f32
    %819 = vector.broadcast %cst_215 : f32 to vector<8x32xf32>
    %820 = arith.addf %819, %818 : vector<8x32xf32>
    %821 = arith.divf %819, %820 : vector<8x32xf32>
    %822 = vector.extract_strided_slice %811 {offsets = [0, 32], sizes = [8, 32], strides = [1, 1]} : vector<8x128xf32> to vector<8x32xf32>
    %823 = vector.extract_strided_slice %812 {offsets = [0, 32], sizes = [8, 32], strides = [1, 1]} : vector<8x128xf32> to vector<8x32xf32>
    %824 = arith.addf %822, %823 : vector<8x32xf32>
    %825 = arith.negf %824 : vector<8x32xf32>
    %826 = math.exp %825 : vector<8x32xf32>
    %cst_216 = arith.constant 1.000000e+00 : f32
    %827 = vector.broadcast %cst_216 : f32 to vector<8x32xf32>
    %828 = arith.addf %827, %826 : vector<8x32xf32>
    %829 = arith.divf %827, %828 : vector<8x32xf32>
    %830 = vector.extract_strided_slice %811 {offsets = [0, 64], sizes = [8, 32], strides = [1, 1]} : vector<8x128xf32> to vector<8x32xf32>
    %831 = vector.extract_strided_slice %812 {offsets = [0, 64], sizes = [8, 32], strides = [1, 1]} : vector<8x128xf32> to vector<8x32xf32>
    %832 = arith.mulf %821, %831 : vector<8x32xf32>
    %833 = arith.addf %830, %832 : vector<8x32xf32>
    %834 = math.tanh %833 : vector<8x32xf32>
    %cst_217 = arith.constant 1.000000e+00 : f32
    %835 = vector.broadcast %cst_217 : f32 to vector<8x32xf32>
    %836 = arith.subf %835, %829 : vector<8x32xf32>
    %837 = arith.mulf %836, %834 : vector<8x32xf32>
    %838 = arith.mulf %829, %813 : vector<8x32xf32>
    %839 = arith.addf %837, %838 : vector<8x32xf32>
    %c7_i32_218 = arith.constant 7 : i32
    %840 = arith.subi %c7_i32_218, %c2_i32_211 : i32
    %841 = arith.index_cast %840 : i32 to index
    %c0_219 = arith.constant 0 : index
    %c0_220 = arith.constant 0 : index
    %842 = vector.load %arg13[%841, %c0_219, %c0_220] : memref<8x8x128xf32, #tpu.memory_space<vmem>>, vector<1x8x128xf32>
    %843 = vector.shape_cast %842 : vector<1x8x128xf32> to vector<8x128xf32>
    %844 = vector.extract_strided_slice %808 {offsets = [0, 128], sizes = [8, 128], strides = [1, 1]} : vector<8x256xf32> to vector<8x128xf32>
    %845 = vector.extract_strided_slice %804 {offsets = [0, 32], sizes = [8, 32], strides = [1, 1]} : vector<8x128xf32> to vector<8x32xf32>
    %846 = vector.extract_strided_slice %843 {offsets = [0, 0], sizes = [8, 32], strides = [1, 1]} : vector<8x128xf32> to vector<8x32xf32>
    %847 = vector.extract_strided_slice %844 {offsets = [0, 0], sizes = [8, 32], strides = [1, 1]} : vector<8x128xf32> to vector<8x32xf32>
    %848 = arith.addf %846, %847 : vector<8x32xf32>
    %849 = arith.negf %848 : vector<8x32xf32>
    %850 = math.exp %849 : vector<8x32xf32>
    %cst_221 = arith.constant 1.000000e+00 : f32
    %851 = vector.broadcast %cst_221 : f32 to vector<8x32xf32>
    %852 = arith.addf %851, %850 : vector<8x32xf32>
    %853 = arith.divf %851, %852 : vector<8x32xf32>
    %854 = vector.extract_strided_slice %843 {offsets = [0, 32], sizes = [8, 32], strides = [1, 1]} : vector<8x128xf32> to vector<8x32xf32>
    %855 = vector.extract_strided_slice %844 {offsets = [0, 32], sizes = [8, 32], strides = [1, 1]} : vector<8x128xf32> to vector<8x32xf32>
    %856 = arith.addf %854, %855 : vector<8x32xf32>
    %857 = arith.negf %856 : vector<8x32xf32>
    %858 = math.exp %857 : vector<8x32xf32>
    %cst_222 = arith.constant 1.000000e+00 : f32
    %859 = vector.broadcast %cst_222 : f32 to vector<8x32xf32>
    %860 = arith.addf %859, %858 : vector<8x32xf32>
    %861 = arith.divf %859, %860 : vector<8x32xf32>
    %862 = vector.extract_strided_slice %843 {offsets = [0, 64], sizes = [8, 32], strides = [1, 1]} : vector<8x128xf32> to vector<8x32xf32>
    %863 = vector.extract_strided_slice %844 {offsets = [0, 64], sizes = [8, 32], strides = [1, 1]} : vector<8x128xf32> to vector<8x32xf32>
    %864 = arith.mulf %853, %863 : vector<8x32xf32>
    %865 = arith.addf %862, %864 : vector<8x32xf32>
    %866 = math.tanh %865 : vector<8x32xf32>
    %cst_223 = arith.constant 1.000000e+00 : f32
    %867 = vector.broadcast %cst_223 : f32 to vector<8x32xf32>
    %868 = arith.subf %867, %861 : vector<8x32xf32>
    %869 = arith.mulf %868, %866 : vector<8x32xf32>
    %870 = arith.mulf %861, %845 : vector<8x32xf32>
    %871 = arith.addf %869, %870 : vector<8x32xf32>
    %872 = arith.index_cast %c2_i32_211 : i32 to index
    %c0_224 = arith.constant 0 : index
    %c0_225 = arith.constant 0 : index
    %873 = vector.load %arg14[%872, %c0_224, %c0_225] : memref<8x8x32xf32, #tpu.memory_space<vmem>>, vector<1x8x32xf32>
    %874 = vector.shape_cast %873 : vector<1x8x32xf32> to vector<8x32xf32>
    %875 = vector.shape_cast %839 : vector<8x32xf32> to vector<1x8x32xf32>
    tpu.vector_store %arg14[%872, %c0_224, %c0_225], %875 {strides = array<i32>} : memref<8x8x32xf32, #tpu.memory_space<vmem>>, vector<1x8x32xf32>,
    %c7_i32_226 = arith.constant 7 : i32
    %876 = arith.subi %c7_i32_226, %c2_i32_211 : i32
    %877 = arith.index_cast %876 : i32 to index
    %c0_227 = arith.constant 0 : index
    %c0_228 = arith.constant 0 : index
    %878 = vector.load %arg15[%877, %c0_227, %c0_228] : memref<8x8x32xf32, #tpu.memory_space<vmem>>, vector<1x8x32xf32>
    %879 = vector.shape_cast %878 : vector<1x8x32xf32> to vector<8x32xf32>
    %880 = vector.shape_cast %871 : vector<8x32xf32> to vector<1x8x32xf32>
    tpu.vector_store %arg15[%877, %c0_227, %c0_228], %880 {strides = array<i32>} : memref<8x8x32xf32, #tpu.memory_space<vmem>>, vector<1x8x32xf32>,
    %881 = tpu.concatenate %839, %871, %0 in 1 : vector<8x32xf32>, vector<8x32xf32>, vector<8x64xf32> -> vector<8x128xf32>
    %c3_i32_229 = arith.constant 3 : i32
    %882 = arith.truncf %881 : vector<8x128xf32> to vector<8x128xbf16>
    %cst_230 = arith.constant dense<0.000000e+00> : vector<8x256xf32>
    %883 = tpu.matmul %882, %649, %cst_230 {dimension_numbers = #tpu.dot_dimension_numbers<[1], [0], [0], [1], [0, 0, 1, 1], [], []>} : vector<8x128xbf16>, vector<128x256xbf16>, vector<8x256xf32> -> vector<8x256xf32>
    %884 = vector.broadcast %650 : vector<1x256xf32> to vector<8x256xf32>
    %885 = arith.addf %883, %884 : vector<8x256xf32>
    %886 = arith.index_cast %c3_i32_229 : i32 to index
    %c0_231 = arith.constant 0 : index
    %c0_232 = arith.constant 0 : index
    %887 = vector.load %arg12[%886, %c0_231, %c0_232] : memref<8x8x128xf32, #tpu.memory_space<vmem>>, vector<1x8x128xf32>
    %888 = vector.shape_cast %887 : vector<1x8x128xf32> to vector<8x128xf32>
    %889 = vector.extract_strided_slice %885 {offsets = [0, 0], sizes = [8, 128], strides = [1, 1]} : vector<8x256xf32> to vector<8x128xf32>
    %890 = vector.extract_strided_slice %881 {offsets = [0, 0], sizes = [8, 32], strides = [1, 1]} : vector<8x128xf32> to vector<8x32xf32>
    %891 = vector.extract_strided_slice %888 {offsets = [0, 0], sizes = [8, 32], strides = [1, 1]} : vector<8x128xf32> to vector<8x32xf32>
    %892 = vector.extract_strided_slice %889 {offsets = [0, 0], sizes = [8, 32], strides = [1, 1]} : vector<8x128xf32> to vector<8x32xf32>
    %893 = arith.addf %891, %892 : vector<8x32xf32>
    %894 = arith.negf %893 : vector<8x32xf32>
    %895 = math.exp %894 : vector<8x32xf32>
    %cst_233 = arith.constant 1.000000e+00 : f32
    %896 = vector.broadcast %cst_233 : f32 to vector<8x32xf32>
    %897 = arith.addf %896, %895 : vector<8x32xf32>
    %898 = arith.divf %896, %897 : vector<8x32xf32>
    %899 = vector.extract_strided_slice %888 {offsets = [0, 32], sizes = [8, 32], strides = [1, 1]} : vector<8x128xf32> to vector<8x32xf32>
    %900 = vector.extract_strided_slice %889 {offsets = [0, 32], sizes = [8, 32], strides = [1, 1]} : vector<8x128xf32> to vector<8x32xf32>
    %901 = arith.addf %899, %900 : vector<8x32xf32>
    %902 = arith.negf %901 : vector<8x32xf32>
    %903 = math.exp %902 : vector<8x32xf32>
    %cst_234 = arith.constant 1.000000e+00 : f32
    %904 = vector.broadcast %cst_234 : f32 to vector<8x32xf32>
    %905 = arith.addf %904, %903 : vector<8x32xf32>
    %906 = arith.divf %904, %905 : vector<8x32xf32>
    %907 = vector.extract_strided_slice %888 {offsets = [0, 64], sizes = [8, 32], strides = [1, 1]} : vector<8x128xf32> to vector<8x32xf32>
    %908 = vector.extract_strided_slice %889 {offsets = [0, 64], sizes = [8, 32], strides = [1, 1]} : vector<8x128xf32> to vector<8x32xf32>
    %909 = arith.mulf %898, %908 : vector<8x32xf32>
    %910 = arith.addf %907, %909 : vector<8x32xf32>
    %911 = math.tanh %910 : vector<8x32xf32>
    %cst_235 = arith.constant 1.000000e+00 : f32
    %912 = vector.broadcast %cst_235 : f32 to vector<8x32xf32>
    %913 = arith.subf %912, %906 : vector<8x32xf32>
    %914 = arith.mulf %913, %911 : vector<8x32xf32>
    %915 = arith.mulf %906, %890 : vector<8x32xf32>
    %916 = arith.addf %914, %915 : vector<8x32xf32>
    %c7_i32_236 = arith.constant 7 : i32
    %917 = arith.subi %c7_i32_236, %c3_i32_229 : i32
    %918 = arith.index_cast %917 : i32 to index
    %c0_237 = arith.constant 0 : index
    %c0_238 = arith.constant 0 : index
    %919 = vector.load %arg13[%918, %c0_237, %c0_238] : memref<8x8x128xf32, #tpu.memory_space<vmem>>, vector<1x8x128xf32>
    %920 = vector.shape_cast %919 : vector<1x8x128xf32> to vector<8x128xf32>
    %921 = vector.extract_strided_slice %885 {offsets = [0, 128], sizes = [8, 128], strides = [1, 1]} : vector<8x256xf32> to vector<8x128xf32>
    %922 = vector.extract_strided_slice %881 {offsets = [0, 32], sizes = [8, 32], strides = [1, 1]} : vector<8x128xf32> to vector<8x32xf32>
    %923 = vector.extract_strided_slice %920 {offsets = [0, 0], sizes = [8, 32], strides = [1, 1]} : vector<8x128xf32> to vector<8x32xf32>
    %924 = vector.extract_strided_slice %921 {offsets = [0, 0], sizes = [8, 32], strides = [1, 1]} : vector<8x128xf32> to vector<8x32xf32>
    %925 = arith.addf %923, %924 : vector<8x32xf32>
    %926 = arith.negf %925 : vector<8x32xf32>
    %927 = math.exp %926 : vector<8x32xf32>
    %cst_239 = arith.constant 1.000000e+00 : f32
    %928 = vector.broadcast %cst_239 : f32 to vector<8x32xf32>
    %929 = arith.addf %928, %927 : vector<8x32xf32>
    %930 = arith.divf %928, %929 : vector<8x32xf32>
    %931 = vector.extract_strided_slice %920 {offsets = [0, 32], sizes = [8, 32], strides = [1, 1]} : vector<8x128xf32> to vector<8x32xf32>
    %932 = vector.extract_strided_slice %921 {offsets = [0, 32], sizes = [8, 32], strides = [1, 1]} : vector<8x128xf32> to vector<8x32xf32>
    %933 = arith.addf %931, %932 : vector<8x32xf32>
    %934 = arith.negf %933 : vector<8x32xf32>
    %935 = math.exp %934 : vector<8x32xf32>
    %cst_240 = arith.constant 1.000000e+00 : f32
    %936 = vector.broadcast %cst_240 : f32 to vector<8x32xf32>
    %937 = arith.addf %936, %935 : vector<8x32xf32>
    %938 = arith.divf %936, %937 : vector<8x32xf32>
    %939 = vector.extract_strided_slice %920 {offsets = [0, 64], sizes = [8, 32], strides = [1, 1]} : vector<8x128xf32> to vector<8x32xf32>
    %940 = vector.extract_strided_slice %921 {offsets = [0, 64], sizes = [8, 32], strides = [1, 1]} : vector<8x128xf32> to vector<8x32xf32>
    %941 = arith.mulf %930, %940 : vector<8x32xf32>
    %942 = arith.addf %939, %941 : vector<8x32xf32>
    %943 = math.tanh %942 : vector<8x32xf32>
    %cst_241 = arith.constant 1.000000e+00 : f32
    %944 = vector.broadcast %cst_241 : f32 to vector<8x32xf32>
    %945 = arith.subf %944, %938 : vector<8x32xf32>
    %946 = arith.mulf %945, %943 : vector<8x32xf32>
    %947 = arith.mulf %938, %922 : vector<8x32xf32>
    %948 = arith.addf %946, %947 : vector<8x32xf32>
    %949 = arith.index_cast %c3_i32_229 : i32 to index
    %c0_242 = arith.constant 0 : index
    %c0_243 = arith.constant 0 : index
    %950 = vector.load %arg14[%949, %c0_242, %c0_243] : memref<8x8x32xf32, #tpu.memory_space<vmem>>, vector<1x8x32xf32>
    %951 = vector.shape_cast %950 : vector<1x8x32xf32> to vector<8x32xf32>
    %952 = vector.shape_cast %916 : vector<8x32xf32> to vector<1x8x32xf32>
    tpu.vector_store %arg14[%949, %c0_242, %c0_243], %952 {strides = array<i32>} : memref<8x8x32xf32, #tpu.memory_space<vmem>>, vector<1x8x32xf32>,
    %c7_i32_244 = arith.constant 7 : i32
    %953 = arith.subi %c7_i32_244, %c3_i32_229 : i32
    %954 = arith.index_cast %953 : i32 to index
    %c0_245 = arith.constant 0 : index
    %c0_246 = arith.constant 0 : index
    %955 = vector.load %arg15[%954, %c0_245, %c0_246] : memref<8x8x32xf32, #tpu.memory_space<vmem>>, vector<1x8x32xf32>
    %956 = vector.shape_cast %955 : vector<1x8x32xf32> to vector<8x32xf32>
    %957 = vector.shape_cast %948 : vector<8x32xf32> to vector<1x8x32xf32>
    tpu.vector_store %arg15[%954, %c0_245, %c0_246], %957 {strides = array<i32>} : memref<8x8x32xf32, #tpu.memory_space<vmem>>, vector<1x8x32xf32>,
    %958 = tpu.concatenate %916, %948, %0 in 1 : vector<8x32xf32>, vector<8x32xf32>, vector<8x64xf32> -> vector<8x128xf32>
    %c4_i32_247 = arith.constant 4 : i32
    %959 = arith.truncf %958 : vector<8x128xf32> to vector<8x128xbf16>
    %cst_248 = arith.constant dense<0.000000e+00> : vector<8x256xf32>
    %960 = tpu.matmul %959, %649, %cst_248 {dimension_numbers = #tpu.dot_dimension_numbers<[1], [0], [0], [1], [0, 0, 1, 1], [], []>} : vector<8x128xbf16>, vector<128x256xbf16>, vector<8x256xf32> -> vector<8x256xf32>
    %961 = vector.broadcast %650 : vector<1x256xf32> to vector<8x256xf32>
    %962 = arith.addf %960, %961 : vector<8x256xf32>
    %963 = arith.index_cast %c4_i32_247 : i32 to index
    %c0_249 = arith.constant 0 : index
    %c0_250 = arith.constant 0 : index
    %964 = vector.load %arg12[%963, %c0_249, %c0_250] : memref<8x8x128xf32, #tpu.memory_space<vmem>>, vector<1x8x128xf32>
    %965 = vector.shape_cast %964 : vector<1x8x128xf32> to vector<8x128xf32>
    %966 = vector.extract_strided_slice %962 {offsets = [0, 0], sizes = [8, 128], strides = [1, 1]} : vector<8x256xf32> to vector<8x128xf32>
    %967 = vector.extract_strided_slice %958 {offsets = [0, 0], sizes = [8, 32], strides = [1, 1]} : vector<8x128xf32> to vector<8x32xf32>
    %968 = vector.extract_strided_slice %965 {offsets = [0, 0], sizes = [8, 32], strides = [1, 1]} : vector<8x128xf32> to vector<8x32xf32>
    %969 = vector.extract_strided_slice %966 {offsets = [0, 0], sizes = [8, 32], strides = [1, 1]} : vector<8x128xf32> to vector<8x32xf32>
    %970 = arith.addf %968, %969 : vector<8x32xf32>
    %971 = arith.negf %970 : vector<8x32xf32>
    %972 = math.exp %971 : vector<8x32xf32>
    %cst_251 = arith.constant 1.000000e+00 : f32
    %973 = vector.broadcast %cst_251 : f32 to vector<8x32xf32>
    %974 = arith.addf %973, %972 : vector<8x32xf32>
    %975 = arith.divf %973, %974 : vector<8x32xf32>
    %976 = vector.extract_strided_slice %965 {offsets = [0, 32], sizes = [8, 32], strides = [1, 1]} : vector<8x128xf32> to vector<8x32xf32>
    %977 = vector.extract_strided_slice %966 {offsets = [0, 32], sizes = [8, 32], strides = [1, 1]} : vector<8x128xf32> to vector<8x32xf32>
    %978 = arith.addf %976, %977 : vector<8x32xf32>
    %979 = arith.negf %978 : vector<8x32xf32>
    %980 = math.exp %979 : vector<8x32xf32>
    %cst_252 = arith.constant 1.000000e+00 : f32
    %981 = vector.broadcast %cst_252 : f32 to vector<8x32xf32>
    %982 = arith.addf %981, %980 : vector<8x32xf32>
    %983 = arith.divf %981, %982 : vector<8x32xf32>
    %984 = vector.extract_strided_slice %965 {offsets = [0, 64], sizes = [8, 32], strides = [1, 1]} : vector<8x128xf32> to vector<8x32xf32>
    %985 = vector.extract_strided_slice %966 {offsets = [0, 64], sizes = [8, 32], strides = [1, 1]} : vector<8x128xf32> to vector<8x32xf32>
    %986 = arith.mulf %975, %985 : vector<8x32xf32>
    %987 = arith.addf %984, %986 : vector<8x32xf32>
    %988 = math.tanh %987 : vector<8x32xf32>
    %cst_253 = arith.constant 1.000000e+00 : f32
    %989 = vector.broadcast %cst_253 : f32 to vector<8x32xf32>
    %990 = arith.subf %989, %983 : vector<8x32xf32>
    %991 = arith.mulf %990, %988 : vector<8x32xf32>
    %992 = arith.mulf %983, %967 : vector<8x32xf32>
    %993 = arith.addf %991, %992 : vector<8x32xf32>
    %c7_i32_254 = arith.constant 7 : i32
    %994 = arith.subi %c7_i32_254, %c4_i32_247 : i32
    %995 = arith.index_cast %994 : i32 to index
    %c0_255 = arith.constant 0 : index
    %c0_256 = arith.constant 0 : index
    %996 = vector.load %arg13[%995, %c0_255, %c0_256] : memref<8x8x128xf32, #tpu.memory_space<vmem>>, vector<1x8x128xf32>
    %997 = vector.shape_cast %996 : vector<1x8x128xf32> to vector<8x128xf32>
    %998 = vector.extract_strided_slice %962 {offsets = [0, 128], sizes = [8, 128], strides = [1, 1]} : vector<8x256xf32> to vector<8x128xf32>
    %999 = vector.extract_strided_slice %958 {offsets = [0, 32], sizes = [8, 32], strides = [1, 1]} : vector<8x128xf32> to vector<8x32xf32>
    %1000 = vector.extract_strided_slice %997 {offsets = [0, 0], sizes = [8, 32], strides = [1, 1]} : vector<8x128xf32> to vector<8x32xf32>
    %1001 = vector.extract_strided_slice %998 {offsets = [0, 0], sizes = [8, 32], strides = [1, 1]} : vector<8x128xf32> to vector<8x32xf32>
    %1002 = arith.addf %1000, %1001 : vector<8x32xf32>
    %1003 = arith.negf %1002 : vector<8x32xf32>
    %1004 = math.exp %1003 : vector<8x32xf32>
    %cst_257 = arith.constant 1.000000e+00 : f32
    %1005 = vector.broadcast %cst_257 : f32 to vector<8x32xf32>
    %1006 = arith.addf %1005, %1004 : vector<8x32xf32>
    %1007 = arith.divf %1005, %1006 : vector<8x32xf32>
    %1008 = vector.extract_strided_slice %997 {offsets = [0, 32], sizes = [8, 32], strides = [1, 1]} : vector<8x128xf32> to vector<8x32xf32>
    %1009 = vector.extract_strided_slice %998 {offsets = [0, 32], sizes = [8, 32], strides = [1, 1]} : vector<8x128xf32> to vector<8x32xf32>
    %1010 = arith.addf %1008, %1009 : vector<8x32xf32>
    %1011 = arith.negf %1010 : vector<8x32xf32>
    %1012 = math.exp %1011 : vector<8x32xf32>
    %cst_258 = arith.constant 1.000000e+00 : f32
    %1013 = vector.broadcast %cst_258 : f32 to vector<8x32xf32>
    %1014 = arith.addf %1013, %1012 : vector<8x32xf32>
    %1015 = arith.divf %1013, %1014 : vector<8x32xf32>
    %1016 = vector.extract_strided_slice %997 {offsets = [0, 64], sizes = [8, 32], strides = [1, 1]} : vector<8x128xf32> to vector<8x32xf32>
    %1017 = vector.extract_strided_slice %998 {offsets = [0, 64], sizes = [8, 32], strides = [1, 1]} : vector<8x128xf32> to vector<8x32xf32>
    %1018 = arith.mulf %1007, %1017 : vector<8x32xf32>
    %1019 = arith.addf %1016, %1018 : vector<8x32xf32>
    %1020 = math.tanh %1019 : vector<8x32xf32>
    %cst_259 = arith.constant 1.000000e+00 : f32
    %1021 = vector.broadcast %cst_259 : f32 to vector<8x32xf32>
    %1022 = arith.subf %1021, %1015 : vector<8x32xf32>
    %1023 = arith.mulf %1022, %1020 : vector<8x32xf32>
    %1024 = arith.mulf %1015, %999 : vector<8x32xf32>
    %1025 = arith.addf %1023, %1024 : vector<8x32xf32>
    %1026 = arith.index_cast %c4_i32_247 : i32 to index
    %c0_260 = arith.constant 0 : index
    %c0_261 = arith.constant 0 : index
    %1027 = vector.load %arg14[%1026, %c0_260, %c0_261] : memref<8x8x32xf32, #tpu.memory_space<vmem>>, vector<1x8x32xf32>
    %1028 = vector.shape_cast %1027 : vector<1x8x32xf32> to vector<8x32xf32>
    %1029 = vector.shape_cast %993 : vector<8x32xf32> to vector<1x8x32xf32>
    tpu.vector_store %arg14[%1026, %c0_260, %c0_261], %1029 {strides = array<i32>} : memref<8x8x32xf32, #tpu.memory_space<vmem>>, vector<1x8x32xf32>,
    %c7_i32_262 = arith.constant 7 : i32
    %1030 = arith.subi %c7_i32_262, %c4_i32_247 : i32
    %1031 = arith.index_cast %1030 : i32 to index
    %c0_263 = arith.constant 0 : index
    %c0_264 = arith.constant 0 : index
    %1032 = vector.load %arg15[%1031, %c0_263, %c0_264] : memref<8x8x32xf32, #tpu.memory_space<vmem>>, vector<1x8x32xf32>
    %1033 = vector.shape_cast %1032 : vector<1x8x32xf32> to vector<8x32xf32>
    %1034 = vector.shape_cast %1025 : vector<8x32xf32> to vector<1x8x32xf32>
    tpu.vector_store %arg15[%1031, %c0_263, %c0_264], %1034 {strides = array<i32>} : memref<8x8x32xf32, #tpu.memory_space<vmem>>, vector<1x8x32xf32>,
    %1035 = tpu.concatenate %993, %1025, %0 in 1 : vector<8x32xf32>, vector<8x32xf32>, vector<8x64xf32> -> vector<8x128xf32>
    %c5_i32_265 = arith.constant 5 : i32
    %1036 = arith.truncf %1035 : vector<8x128xf32> to vector<8x128xbf16>
    %cst_266 = arith.constant dense<0.000000e+00> : vector<8x256xf32>
    %1037 = tpu.matmul %1036, %649, %cst_266 {dimension_numbers = #tpu.dot_dimension_numbers<[1], [0], [0], [1], [0, 0, 1, 1], [], []>} : vector<8x128xbf16>, vector<128x256xbf16>, vector<8x256xf32> -> vector<8x256xf32>
    %1038 = vector.broadcast %650 : vector<1x256xf32> to vector<8x256xf32>
    %1039 = arith.addf %1037, %1038 : vector<8x256xf32>
    %1040 = arith.index_cast %c5_i32_265 : i32 to index
    %c0_267 = arith.constant 0 : index
    %c0_268 = arith.constant 0 : index
    %1041 = vector.load %arg12[%1040, %c0_267, %c0_268] : memref<8x8x128xf32, #tpu.memory_space<vmem>>, vector<1x8x128xf32>
    %1042 = vector.shape_cast %1041 : vector<1x8x128xf32> to vector<8x128xf32>
    %1043 = vector.extract_strided_slice %1039 {offsets = [0, 0], sizes = [8, 128], strides = [1, 1]} : vector<8x256xf32> to vector<8x128xf32>
    %1044 = vector.extract_strided_slice %1035 {offsets = [0, 0], sizes = [8, 32], strides = [1, 1]} : vector<8x128xf32> to vector<8x32xf32>
    %1045 = vector.extract_strided_slice %1042 {offsets = [0, 0], sizes = [8, 32], strides = [1, 1]} : vector<8x128xf32> to vector<8x32xf32>
    %1046 = vector.extract_strided_slice %1043 {offsets = [0, 0], sizes = [8, 32], strides = [1, 1]} : vector<8x128xf32> to vector<8x32xf32>
    %1047 = arith.addf %1045, %1046 : vector<8x32xf32>
    %1048 = arith.negf %1047 : vector<8x32xf32>
    %1049 = math.exp %1048 : vector<8x32xf32>
    %cst_269 = arith.constant 1.000000e+00 : f32
    %1050 = vector.broadcast %cst_269 : f32 to vector<8x32xf32>
    %1051 = arith.addf %1050, %1049 : vector<8x32xf32>
    %1052 = arith.divf %1050, %1051 : vector<8x32xf32>
    %1053 = vector.extract_strided_slice %1042 {offsets = [0, 32], sizes = [8, 32], strides = [1, 1]} : vector<8x128xf32> to vector<8x32xf32>
    %1054 = vector.extract_strided_slice %1043 {offsets = [0, 32], sizes = [8, 32], strides = [1, 1]} : vector<8x128xf32> to vector<8x32xf32>
    %1055 = arith.addf %1053, %1054 : vector<8x32xf32>
    %1056 = arith.negf %1055 : vector<8x32xf32>
    %1057 = math.exp %1056 : vector<8x32xf32>
    %cst_270 = arith.constant 1.000000e+00 : f32
    %1058 = vector.broadcast %cst_270 : f32 to vector<8x32xf32>
    %1059 = arith.addf %1058, %1057 : vector<8x32xf32>
    %1060 = arith.divf %1058, %1059 : vector<8x32xf32>
    %1061 = vector.extract_strided_slice %1042 {offsets = [0, 64], sizes = [8, 32], strides = [1, 1]} : vector<8x128xf32> to vector<8x32xf32>
    %1062 = vector.extract_strided_slice %1043 {offsets = [0, 64], sizes = [8, 32], strides = [1, 1]} : vector<8x128xf32> to vector<8x32xf32>
    %1063 = arith.mulf %1052, %1062 : vector<8x32xf32>
    %1064 = arith.addf %1061, %1063 : vector<8x32xf32>
    %1065 = math.tanh %1064 : vector<8x32xf32>
    %cst_271 = arith.constant 1.000000e+00 : f32
    %1066 = vector.broadcast %cst_271 : f32 to vector<8x32xf32>
    %1067 = arith.subf %1066, %1060 : vector<8x32xf32>
    %1068 = arith.mulf %1067, %1065 : vector<8x32xf32>
    %1069 = arith.mulf %1060, %1044 : vector<8x32xf32>
    %1070 = arith.addf %1068, %1069 : vector<8x32xf32>
    %c7_i32_272 = arith.constant 7 : i32
    %1071 = arith.subi %c7_i32_272, %c5_i32_265 : i32
    %1072 = arith.index_cast %1071 : i32 to index
    %c0_273 = arith.constant 0 : index
    %c0_274 = arith.constant 0 : index
    %1073 = vector.load %arg13[%1072, %c0_273, %c0_274] : memref<8x8x128xf32, #tpu.memory_space<vmem>>, vector<1x8x128xf32>
    %1074 = vector.shape_cast %1073 : vector<1x8x128xf32> to vector<8x128xf32>
    %1075 = vector.extract_strided_slice %1039 {offsets = [0, 128], sizes = [8, 128], strides = [1, 1]} : vector<8x256xf32> to vector<8x128xf32>
    %1076 = vector.extract_strided_slice %1035 {offsets = [0, 32], sizes = [8, 32], strides = [1, 1]} : vector<8x128xf32> to vector<8x32xf32>
    %1077 = vector.extract_strided_slice %1074 {offsets = [0, 0], sizes = [8, 32], strides = [1, 1]} : vector<8x128xf32> to vector<8x32xf32>
    %1078 = vector.extract_strided_slice %1075 {offsets = [0, 0], sizes = [8, 32], strides = [1, 1]} : vector<8x128xf32> to vector<8x32xf32>
    %1079 = arith.addf %1077, %1078 : vector<8x32xf32>
    %1080 = arith.negf %1079 : vector<8x32xf32>
    %1081 = math.exp %1080 : vector<8x32xf32>
    %cst_275 = arith.constant 1.000000e+00 : f32
    %1082 = vector.broadcast %cst_275 : f32 to vector<8x32xf32>
    %1083 = arith.addf %1082, %1081 : vector<8x32xf32>
    %1084 = arith.divf %1082, %1083 : vector<8x32xf32>
    %1085 = vector.extract_strided_slice %1074 {offsets = [0, 32], sizes = [8, 32], strides = [1, 1]} : vector<8x128xf32> to vector<8x32xf32>
    %1086 = vector.extract_strided_slice %1075 {offsets = [0, 32], sizes = [8, 32], strides = [1, 1]} : vector<8x128xf32> to vector<8x32xf32>
    %1087 = arith.addf %1085, %1086 : vector<8x32xf32>
    %1088 = arith.negf %1087 : vector<8x32xf32>
    %1089 = math.exp %1088 : vector<8x32xf32>
    %cst_276 = arith.constant 1.000000e+00 : f32
    %1090 = vector.broadcast %cst_276 : f32 to vector<8x32xf32>
    %1091 = arith.addf %1090, %1089 : vector<8x32xf32>
    %1092 = arith.divf %1090, %1091 : vector<8x32xf32>
    %1093 = vector.extract_strided_slice %1074 {offsets = [0, 64], sizes = [8, 32], strides = [1, 1]} : vector<8x128xf32> to vector<8x32xf32>
    %1094 = vector.extract_strided_slice %1075 {offsets = [0, 64], sizes = [8, 32], strides = [1, 1]} : vector<8x128xf32> to vector<8x32xf32>
    %1095 = arith.mulf %1084, %1094 : vector<8x32xf32>
    %1096 = arith.addf %1093, %1095 : vector<8x32xf32>
    %1097 = math.tanh %1096 : vector<8x32xf32>
    %cst_277 = arith.constant 1.000000e+00 : f32
    %1098 = vector.broadcast %cst_277 : f32 to vector<8x32xf32>
    %1099 = arith.subf %1098, %1092 : vector<8x32xf32>
    %1100 = arith.mulf %1099, %1097 : vector<8x32xf32>
    %1101 = arith.mulf %1092, %1076 : vector<8x32xf32>
    %1102 = arith.addf %1100, %1101 : vector<8x32xf32>
    %1103 = arith.index_cast %c5_i32_265 : i32 to index
    %c0_278 = arith.constant 0 : index
    %c0_279 = arith.constant 0 : index
    %1104 = vector.load %arg14[%1103, %c0_278, %c0_279] : memref<8x8x32xf32, #tpu.memory_space<vmem>>, vector<1x8x32xf32>
    %1105 = vector.shape_cast %1104 : vector<1x8x32xf32> to vector<8x32xf32>
    %1106 = vector.shape_cast %1070 : vector<8x32xf32> to vector<1x8x32xf32>
    tpu.vector_store %arg14[%1103, %c0_278, %c0_279], %1106 {strides = array<i32>} : memref<8x8x32xf32, #tpu.memory_space<vmem>>, vector<1x8x32xf32>,
    %c7_i32_280 = arith.constant 7 : i32
    %1107 = arith.subi %c7_i32_280, %c5_i32_265 : i32
    %1108 = arith.index_cast %1107 : i32 to index
    %c0_281 = arith.constant 0 : index
    %c0_282 = arith.constant 0 : index
    %1109 = vector.load %arg15[%1108, %c0_281, %c0_282] : memref<8x8x32xf32, #tpu.memory_space<vmem>>, vector<1x8x32xf32>
    %1110 = vector.shape_cast %1109 : vector<1x8x32xf32> to vector<8x32xf32>
    %1111 = vector.shape_cast %1102 : vector<8x32xf32> to vector<1x8x32xf32>
    tpu.vector_store %arg15[%1108, %c0_281, %c0_282], %1111 {strides = array<i32>} : memref<8x8x32xf32, #tpu.memory_space<vmem>>, vector<1x8x32xf32>,
    %1112 = tpu.concatenate %1070, %1102, %0 in 1 : vector<8x32xf32>, vector<8x32xf32>, vector<8x64xf32> -> vector<8x128xf32>
    %c6_i32_283 = arith.constant 6 : i32
    %1113 = arith.truncf %1112 : vector<8x128xf32> to vector<8x128xbf16>
    %cst_284 = arith.constant dense<0.000000e+00> : vector<8x256xf32>
    %1114 = tpu.matmul %1113, %649, %cst_284 {dimension_numbers = #tpu.dot_dimension_numbers<[1], [0], [0], [1], [0, 0, 1, 1], [], []>} : vector<8x128xbf16>, vector<128x256xbf16>, vector<8x256xf32> -> vector<8x256xf32>
    %1115 = vector.broadcast %650 : vector<1x256xf32> to vector<8x256xf32>
    %1116 = arith.addf %1114, %1115 : vector<8x256xf32>
    %1117 = arith.index_cast %c6_i32_283 : i32 to index
    %c0_285 = arith.constant 0 : index
    %c0_286 = arith.constant 0 : index
    %1118 = vector.load %arg12[%1117, %c0_285, %c0_286] : memref<8x8x128xf32, #tpu.memory_space<vmem>>, vector<1x8x128xf32>
    %1119 = vector.shape_cast %1118 : vector<1x8x128xf32> to vector<8x128xf32>
    %1120 = vector.extract_strided_slice %1116 {offsets = [0, 0], sizes = [8, 128], strides = [1, 1]} : vector<8x256xf32> to vector<8x128xf32>
    %1121 = vector.extract_strided_slice %1112 {offsets = [0, 0], sizes = [8, 32], strides = [1, 1]} : vector<8x128xf32> to vector<8x32xf32>
    %1122 = vector.extract_strided_slice %1119 {offsets = [0, 0], sizes = [8, 32], strides = [1, 1]} : vector<8x128xf32> to vector<8x32xf32>
    %1123 = vector.extract_strided_slice %1120 {offsets = [0, 0], sizes = [8, 32], strides = [1, 1]} : vector<8x128xf32> to vector<8x32xf32>
    %1124 = arith.addf %1122, %1123 : vector<8x32xf32>
    %1125 = arith.negf %1124 : vector<8x32xf32>
    %1126 = math.exp %1125 : vector<8x32xf32>
    %cst_287 = arith.constant 1.000000e+00 : f32
    %1127 = vector.broadcast %cst_287 : f32 to vector<8x32xf32>
    %1128 = arith.addf %1127, %1126 : vector<8x32xf32>
    %1129 = arith.divf %1127, %1128 : vector<8x32xf32>
    %1130 = vector.extract_strided_slice %1119 {offsets = [0, 32], sizes = [8, 32], strides = [1, 1]} : vector<8x128xf32> to vector<8x32xf32>
    %1131 = vector.extract_strided_slice %1120 {offsets = [0, 32], sizes = [8, 32], strides = [1, 1]} : vector<8x128xf32> to vector<8x32xf32>
    %1132 = arith.addf %1130, %1131 : vector<8x32xf32>
    %1133 = arith.negf %1132 : vector<8x32xf32>
    %1134 = math.exp %1133 : vector<8x32xf32>
    %cst_288 = arith.constant 1.000000e+00 : f32
    %1135 = vector.broadcast %cst_288 : f32 to vector<8x32xf32>
    %1136 = arith.addf %1135, %1134 : vector<8x32xf32>
    %1137 = arith.divf %1135, %1136 : vector<8x32xf32>
    %1138 = vector.extract_strided_slice %1119 {offsets = [0, 64], sizes = [8, 32], strides = [1, 1]} : vector<8x128xf32> to vector<8x32xf32>
    %1139 = vector.extract_strided_slice %1120 {offsets = [0, 64], sizes = [8, 32], strides = [1, 1]} : vector<8x128xf32> to vector<8x32xf32>
    %1140 = arith.mulf %1129, %1139 : vector<8x32xf32>
    %1141 = arith.addf %1138, %1140 : vector<8x32xf32>
    %1142 = math.tanh %1141 : vector<8x32xf32>
    %cst_289 = arith.constant 1.000000e+00 : f32
    %1143 = vector.broadcast %cst_289 : f32 to vector<8x32xf32>
    %1144 = arith.subf %1143, %1137 : vector<8x32xf32>
    %1145 = arith.mulf %1144, %1142 : vector<8x32xf32>
    %1146 = arith.mulf %1137, %1121 : vector<8x32xf32>
    %1147 = arith.addf %1145, %1146 : vector<8x32xf32>
    %c7_i32_290 = arith.constant 7 : i32
    %1148 = arith.subi %c7_i32_290, %c6_i32_283 : i32
    %1149 = arith.index_cast %1148 : i32 to index
    %c0_291 = arith.constant 0 : index
    %c0_292 = arith.constant 0 : index
    %1150 = vector.load %arg13[%1149, %c0_291, %c0_292] : memref<8x8x128xf32, #tpu.memory_space<vmem>>, vector<1x8x128xf32>
    %1151 = vector.shape_cast %1150 : vector<1x8x128xf32> to vector<8x128xf32>
    %1152 = vector.extract_strided_slice %1116 {offsets = [0, 128], sizes = [8, 128], strides = [1, 1]} : vector<8x256xf32> to vector<8x128xf32>
    %1153 = vector.extract_strided_slice %1112 {offsets = [0, 32], sizes = [8, 32], strides = [1, 1]} : vector<8x128xf32> to vector<8x32xf32>
    %1154 = vector.extract_strided_slice %1151 {offsets = [0, 0], sizes = [8, 32], strides = [1, 1]} : vector<8x128xf32> to vector<8x32xf32>
    %1155 = vector.extract_strided_slice %1152 {offsets = [0, 0], sizes = [8, 32], strides = [1, 1]} : vector<8x128xf32> to vector<8x32xf32>
    %1156 = arith.addf %1154, %1155 : vector<8x32xf32>
    %1157 = arith.negf %1156 : vector<8x32xf32>
    %1158 = math.exp %1157 : vector<8x32xf32>
    %cst_293 = arith.constant 1.000000e+00 : f32
    %1159 = vector.broadcast %cst_293 : f32 to vector<8x32xf32>
    %1160 = arith.addf %1159, %1158 : vector<8x32xf32>
    %1161 = arith.divf %1159, %1160 : vector<8x32xf32>
    %1162 = vector.extract_strided_slice %1151 {offsets = [0, 32], sizes = [8, 32], strides = [1, 1]} : vector<8x128xf32> to vector<8x32xf32>
    %1163 = vector.extract_strided_slice %1152 {offsets = [0, 32], sizes = [8, 32], strides = [1, 1]} : vector<8x128xf32> to vector<8x32xf32>
    %1164 = arith.addf %1162, %1163 : vector<8x32xf32>
    %1165 = arith.negf %1164 : vector<8x32xf32>
    %1166 = math.exp %1165 : vector<8x32xf32>
    %cst_294 = arith.constant 1.000000e+00 : f32
    %1167 = vector.broadcast %cst_294 : f32 to vector<8x32xf32>
    %1168 = arith.addf %1167, %1166 : vector<8x32xf32>
    %1169 = arith.divf %1167, %1168 : vector<8x32xf32>
    %1170 = vector.extract_strided_slice %1151 {offsets = [0, 64], sizes = [8, 32], strides = [1, 1]} : vector<8x128xf32> to vector<8x32xf32>
    %1171 = vector.extract_strided_slice %1152 {offsets = [0, 64], sizes = [8, 32], strides = [1, 1]} : vector<8x128xf32> to vector<8x32xf32>
    %1172 = arith.mulf %1161, %1171 : vector<8x32xf32>
    %1173 = arith.addf %1170, %1172 : vector<8x32xf32>
    %1174 = math.tanh %1173 : vector<8x32xf32>
    %cst_295 = arith.constant 1.000000e+00 : f32
    %1175 = vector.broadcast %cst_295 : f32 to vector<8x32xf32>
    %1176 = arith.subf %1175, %1169 : vector<8x32xf32>
    %1177 = arith.mulf %1176, %1174 : vector<8x32xf32>
    %1178 = arith.mulf %1169, %1153 : vector<8x32xf32>
    %1179 = arith.addf %1177, %1178 : vector<8x32xf32>
    %1180 = arith.index_cast %c6_i32_283 : i32 to index
    %c0_296 = arith.constant 0 : index
    %c0_297 = arith.constant 0 : index
    %1181 = vector.load %arg14[%1180, %c0_296, %c0_297] : memref<8x8x32xf32, #tpu.memory_space<vmem>>, vector<1x8x32xf32>
    %1182 = vector.shape_cast %1181 : vector<1x8x32xf32> to vector<8x32xf32>
    %1183 = vector.shape_cast %1147 : vector<8x32xf32> to vector<1x8x32xf32>
    tpu.vector_store %arg14[%1180, %c0_296, %c0_297], %1183 {strides = array<i32>} : memref<8x8x32xf32, #tpu.memory_space<vmem>>, vector<1x8x32xf32>,
    %c7_i32_298 = arith.constant 7 : i32
    %1184 = arith.subi %c7_i32_298, %c6_i32_283 : i32
    %1185 = arith.index_cast %1184 : i32 to index
    %c0_299 = arith.constant 0 : index
    %c0_300 = arith.constant 0 : index
    %1186 = vector.load %arg15[%1185, %c0_299, %c0_300] : memref<8x8x32xf32, #tpu.memory_space<vmem>>, vector<1x8x32xf32>
    %1187 = vector.shape_cast %1186 : vector<1x8x32xf32> to vector<8x32xf32>
    %1188 = vector.shape_cast %1179 : vector<8x32xf32> to vector<1x8x32xf32>
    tpu.vector_store %arg15[%1185, %c0_299, %c0_300], %1188 {strides = array<i32>} : memref<8x8x32xf32, #tpu.memory_space<vmem>>, vector<1x8x32xf32>,
    %1189 = tpu.concatenate %1147, %1179, %0 in 1 : vector<8x32xf32>, vector<8x32xf32>, vector<8x64xf32> -> vector<8x128xf32>
    %c7_i32_301 = arith.constant 7 : i32
    %1190 = arith.truncf %1189 : vector<8x128xf32> to vector<8x128xbf16>
    %cst_302 = arith.constant dense<0.000000e+00> : vector<8x256xf32>
    %1191 = tpu.matmul %1190, %649, %cst_302 {dimension_numbers = #tpu.dot_dimension_numbers<[1], [0], [0], [1], [0, 0, 1, 1], [], []>} : vector<8x128xbf16>, vector<128x256xbf16>, vector<8x256xf32> -> vector<8x256xf32>
    %1192 = vector.broadcast %650 : vector<1x256xf32> to vector<8x256xf32>
    %1193 = arith.addf %1191, %1192 : vector<8x256xf32>
    %1194 = arith.index_cast %c7_i32_301 : i32 to index
    %c0_303 = arith.constant 0 : index
    %c0_304 = arith.constant 0 : index
    %1195 = vector.load %arg12[%1194, %c0_303, %c0_304] : memref<8x8x128xf32, #tpu.memory_space<vmem>>, vector<1x8x128xf32>
    %1196 = vector.shape_cast %1195 : vector<1x8x128xf32> to vector<8x128xf32>
    %1197 = vector.extract_strided_slice %1193 {offsets = [0, 0], sizes = [8, 128], strides = [1, 1]} : vector<8x256xf32> to vector<8x128xf32>
    %1198 = vector.extract_strided_slice %1189 {offsets = [0, 0], sizes = [8, 32], strides = [1, 1]} : vector<8x128xf32> to vector<8x32xf32>
    %1199 = vector.extract_strided_slice %1196 {offsets = [0, 0], sizes = [8, 32], strides = [1, 1]} : vector<8x128xf32> to vector<8x32xf32>
    %1200 = vector.extract_strided_slice %1197 {offsets = [0, 0], sizes = [8, 32], strides = [1, 1]} : vector<8x128xf32> to vector<8x32xf32>
    %1201 = arith.addf %1199, %1200 : vector<8x32xf32>
    %1202 = arith.negf %1201 : vector<8x32xf32>
    %1203 = math.exp %1202 : vector<8x32xf32>
    %cst_305 = arith.constant 1.000000e+00 : f32
    %1204 = vector.broadcast %cst_305 : f32 to vector<8x32xf32>
    %1205 = arith.addf %1204, %1203 : vector<8x32xf32>
    %1206 = arith.divf %1204, %1205 : vector<8x32xf32>
    %1207 = vector.extract_strided_slice %1196 {offsets = [0, 32], sizes = [8, 32], strides = [1, 1]} : vector<8x128xf32> to vector<8x32xf32>
    %1208 = vector.extract_strided_slice %1197 {offsets = [0, 32], sizes = [8, 32], strides = [1, 1]} : vector<8x128xf32> to vector<8x32xf32>
    %1209 = arith.addf %1207, %1208 : vector<8x32xf32>
    %1210 = arith.negf %1209 : vector<8x32xf32>
    %1211 = math.exp %1210 : vector<8x32xf32>
    %cst_306 = arith.constant 1.000000e+00 : f32
    %1212 = vector.broadcast %cst_306 : f32 to vector<8x32xf32>
    %1213 = arith.addf %1212, %1211 : vector<8x32xf32>
    %1214 = arith.divf %1212, %1213 : vector<8x32xf32>
    %1215 = vector.extract_strided_slice %1196 {offsets = [0, 64], sizes = [8, 32], strides = [1, 1]} : vector<8x128xf32> to vector<8x32xf32>
    %1216 = vector.extract_strided_slice %1197 {offsets = [0, 64], sizes = [8, 32], strides = [1, 1]} : vector<8x128xf32> to vector<8x32xf32>
    %1217 = arith.mulf %1206, %1216 : vector<8x32xf32>
    %1218 = arith.addf %1215, %1217 : vector<8x32xf32>
    %1219 = math.tanh %1218 : vector<8x32xf32>
    %cst_307 = arith.constant 1.000000e+00 : f32
    %1220 = vector.broadcast %cst_307 : f32 to vector<8x32xf32>
    %1221 = arith.subf %1220, %1214 : vector<8x32xf32>
    %1222 = arith.mulf %1221, %1219 : vector<8x32xf32>
    %1223 = arith.mulf %1214, %1198 : vector<8x32xf32>
    %1224 = arith.addf %1222, %1223 : vector<8x32xf32>
    %c7_i32_308 = arith.constant 7 : i32
    %1225 = arith.subi %c7_i32_308, %c7_i32_301 : i32
    %1226 = arith.index_cast %1225 : i32 to index
    %c0_309 = arith.constant 0 : index
    %c0_310 = arith.constant 0 : index
    %1227 = vector.load %arg13[%1226, %c0_309, %c0_310] : memref<8x8x128xf32, #tpu.memory_space<vmem>>, vector<1x8x128xf32>
    %1228 = vector.shape_cast %1227 : vector<1x8x128xf32> to vector<8x128xf32>
    %1229 = vector.extract_strided_slice %1193 {offsets = [0, 128], sizes = [8, 128], strides = [1, 1]} : vector<8x256xf32> to vector<8x128xf32>
    %1230 = vector.extract_strided_slice %1189 {offsets = [0, 32], sizes = [8, 32], strides = [1, 1]} : vector<8x128xf32> to vector<8x32xf32>
    %1231 = vector.extract_strided_slice %1228 {offsets = [0, 0], sizes = [8, 32], strides = [1, 1]} : vector<8x128xf32> to vector<8x32xf32>
    %1232 = vector.extract_strided_slice %1229 {offsets = [0, 0], sizes = [8, 32], strides = [1, 1]} : vector<8x128xf32> to vector<8x32xf32>
    %1233 = arith.addf %1231, %1232 : vector<8x32xf32>
    %1234 = arith.negf %1233 : vector<8x32xf32>
    %1235 = math.exp %1234 : vector<8x32xf32>
    %cst_311 = arith.constant 1.000000e+00 : f32
    %1236 = vector.broadcast %cst_311 : f32 to vector<8x32xf32>
    %1237 = arith.addf %1236, %1235 : vector<8x32xf32>
    %1238 = arith.divf %1236, %1237 : vector<8x32xf32>
    %1239 = vector.extract_strided_slice %1228 {offsets = [0, 32], sizes = [8, 32], strides = [1, 1]} : vector<8x128xf32> to vector<8x32xf32>
    %1240 = vector.extract_strided_slice %1229 {offsets = [0, 32], sizes = [8, 32], strides = [1, 1]} : vector<8x128xf32> to vector<8x32xf32>
    %1241 = arith.addf %1239, %1240 : vector<8x32xf32>
    %1242 = arith.negf %1241 : vector<8x32xf32>
    %1243 = math.exp %1242 : vector<8x32xf32>
    %cst_312 = arith.constant 1.000000e+00 : f32
    %1244 = vector.broadcast %cst_312 : f32 to vector<8x32xf32>
    %1245 = arith.addf %1244, %1243 : vector<8x32xf32>
    %1246 = arith.divf %1244, %1245 : vector<8x32xf32>
    %1247 = vector.extract_strided_slice %1228 {offsets = [0, 64], sizes = [8, 32], strides = [1, 1]} : vector<8x128xf32> to vector<8x32xf32>
    %1248 = vector.extract_strided_slice %1229 {offsets = [0, 64], sizes = [8, 32], strides = [1, 1]} : vector<8x128xf32> to vector<8x32xf32>
    %1249 = arith.mulf %1238, %1248 : vector<8x32xf32>
    %1250 = arith.addf %1247, %1249 : vector<8x32xf32>
    %1251 = math.tanh %1250 : vector<8x32xf32>
    %cst_313 = arith.constant 1.000000e+00 : f32
    %1252 = vector.broadcast %cst_313 : f32 to vector<8x32xf32>
    %1253 = arith.subf %1252, %1246 : vector<8x32xf32>
    %1254 = arith.mulf %1253, %1251 : vector<8x32xf32>
    %1255 = arith.mulf %1246, %1230 : vector<8x32xf32>
    %1256 = arith.addf %1254, %1255 : vector<8x32xf32>
    %1257 = arith.index_cast %c7_i32_301 : i32 to index
    %c0_314 = arith.constant 0 : index
    %c0_315 = arith.constant 0 : index
    %1258 = vector.load %arg14[%1257, %c0_314, %c0_315] : memref<8x8x32xf32, #tpu.memory_space<vmem>>, vector<1x8x32xf32>
    %1259 = vector.shape_cast %1258 : vector<1x8x32xf32> to vector<8x32xf32>
    %1260 = vector.shape_cast %1224 : vector<8x32xf32> to vector<1x8x32xf32>
    tpu.vector_store %arg14[%1257, %c0_314, %c0_315], %1260 {strides = array<i32>} : memref<8x8x32xf32, #tpu.memory_space<vmem>>, vector<1x8x32xf32>,
    %c7_i32_316 = arith.constant 7 : i32
    %1261 = arith.subi %c7_i32_316, %c7_i32_301 : i32
    %1262 = arith.index_cast %1261 : i32 to index
    %c0_317 = arith.constant 0 : index
    %c0_318 = arith.constant 0 : index
    %1263 = vector.load %arg15[%1262, %c0_317, %c0_318] : memref<8x8x32xf32, #tpu.memory_space<vmem>>, vector<1x8x32xf32>
    %1264 = vector.shape_cast %1263 : vector<1x8x32xf32> to vector<8x32xf32>
    %1265 = vector.shape_cast %1256 : vector<8x32xf32> to vector<1x8x32xf32>
    tpu.vector_store %arg15[%1262, %c0_317, %c0_318], %1265 {strides = array<i32>} : memref<8x8x32xf32, #tpu.memory_space<vmem>>, vector<1x8x32xf32>,
    %1266 = tpu.concatenate %1224, %1256, %0 in 1 : vector<8x32xf32>, vector<8x32xf32>, vector<8x64xf32> -> vector<8x128xf32>
    %c8_i32_319 = arith.constant 8 : i32
    %c0_320 = arith.constant 0 : index
    %c0_321 = arith.constant 0 : index
    %c0_322 = arith.constant 0 : index
    %1267 = vector.load %arg14[%c0_320, %c0_321, %c0_322] : memref<8x8x32xf32, #tpu.memory_space<vmem>>, vector<8x8x32xf32>
    %1268 = arith.addf %633, %1267 : vector<8x8x32xf32>
    %c0_323 = arith.constant 0 : index
    %c0_324 = arith.constant 0 : index
    %c0_325 = arith.constant 0 : index
    %1269 = vector.load %arg15[%c0_323, %c0_324, %c0_325] : memref<8x8x32xf32, #tpu.memory_space<vmem>>, vector<8x8x32xf32>
    %1270 = arith.addf %634, %1269 : vector<8x8x32xf32>
    %cst_326 = arith.constant 0.000000e+00 : f32
    %1271 = vector.broadcast %cst_326 : f32 to vector<8x32xf32>
    %cst_327 = arith.constant 0.000000e+00 : f32
    %1272 = vector.broadcast %cst_327 : f32 to vector<8x64xf32>
    %1273 = vector.extract_strided_slice %1268 {offsets = [3, 0, 0], sizes = [1, 8, 32], strides = [1, 1, 1]} : vector<8x8x32xf32> to vector<1x8x32xf32>
    %1274 = vector.shape_cast %1273 : vector<1x8x32xf32> to vector<8x32xf32>
    %1275 = vector.extract_strided_slice %1270 {offsets = [0, 0, 0], sizes = [1, 8, 32], strides = [1, 1, 1]} : vector<8x8x32xf32> to vector<1x8x32xf32>
    %1276 = vector.shape_cast %1275 : vector<1x8x32xf32> to vector<8x32xf32>
    %1277 = tpu.concatenate %1274, %1276, %1272 in 1 : vector<8x32xf32>, vector<8x32xf32>, vector<8x64xf32> -> vector<8x128xf32>
    %c0_328 = arith.constant 0 : index
    %c0_329 = arith.constant 0 : index
    %c0_330 = arith.constant 0 : index
    %1278 = vector.load %arg9[%c0_328, %c0_329, %c0_330] : memref<3x128x128xf32, #tpu.memory_space<vmem>>, vector<1x128x128xf32>
    %1279 = vector.shape_cast %1278 : vector<1x128x128xf32> to vector<128x128xf32>
    %cst_331 = arith.constant dense<0.000000e+00> : vector<8x128xf32>
    %1280 = tpu.matmul %1277, %1279, %cst_331 {dimension_numbers = #tpu.dot_dimension_numbers<[1], [0], [0], [1], [0, 0, 1, 1], [], []>} : vector<8x128xf32>, vector<128x128xf32>, vector<8x128xf32> -> vector<8x128xf32>
    %c0_332 = arith.constant 0 : index
    %c0_333 = arith.constant 0 : index
    %c0_334 = arith.constant 0 : index
    %1281 = vector.load %arg10[%c0_332, %c0_333, %c0_334] : memref<3x1x128xf32, #tpu.memory_space<vmem>>, vector<1x1x128xf32>
    %1282 = vector.shape_cast %1281 : vector<1x1x128xf32> to vector<1x128xf32>
    %1283 = vector.broadcast %1282 : vector<1x128xf32> to vector<8x128xf32>
    %1284 = arith.addf %1280, %1283 : vector<8x128xf32>
    %c0_335 = arith.constant 0 : index
    %c0_336 = arith.constant 0 : index
    %c0_337 = arith.constant 0 : index
    %1285 = vector.load %arg11[%c0_335, %c0_336, %c0_337] : memref<3x8x128xf32, #tpu.memory_space<vmem>>, vector<1x8x128xf32>
    %1286 = vector.shape_cast %1285 : vector<1x8x128xf32> to vector<8x128xf32>
    %1287 = vector.shape_cast %1284 : vector<8x128xf32> to vector<1x8x128xf32>
    tpu.vector_store %arg11[%c0_335, %c0_336, %c0_337], %1287 {strides = array<i32>} : memref<3x8x128xf32, #tpu.memory_space<vmem>>, vector<1x8x128xf32>,
    %1288 = vector.extract_strided_slice %1268 {offsets = [7, 0, 0], sizes = [1, 8, 32], strides = [1, 1, 1]} : vector<8x8x32xf32> to vector<1x8x32xf32>
    %1289 = vector.shape_cast %1288 : vector<1x8x32xf32> to vector<8x32xf32>
    %1290 = tpu.concatenate %1289, %1271, %1272 in 1 : vector<8x32xf32>, vector<8x32xf32>, vector<8x64xf32> -> vector<8x128xf32>
    %c1 = arith.constant 1 : index
    %c0_338 = arith.constant 0 : index
    %c0_339 = arith.constant 0 : index
    %1291 = vector.load %arg9[%c1, %c0_338, %c0_339] : memref<3x128x128xf32, #tpu.memory_space<vmem>>, vector<1x128x128xf32>
    %1292 = vector.shape_cast %1291 : vector<1x128x128xf32> to vector<128x128xf32>
    %cst_340 = arith.constant dense<0.000000e+00> : vector<8x128xf32>
    %1293 = tpu.matmul %1290, %1292, %cst_340 {dimension_numbers = #tpu.dot_dimension_numbers<[1], [0], [0], [1], [0, 0, 1, 1], [], []>} : vector<8x128xf32>, vector<128x128xf32>, vector<8x128xf32> -> vector<8x128xf32>
    %c1_341 = arith.constant 1 : index
    %c0_342 = arith.constant 0 : index
    %c0_343 = arith.constant 0 : index
    %1294 = vector.load %arg10[%c1_341, %c0_342, %c0_343] : memref<3x1x128xf32, #tpu.memory_space<vmem>>, vector<1x1x128xf32>
    %1295 = vector.shape_cast %1294 : vector<1x1x128xf32> to vector<1x128xf32>
    %1296 = vector.broadcast %1295 : vector<1x128xf32> to vector<8x128xf32>
    %1297 = arith.addf %1293, %1296 : vector<8x128xf32>
    %c1_344 = arith.constant 1 : index
    %c0_345 = arith.constant 0 : index
    %c0_346 = arith.constant 0 : index
    %1298 = vector.load %arg11[%c1_344, %c0_345, %c0_346] : memref<3x8x128xf32, #tpu.memory_space<vmem>>, vector<1x8x128xf32>
    %1299 = vector.shape_cast %1298 : vector<1x8x128xf32> to vector<8x128xf32>
    %1300 = vector.shape_cast %1297 : vector<8x128xf32> to vector<1x8x128xf32>
    tpu.vector_store %arg11[%c1_344, %c0_345, %c0_346], %1300 {strides = array<i32>} : memref<3x8x128xf32, #tpu.memory_space<vmem>>, vector<1x8x128xf32>,
    %1301 = vector.extract_strided_slice %1270 {offsets = [4, 0, 0], sizes = [1, 8, 32], strides = [1, 1, 1]} : vector<8x8x32xf32> to vector<1x8x32xf32>
    %1302 = vector.shape_cast %1301 : vector<1x8x32xf32> to vector<8x32xf32>
    %1303 = tpu.concatenate %1271, %1302, %1272 in 1 : vector<8x32xf32>, vector<8x32xf32>, vector<8x64xf32> -> vector<8x128xf32>
    %c2 = arith.constant 2 : index
    %c0_347 = arith.constant 0 : index
    %c0_348 = arith.constant 0 : index
    %1304 = vector.load %arg9[%c2, %c0_347, %c0_348] : memref<3x128x128xf32, #tpu.memory_space<vmem>>, vector<1x128x128xf32>
    %1305 = vector.shape_cast %1304 : vector<1x128x128xf32> to vector<128x128xf32>
    %cst_349 = arith.constant dense<0.000000e+00> : vector<8x128xf32>
    %1306 = tpu.matmul %1303, %1305, %cst_349 {dimension_numbers = #tpu.dot_dimension_numbers<[1], [0], [0], [1], [0, 0, 1, 1], [], []>} : vector<8x128xf32>, vector<128x128xf32>, vector<8x128xf32> -> vector<8x128xf32>
    %c2_350 = arith.constant 2 : index
    %c0_351 = arith.constant 0 : index
    %c0_352 = arith.constant 0 : index
    %1307 = vector.load %arg10[%c2_350, %c0_351, %c0_352] : memref<3x1x128xf32, #tpu.memory_space<vmem>>, vector<1x1x128xf32>
    %1308 = vector.shape_cast %1307 : vector<1x1x128xf32> to vector<1x128xf32>
    %1309 = vector.broadcast %1308 : vector<1x128xf32> to vector<8x128xf32>
    %1310 = arith.addf %1306, %1309 : vector<8x128xf32>
    %c2_353 = arith.constant 2 : index
    %c0_354 = arith.constant 0 : index
    %c0_355 = arith.constant 0 : index
    %1311 = vector.load %arg11[%c2_353, %c0_354, %c0_355] : memref<3x8x128xf32, #tpu.memory_space<vmem>>, vector<1x8x128xf32>
    %1312 = vector.shape_cast %1311 : vector<1x8x128xf32> to vector<8x128xf32>
    %1313 = vector.shape_cast %1310 : vector<8x128xf32> to vector<1x8x128xf32>
    tpu.vector_store %arg11[%c2_353, %c0_354, %c0_355], %1313 {strides = array<i32>} : memref<3x8x128xf32, #tpu.memory_space<vmem>>, vector<1x8x128xf32>,
    return
  }
}

</mosaic_0001>

<llo_original>
// kernel: _lambda_.1
$region0: #{_lambda_.1}
  #allocation0 [shape = 'u32[]', space=smem, size = 0x4, offset = 0x4, fixed_abs, tag = 'smem constant byte address 0x4 - core index']
  #allocation1 [shape = 'u32[144,128]{1,0:T(1,128)}', space=vmem, size = 0x12000, scoped, tag = 'internal scratch']
  #allocation2 [shape = 'f32[8,8,128]{2,1,0:T(8,128)}', space=vmem, size = 0x8000, scoped, tag = 'scratch operand']
  #allocation3 [shape = 'f32[8,8,128]{2,1,0:T(8,128)}', space=vmem, size = 0x8000, scoped, tag = 'scratch operand']
  #allocation4 [shape = 'f32[8,8,32]{2,1,0:T(8,128)}', space=vmem, size = 0x8000, scoped, tag = 'scratch operand']
  #allocation5 [shape = 'f32[8,8,32]{2,1,0:T(8,128)}', space=vmem, size = 0x8000, scoped, tag = 'scratch operand']
  %s0 = inlined_call_operand.vmem [shape: bf16[64,16], index: 0, kind: input, shape index: {}]
  %s1 = inlined_call_operand.vmem [shape: bf16[16,256], index: 1, kind: input, shape index: {}]
  %s2 = inlined_call_operand.hbm [shape: bf16[128,256], index: 2, kind: input, shape index: {}]
  %s3 = inlined_call_operand.vmem [shape: f32[1,256], index: 3, kind: input, shape index: {}]
  %s4 = inlined_call_operand.vmem [shape: f32[1,256], index: 4, kind: input, shape index: {}]
  %s5 = inlined_call_operand.hbm [shape: bf16[128,256], index: 5, kind: input, shape index: {}]
  %s6 = inlined_call_operand.hbm [shape: bf16[128,256], index: 6, kind: input, shape index: {}]
  %s7 = inlined_call_operand.vmem [shape: f32[1,256], index: 7, kind: input, shape index: {}]
  %s8 = inlined_call_operand.vmem [shape: f32[1,256], index: 8, kind: input, shape index: {}]
  %s9 = inlined_call_operand.hbm [shape: f32[3,128,128], index: 9, kind: input, shape index: {}]
  %s10 = inlined_call_operand.vmem [shape: f32[3,1,128], index: 10, kind: input, shape index: {}]
  %s11 = inlined_call_operand.vmem [shape: f32[3,8,128], index: 11, kind: output, shape index: {}]
  %s12 = sld [smem:[#allocation0]]
  $region70: #{_lambda_.1} parent=0
    _
  %s14 = ssub.s32 1, %s12
  %s15 = scalar_select 0, %s14, %s12
  $region1: #{_lambda_.1} parent=0
    #allocation6 [shape = 'u8[65536]{0}', space=vmem, size = 0x10000, scoped, tag = 'input window, operand 2, single buffered']
    #allocation7 [shape = 's32[1]{0}', space=sflag, size = 0x4, scoped, tag = 'scoped memory for _lambda_.1']
    #allocation8 [shape = 'u8[65536]{0}', space=vmem, size = 0x10000, scoped, tag = 'input window, operand 5, single buffered']
    #allocation9 [shape = 's32[1]{0}', space=sflag, size = 0x4, scoped, tag = 'scoped memory for _lambda_.1']
    #allocation10 [shape = 'u8[65536]{0}', space=vmem, size = 0x10000, scoped, tag = 'input window, operand 6, single buffered']
    #allocation11 [shape = 'u8[196608]{0}', space=vmem, size = 0x30000, scoped, tag = 'input window, operand 9, single buffered']
    #allocation12 [shape = 's32[1]{0}', space=sflag, size = 0x4, scoped, tag = 'scoped memory for _lambda_.1']
    %16 = vsyncpa [#allocation7], 0
    %17 = vsyncpa [#allocation9], 0
    %18 = vsyncpa [#allocation12], 0
    // Predicated region
    $region2: #{_lambda_.1} parent=1 // pred_check
      _
    $region3: #{_lambda_.1} parent=1 // pred_check_branch
      %20 = sbr.rel (0) target = $region5
    $region4: #{_lambda_.1} parent=1 // pred_region
      _
    $region5: #{_lambda_.1} parent=1 // pred_fallthru
      _
    // Predicated region
    $region6: #{_lambda_.1} parent=1 // pred_check
      _
    $region7: #{_lambda_.1} parent=1 // pred_check_branch
      %22 = sbr.rel (0) target = $region9
    $region8: #{_lambda_.1} parent=1 // pred_region
      _
    $region9: #{_lambda_.1} parent=1 // pred_fallthru
      _
    // Predicated region
    $region10: #{_lambda_.1} parent=1 // pred_check
      _
    $region11: #{_lambda_.1} parent=1 // pred_check_branch
      %24 = sbr.rel (0) target = $region13
    $region12: #{_lambda_.1} parent=1 // pred_region
      %s26 = ssub.s32 2048, 2048
      %27 = vsyncadd [#allocation7], %s26
      %s28 = sshll.u32 [#allocation6], 4
      %s29 = int_to_ptr.vmem [resolvable:$true] %s28
      %34 = dma.hbm_to_vmem [thread:$0]  %s2, 2048, %s29, [#allocation7], 128, 128, 8
    $region13: #{_lambda_.1} parent=1 // pred_fallthru
      _
    // Predicated region
    $region14: #{_lambda_.1} parent=1 // pred_check
      _
    $region15: #{_lambda_.1} parent=1 // pred_check_branch
      %36 = sbr.rel (0) target = $region17
    $region16: #{_lambda_.1} parent=1 // pred_region
      _
    $region17: #{_lambda_.1} parent=1 // pred_fallthru
      _
    // Predicated region
    $region18: #{_lambda_.1} parent=1 // pred_check
      _
    $region19: #{_lambda_.1} parent=1 // pred_check_branch
      %38 = sbr.rel (0) target = $region21
    $region20: #{_lambda_.1} parent=1 // pred_region
      _
    $region21: #{_lambda_.1} parent=1 // pred_fallthru
      _
    // Predicated region
    $region22: #{_lambda_.1} parent=1 // pred_check
      _
    $region23: #{_lambda_.1} parent=1 // pred_check_branch
      %40 = sbr.rel (0) target = $region25
    $region24: #{_lambda_.1} parent=1 // pred_region
      %s42 = ssub.s32 2048, 2048
      %43 = vsyncadd [#allocation9], %s42
      %s44 = sshll.u32 [#allocation8], 4
      %s45 = int_to_ptr.vmem [resolvable:$true] %s44
      %50 = dma.hbm_to_vmem [thread:$0]  %s5, 2048, %s45, [#allocation9], 128, 128, 8
    $region25: #{_lambda_.1} parent=1 // pred_fallthru
      _
    // Predicated region
    $region26: #{_lambda_.1} parent=1 // pred_check
      _
    $region27: #{_lambda_.1} parent=1 // pred_check_branch
      %52 = sbr.rel (0) target = $region29
    $region28: #{_lambda_.1} parent=1 // pred_region
      %s54 = ssub.s32 2048, 2048
      %55 = vsyncadd [#allocation9], %s54
      %s56 = sshll.u32 [#allocation10], 4
      %s57 = int_to_ptr.vmem [resolvable:$true] %s56
      %62 = dma.hbm_to_vmem [thread:$0]  %s6, 2048, %s57, [#allocation9], 128, 128, 8
    $region29: #{_lambda_.1} parent=1 // pred_fallthru
      _
    // Predicated region
    $region30: #{_lambda_.1} parent=1 // pred_check
      _
    $region31: #{_lambda_.1} parent=1 // pred_check_branch
      %64 = sbr.rel (0) target = $region33
    $region32: #{_lambda_.1} parent=1 // pred_region
      _
    $region33: #{_lambda_.1} parent=1 // pred_fallthru
      _
    // Predicated region
    $region34: #{_lambda_.1} parent=1 // pred_check
      _
    $region35: #{_lambda_.1} parent=1 // pred_check_branch
      %66 = sbr.rel (0) target = $region37
    $region36: #{_lambda_.1} parent=1 // pred_region
      _
    $region37: #{_lambda_.1} parent=1 // pred_fallthru
      _
    // Predicated region
    $region38: #{_lambda_.1} parent=1 // pred_check
      _
    $region39: #{_lambda_.1} parent=1 // pred_check_branch
      %68 = sbr.rel (0) target = $region41
    $region40: #{_lambda_.1} parent=1 // pred_region
      %s70 = ssub.s32 6144, 6144
      %71 = vsyncadd [#allocation12], %s70
      %s72 = sshll.u32 [#allocation11], 4
      %s73 = int_to_ptr.vmem [resolvable:$true] %s72
      %78 = dma.hbm_to_vmem [thread:$0]  %s9, 6144, %s73, [#allocation12], 128, 128, 8
    $region41: #{_lambda_.1} parent=1 // pred_fallthru
      _
    // Predicated region
    $region42: #{_lambda_.1} parent=1 // pred_check
      _
    $region43: #{_lambda_.1} parent=1 // pred_check_branch
      %80 = sbr.rel (0) target = $region45
    $region44: #{_lambda_.1} parent=1 // pred_region
      _
    $region45: #{_lambda_.1} parent=1 // pred_fallthru
      _
    // Predicated region
    $region46: #{_lambda_.1} parent=1 // pred_check
      _
    $region47: #{_lambda_.1} parent=1 // pred_check_branch
      %82 = sbr.rel (0) target = $region49
    $region48: #{_lambda_.1} parent=1 // pred_region
      %83 = dma.done [#allocation7], 2048
    $region49: #{_lambda_.1} parent=1 // pred_fallthru
      _
    // Predicated region
    $region50: #{_lambda_.1} parent=1 // pred_check
      _
    $region51: #{_lambda_.1} parent=1 // pred_check_branch
      %85 = sbr.rel (0) target = $region53
    $region52: #{_lambda_.1} parent=1 // pred_region
      %86 = dma.done [#allocation9], 2048
    $region53: #{_lambda_.1} parent=1 // pred_fallthru
      _
    // Predicated region
    $region54: #{_lambda_.1} parent=1 // pred_check
      _
    $region55: #{_lambda_.1} parent=1 // pred_check_branch
      %88 = sbr.rel (0) target = $region57
    $region56: #{_lambda_.1} parent=1 // pred_region
      %89 = dma.done [#allocation9], 2048
    $region57: #{_lambda_.1} parent=1 // pred_fallthru
      _
    // Predicated region
    $region58: #{_lambda_.1} parent=1 // pred_check
      _
    $region59: #{_lambda_.1} parent=1 // pred_check_branch
      %91 = sbr.rel (0) target = $region61
    $region60: #{_lambda_.1} parent=1 // pred_region
      %92 = dma.done [#allocation12], 6144
    $region61: #{_lambda_.1} parent=1 // pred_fallthru
      _
    %v94 = vld [vmem:[%s0] sm:$0xf]
    %v95 = vld [vmem:[%s0 + $0x4] sm:$0xf]
    %v96 = vld [vmem:[%s0 + $0x8] sm:$0xf]
    %v97 = vld [vmem:[%s0 + $0xc] sm:$0xf]
    %v98 = vld [vmem:[%s0 + $0x10] sm:$0xf]
    %v99 = vld [vmem:[%s0 + $0x14] sm:$0xf]
    %v100 = vld [vmem:[%s0 + $0x18] sm:$0xf]
    %v101 = vld [vmem:[%s0 + $0x1c] sm:$0xf]
    %v102 = vld [vmem:[%s1] sm:$0xff]
    %v103 = vld [vmem:[%s1 + $0x8] sm:$0xff]
    %v104 = vld [vmem:[%s3] sm:$0x3]
    %v106 = vlaneseq
    %v107 = vshrl.u32 %v106, 7
    %v108 = vsub.s32 0, %v107
    %v109 = vrot.slane %v104, %v108
    %v110 = vlaneseq
    %v111 = vshrl.u32 %v110, 7
    %v112 = vsub.s32 1, %v111
    %v113 = vrot.slane %v104, %v112
    %v124 = vunpack.c.l.b16 %v94
    %v125 = vunpack.c.l.b16 %v95
    %v126 = vunpack.c.l.b16 %v96
    %v127 = vunpack.c.l.b16 %v97
    %v128 = vunpack.c.l.b16 %v98
    %v129 = vunpack.c.l.b16 %v99
    %v130 = vunpack.c.l.b16 %v100
    %v131 = vunpack.c.l.b16 %v101
    %v132 = vpack.c.b16 %v125, %v124
    %v133 = vpack.c.b16 %v127, %v126
    %v134 = vpack.c.b16 %v129, %v128
    %v135 = vpack.c.b16 %v131, %v130
    %v138 = vunpack.c.l.b16 %v102
    %v139 = vunpack.c.h.b16 %v102
    %v140 = vunpack.c.l.b16 %v103
    %v141 = vunpack.c.h.b16 %v103
    %v142 = vpack.c.b16 %v140, %v138
    %v143 = vpack.c.b16 %v141, %v139
    %vm146 = vcmask 130048
    %v148 = vsel %vm146, %v132, 0
    %v151 = vsel %vm146, %v133, 0
    %v154 = vsel %vm146, %v134, 0
    %v157 = vsel %vm146, %v135, 0
    %159 = vmatprep.subr.bf16.mxu0 %v143
    %160 = vmatpush1.bf16.msra.mxu0 %v142
    %161 = vmatprep.subr.bf16.mxu0 0
    %162 = vmatpush1.bf16.msra.mxu0 0
    %163 = vmatprep.subr.bf16.mxu0 0
    %164 = vmatpush1.bf16.msra.mxu0 0
    %165 = vmatprep.subr.bf16.mxu0 0
    %166 = vmatpush1.bf16.msra.mxu0 0
    %167 = vmatprep.subr.bf16.mxu0 0
    %168 = vmatpush1.bf16.msra.mxu0 0
    %169 = vmatprep.subr.bf16.mxu0 0
    %170 = vmatpush1.bf16.msra.mxu0 0
    %171 = vmatprep.subr.bf16.mxu0 0
    %172 = vmatpush1.bf16.msra.mxu0 0
    %173 = vmatprep.subr.bf16.mxu0 0
    %174 = vmatpush1.bf16.msra.mxu0 0
    %175 = vmatprep.subr.bf16.mxu0 0
    %176 = vmatpush1.bf16.msra.mxu0 0
    %177 = vmatprep.subr.bf16.mxu0 0
    %178 = vmatpush1.bf16.msra.mxu0 0
    %179 = vmatprep.subr.bf16.mxu0 0
    %180 = vmatpush1.bf16.msra.mxu0 0
    %181 = vmatprep.subr.bf16.mxu0 0
    %182 = vmatpush1.bf16.msra.mxu0 0
    %183 = vmatprep.subr.bf16.mxu0 0
    %184 = vmatpush1.bf16.msra.mxu0 0
    %185 = vmatprep.subr.bf16.mxu0 0
    %186 = vmatpush1.bf16.msra.mxu0 0
    %187 = vmatprep.subr.bf16.mxu0 0
    %188 = vmatpush1.bf16.msra.mxu0 0
    %189 = vmatprep.subr.bf16.mxu0 0
    %190 = vmatpush1.bf16.msra.mxu0 0
    %191 = vmatprep.mubr.bf16.mxu0 0
    %192 = vmatmul.mubr.bf16.gmra.mrb[0].mxu0 %v148
    %v193 = vpop.f32.mrb[0].mxu0
    %v194 = vadd.f32 %v109, %v193
    %v195 = vpop.f32.mrb[0].mxu0
    %v196 = vadd.f32 %v113, %v195
    %v197 = vpop.f32.mrb[0].mxu0
    %v198 = vadd.f32 %v109, %v197
    %v199 = vpop.f32.mrb[0].mxu0
    %v200 = vadd.f32 %v113, %v199
    %201 = vmatprep.mubr.bf16.mxu0 0
    %202 = vmatmul.mubr.bf16.gmra.mrb[0].mxu0 %v151
    %v203 = vpop.f32.mrb[0].mxu0
    %v204 = vadd.f32 %v109, %v203
    %v205 = vpop.f32.mrb[0].mxu0
    %v206 = vadd.f32 %v113, %v205
    %v207 = vpop.f32.mrb[0].mxu0
    %v208 = vadd.f32 %v109, %v207
    %v209 = vpop.f32.mrb[0].mxu0
    %v210 = vadd.f32 %v113, %v209
    %211 = vmatprep.mubr.bf16.mxu0 0
    %212 = vmatmul.mubr.bf16.gmra.mrb[0].mxu0 %v154
    %v213 = vpop.f32.mrb[0].mxu0
    %v214 = vadd.f32 %v109, %v213
    %v215 = vpop.f32.mrb[0].mxu0
    %v216 = vadd.f32 %v113, %v215
    %v217 = vpop.f32.mrb[0].mxu0
    %v218 = vadd.f32 %v109, %v217
    %v219 = vpop.f32.mrb[0].mxu0
    %v220 = vadd.f32 %v113, %v219
    %221 = vmatprep.mubr.bf16.mxu0 0
    %222 = vmatmul.mubr.bf16.gmra.mrb[0].mxu0 %v157
    %v223 = vpop.f32.mrb[0].mxu0
    %v224 = vadd.f32 %v109, %v223
    %v225 = vpop.f32.mrb[0].mxu0
    %v226 = vadd.f32 %v113, %v225
    %v227 = vpop.f32.mrb[0].mxu0
    %v228 = vadd.f32 %v109, %v227
    %v229 = vpop.f32.mrb[0].mxu0
    %v230 = vadd.f32 %v113, %v229
    %231 = vdwg.mxu0
    %232 = vst [vmem:[#allocation2] sm:$0xff] %v194
    %233 = vst [vmem:[#allocation2 + $0x8] sm:$0xff] %v198
    %234 = vst [vmem:[#allocation2 + $0x10] sm:$0xff] %v204
    %235 = vst [vmem:[#allocation2 + $0x18] sm:$0xff] %v208
    %236 = vst [vmem:[#allocation2 + $0x20] sm:$0xff] %v214
    %237 = vst [vmem:[#allocation2 + $0x28] sm:$0xff] %v218
    %238 = vst [vmem:[#allocation2 + $0x30] sm:$0xff] %v224
    %239 = vst [vmem:[#allocation2 + $0x38] sm:$0xff] %v228
    %240 = vst [vmem:[#allocation3] sm:$0xff] %v196
    %241 = vst [vmem:[#allocation3 + $0x8] sm:$0xff] %v200
    %242 = vst [vmem:[#allocation3 + $0x10] sm:$0xff] %v206
    %243 = vst [vmem:[#allocation3 + $0x18] sm:$0xff] %v210
    %244 = vst [vmem:[#allocation3 + $0x20] sm:$0xff] %v216
    %245 = vst [vmem:[#allocation3 + $0x28] sm:$0xff] %v220
    %246 = vst [vmem:[#allocation3 + $0x30] sm:$0xff] %v226
    %247 = vst [vmem:[#allocation3 + $0x38] sm:$0xff] %v230
    %v248 = vld [vmem:[#allocation6] sm:$0xff]
    %v249 = vld [vmem:[#allocation6 + $0x8] sm:$0xff]
    %v250 = vld [vmem:[#allocation6 + $0x10] sm:$0xff]
    %v251 = vld [vmem:[#allocation6 + $0x18] sm:$0xff]
    %v252 = vld [vmem:[#allocation6 + $0x20] sm:$0xff]
    %v253 = vld [vmem:[#allocation6 + $0x28] sm:$0xff]
    %v254 = vld [vmem:[#allocation6 + $0x30] sm:$0xff]
    %v255 = vld [vmem:[#allocation6 + $0x38] sm:$0xff]
    %v256 = vld [vmem:[#allocation6 + $0x40] sm:$0xff]
    %v257 = vld [vmem:[#allocation6 + $0x48] sm:$0xff]
    %v258 = vld [vmem:[#allocation6 + $0x50] sm:$0xff]
    %v259 = vld [vmem:[#allocation6 + $0x58] sm:$0xff]
    %v260 = vld [vmem:[#allocation6 + $0x60] sm:$0xff]
    %v261 = vld [vmem:[#allocation6 + $0x68] sm:$0xff]
    %v262 = vld [vmem:[#allocation6 + $0x70] sm:$0xff]
    %v263 = vld [vmem:[#allocation6 + $0x78] sm:$0xff]
    %v264 = vld [vmem:[%s4] sm:$0x3]
    %v266 = vlaneseq
    %v267 = vshrl.u32 %v266, 7
    %v268 = vsub.s32 0, %v267
    %v269 = vrot.slane %v264, %v268
    %v270 = vlaneseq
    %v271 = vshrl.u32 %v270, 7
    %v272 = vsub.s32 1, %v271
    %v273 = vrot.slane %v264, %v272
    %v292 = vunpack.c.l.b16 %v248
    %v293 = vunpack.c.h.b16 %v248
    %v294 = vunpack.c.l.b16 %v249
    %v295 = vunpack.c.h.b16 %v249
    %v296 = vunpack.c.l.b16 %v250
    %v297 = vunpack.c.h.b16 %v250
    %v298 = vunpack.c.l.b16 %v251
    %v299 = vunpack.c.h.b16 %v251
    %v300 = vunpack.c.l.b16 %v252
    %v301 = vunpack.c.h.b16 %v252
    %v302 = vunpack.c.l.b16 %v253
    %v303 = vunpack.c.h.b16 %v253
    %v304 = vunpack.c.l.b16 %v254
    %v305 = vunpack.c.h.b16 %v254
    %v306 = vunpack.c.l.b16 %v255
    %v307 = vunpack.c.h.b16 %v255
    %v308 = vunpack.c.l.b16 %v256
    %v309 = vunpack.c.h.b16 %v256
    %v310 = vunpack.c.l.b16 %v257
    %v311 = vunpack.c.h.b16 %v257
    %v312 = vunpack.c.l.b16 %v258
    %v313 = vunpack.c.h.b16 %v258
    %v314 = vunpack.c.l.b16 %v259
    %v315 = vunpack.c.h.b16 %v259
    %v316 = vunpack.c.l.b16 %v260
    %v317 = vunpack.c.h.b16 %v260
    %v318 = vunpack.c.l.b16 %v261
    %v319 = vunpack.c.h.b16 %v261
    %v320 = vunpack.c.l.b16 %v262
    %v321 = vunpack.c.h.b16 %v262
    %v322 = vunpack.c.l.b16 %v263
    %v323 = vunpack.c.h.b16 %v263
    %v324 = vpack.c.b16 %v294, %v292
    %v325 = vpack.c.b16 %v295, %v293
    %v326 = vpack.c.b16 %v298, %v296
    %v327 = vpack.c.b16 %v299, %v297
    %v328 = vpack.c.b16 %v302, %v300
    %v329 = vpack.c.b16 %v303, %v301
    %v330 = vpack.c.b16 %v306, %v304
    %v331 = vpack.c.b16 %v307, %v305
    %v332 = vpack.c.b16 %v310, %v308
    %v333 = vpack.c.b16 %v311, %v309
    %v334 = vpack.c.b16 %v314, %v312
    %v335 = vpack.c.b16 %v315, %v313
    %v336 = vpack.c.b16 %v318, %v316
    %v337 = vpack.c.b16 %v319, %v317
    %v338 = vpack.c.b16 %v322, %v320
    %v339 = vpack.c.b16 %v323, %v321
    %356 = vmatprep.subr.bf16.mxu0 %v325
    %357 = vmatpush1.bf16.msra.mxu0 %v324
    %358 = vmatprep.subr.bf16.mxu0 %v327
    %359 = vmatpush1.bf16.msra.mxu0 %v326
    %360 = vmatprep.subr.bf16.mxu0 %v329
    %361 = vmatpush1.bf16.msra.mxu0 %v328
    %362 = vmatprep.subr.bf16.mxu0 %v331
    %363 = vmatpush1.bf16.msra.mxu0 %v330
    %364 = vmatprep.subr.bf16.mxu0 %v333
    %365 = vmatpush1.bf16.msra.mxu0 %v332
    %366 = vmatprep.subr.bf16.mxu0 %v335
    %367 = vmatpush1.bf16.msra.mxu0 %v334
    %368 = vmatprep.subr.bf16.mxu0 %v337
    %369 = vmatpush1.bf16.msra.mxu0 %v336
    %370 = vmatprep.subr.bf16.mxu0 %v339
    %371 = vmatpush1.bf16.msra.mxu0 %v338
    %372 = vmatprep.subr.bf16.mxu0 0
    %373 = vmatpush1.bf16.msra.mxu0 0
    %374 = vmatprep.subr.bf16.mxu0 0
    %375 = vmatpush1.bf16.msra.mxu0 0
    %376 = vmatprep.subr.bf16.mxu0 0
    %377 = vmatpush1.bf16.msra.mxu0 0
    %378 = vmatprep.subr.bf16.mxu0 0
    %379 = vmatpush1.bf16.msra.mxu0 0
    %380 = vmatprep.subr.bf16.mxu0 0
    %381 = vmatpush1.bf16.msra.mxu0 0
    %382 = vmatprep.subr.bf16.mxu0 0
    %383 = vmatpush1.bf16.msra.mxu0 0
    %384 = vmatprep.subr.bf16.mxu0 0
    %385 = vmatpush1.bf16.msra.mxu0 0
    %386 = vmatprep.subr.bf16.mxu0 0
    %387 = vmatpush1.bf16.msra.mxu0 0
    %388 = vmatprep.mubr.bf16.mxu0 0
    %389 = vmatmul.mubr.bf16.gmra.mrb[0].mxu0 0
    %v390 = vpop.f32.mrb[0].mxu0
    %v391 = vadd.f32 %v269, %v390
    %v392 = vpop.f32.mrb[0].mxu0
    %v393 = vadd.f32 %v273, %v392
    %v394 = vpop.f32.mrb[0].mxu0
    %v395 = vpop.f32.mrb[0].mxu0
    %396 = vdwg.mxu0
    %v397 = vld [vmem:[#allocation2] sm:$0xff]
    %v398 = vadd.f32 %v397, %v391
    %v399 = vxor.u32 %v398, 2147483648
    %v400 = vmul.f32 %v399, 1.442695
    %v401 = vpow.pop %v400
    %v402 = vadd.f32 %v401, 1.0
    %v403 = vrcp.pop %v402
    %v404 = vmul.f32 1.0, %v403
    %406 = vrot.lane.b32.xlu0 %v391, 64
    %v407 = vpop.permute.xlu0 %406
    %v409 = vmul.f32 %v404, %v407
    %411 = vrot.lane.b32.xlu0 %v409, 64
    %v412 = vpop.permute.xlu0 %411
    %v414 = vadd.f32 %v397, %v412
    %v415 = vtanh.pop %v414
    %v416 = vsub.f32 1.0, %v404
    %418 = vrot.lane.b32.xlu0 %v415, 96
    %v419 = vpop.permute.xlu0 %418
    %v421 = vmul.f32 %v416, %v419
    %v422 = vmul.f32 %v404, 0.0
    %v423 = vadd.f32 %v421, %v422
    %s424 = scalar_lea.vmem [#allocation3], 56
    %v425 = vld [vmem:[%s424] sm:$0xff]
    %v426 = vadd.f32 %v425, %v393
    %v427 = vxor.u32 %v426, 2147483648
    %v428 = vmul.f32 %v427, 1.442695
    %v429 = vpow.pop %v428
    %v430 = vadd.f32 %v429, 1.0
    %v431 = vrcp.pop %v430
    %v432 = vmul.f32 1.0, %v431
    %434 = vrot.lane.b32.xlu0 %v393, 64
    %v435 = vpop.permute.xlu0 %434
    %v437 = vmul.f32 %v432, %v435
    %439 = vrot.lane.b32.xlu0 %v437, 64
    %v440 = vpop.permute.xlu0 %439
    %v442 = vadd.f32 %v425, %v440
    %v443 = vtanh.pop %v442
    %v444 = vsub.f32 1.0, %v432
    %446 = vrot.lane.b32.xlu0 %v443, 96
    %v447 = vpop.permute.xlu0 %446
    %v449 = vmul.f32 %v444, %v447
    %v450 = vmul.f32 %v432, 0.0
    %v451 = vadd.f32 %v449, %v450
    %453 = vrot.lane.b32.xlu0 %v423, 96
    %v454 = vpop.permute.xlu0 %453
    %vm456 = vcmask 261120
    %457 = vst.msk [vmem:[#allocation4] sm:$0xff] %vm456, %v454
    %459 = vrot.lane.b32.xlu0 %v451, 96
    %v460 = vpop.permute.xlu0 %459
    %s462 = scalar_lea.vmem [#allocation5], 56
    %463 = vst.msk [vmem:[%s462] sm:$0xff] %vm456, %v460
    %v464 = vsel %vm456, %v454, %v451
    %vm465 = vcmask 523264
    %v466 = vsel %vm465, %v464, 0.0
    %v467 = vpack.c.bf16 %v466, %v466
    %468 = vmatprep.subr.bf16.mxu0 %v325
    %469 = vmatpush1.bf16.msra.mxu0 %v324
    %470 = vmatprep.subr.bf16.mxu0 %v327
    %471 = vmatpush1.bf16.msra.mxu0 %v326
    %472 = vmatprep.subr.bf16.mxu0 %v329
    %473 = vmatpush1.bf16.msra.mxu0 %v328
    %474 = vmatprep.subr.bf16.mxu0 %v331
    %475 = vmatpush1.bf16.msra.mxu0 %v330
    %476 = vmatprep.subr.bf16.mxu0 %v333
    %477 = vmatpush1.bf16.msra.mxu0 %v332
    %478 = vmatprep.subr.bf16.mxu0 %v335
    %479 = vmatpush1.bf16.msra.mxu0 %v334
    %480 = vmatprep.subr.bf16.mxu0 %v337
    %481 = vmatpush1.bf16.msra.mxu0 %v336
    %482 = vmatprep.subr.bf16.mxu0 %v339
    %483 = vmatpush1.bf16.msra.mxu0 %v338
    %484 = vmatprep.subr.bf16.mxu0 0
    %485 = vmatpush1.bf16.msra.mxu0 0
    %486 = vmatprep.subr.bf16.mxu0 0
    %487 = vmatpush1.bf16.msra.mxu0 0
    %488 = vmatprep.subr.bf16.mxu0 0
    %489 = vmatpush1.bf16.msra.mxu0 0
    %490 = vmatprep.subr.bf16.mxu0 0
    %491 = vmatpush1.bf16.msra.mxu0 0
    %492 = vmatprep.subr.bf16.mxu0 0
    %493 = vmatpush1.bf16.msra.mxu0 0
    %494 = vmatprep.subr.bf16.mxu0 0
    %495 = vmatpush1.bf16.msra.mxu0 0
    %496 = vmatprep.subr.bf16.mxu0 0
    %497 = vmatpush1.bf16.msra.mxu0 0
    %498 = vmatprep.subr.bf16.mxu0 0
    %499 = vmatpush1.bf16.msra.mxu0 0
    %500 = vmatprep.mubr.bf16.mxu0 0
    %501 = vmatmul.mubr.bf16.gmra.mrb[0].mxu0 %v467
    %v502 = vpop.f32.mrb[0].mxu0
    %v503 = vadd.f32 %v269, %v502
    %v504 = vpop.f32.mrb[0].mxu0
    %v505 = vadd.f32 %v273, %v504
    %v506 = vpop.f32.mrb[0].mxu0
    %v507 = vpop.f32.mrb[0].mxu0
    %508 = vdwg.mxu0
    %s509 = scalar_lea.vmem [#allocation2], 8
    %v510 = vld [vmem:[%s509] sm:$0xff]
    %v511 = vadd.f32 %v510, %v503
    %v512 = vxor.u32 %v511, 2147483648
    %v513 = vmul.f32 %v512, 1.442695
    %v514 = vpow.pop %v513
    %v515 = vadd.f32 %v514, 1.0
    %v516 = vrcp.pop %v515
    %v517 = vmul.f32 1.0, %v516
    %519 = vrot.lane.b32.xlu0 %v503, 64
    %v520 = vpop.permute.xlu0 %519
    %v522 = vmul.f32 %v517, %v520
    %524 = vrot.lane.b32.xlu0 %v522, 64
    %v525 = vpop.permute.xlu0 %524
    %v527 = vadd.f32 %v510, %v525
    %v528 = vtanh.pop %v527
    %v529 = vsub.f32 1.0, %v517
    %531 = vrot.lane.b32.xlu0 %v528, 96
    %v532 = vpop.permute.xlu0 %531
    %v534 = vmul.f32 %v529, %v532
    %536 = vrot.lane.b32.xlu0 %v466, 32
    %v537 = vpop.permute.xlu0 %536
    %v539 = vmul.f32 %v517, %v537
    %v540 = vadd.f32 %v534, %v539
    %s541 = scalar_lea.vmem [#allocation3], 48
    %v542 = vld [vmem:[%s541] sm:$0xff]
    %v543 = vadd.f32 %v542, %v505
    %v544 = vxor.u32 %v543, 2147483648
    %v545 = vmul.f32 %v544, 1.442695
    %v546 = vpow.pop %v545
    %v547 = vadd.f32 %v546, 1.0
    %v548 = vrcp.pop %v547
    %v549 = vmul.f32 1.0, %v548
    %551 = vrot.lane.b32.xlu0 %v505, 64
    %v552 = vpop.permute.xlu0 %551
    %v554 = vmul.f32 %v549, %v552
    %556 = vrot.lane.b32.xlu0 %v554, 64
    %v557 = vpop.permute.xlu0 %556
    %v559 = vadd.f32 %v542, %v557
    %v560 = vtanh.pop %v559
    %v561 = vsub.f32 1.0, %v549
    %563 = vrot.lane.b32.xlu0 %v560, 96
    %v564 = vpop.permute.xlu0 %563
    %v566 = vmul.f32 %v561, %v564
    %v567 = vmul.f32 %v549, %v466
    %v568 = vadd.f32 %v566, %v567
    %570 = vrot.lane.b32.xlu0 %v540, 96
    %v571 = vpop.permute.xlu0 %570
    %s573 = scalar_lea.vmem [#allocation4], 8
    %574 = vst.msk [vmem:[%s573] sm:$0xff] %vm456, %v571
    %576 = vrot.lane.b32.xlu0 %v568, 96
    %v577 = vpop.permute.xlu0 %576
    %s579 = scalar_lea.vmem [#allocation5], 48
    %580 = vst.msk [vmem:[%s579] sm:$0xff] %vm456, %v577
    %v581 = vsel %vm456, %v571, %v568
    %v582 = vsel %vm465, %v581, 0.0
    %v583 = vpack.c.bf16 %v582, %v582
    %584 = vmatprep.subr.bf16.mxu0 %v325
    %585 = vmatpush1.bf16.msra.mxu0 %v324
    %586 = vmatprep.subr.bf16.mxu0 %v327
    %587 = vmatpush1.bf16.msra.mxu0 %v326
    %588 = vmatprep.subr.bf16.mxu0 %v329
    %589 = vmatpush1.bf16.msra.mxu0 %v328
    %590 = vmatprep.subr.bf16.mxu0 %v331
    %591 = vmatpush1.bf16.msra.mxu0 %v330
    %592 = vmatprep.subr.bf16.mxu0 %v333
    %593 = vmatpush1.bf16.msra.mxu0 %v332
    %594 = vmatprep.subr.bf16.mxu0 %v335
    %595 = vmatpush1.bf16.msra.mxu0 %v334
    %596 = vmatprep.subr.bf16.mxu0 %v337
    %597 = vmatpush1.bf16.msra.mxu0 %v336
    %598 = vmatprep.subr.bf16.mxu0 %v339
    %599 = vmatpush1.bf16.msra.mxu0 %v338
    %600 = vmatprep.subr.bf16.mxu0 0
    %601 = vmatpush1.bf16.msra.mxu0 0
    %602 = vmatprep.subr.bf16.mxu0 0
    %603 = vmatpush1.bf16.msra.mxu0 0
    %604 = vmatprep.subr.bf16.mxu0 0
    %605 = vmatpush1.bf16.msra.mxu0 0
    %606 = vmatprep.subr.bf16.mxu0 0
    %607 = vmatpush1.bf16.msra.mxu0 0
    %608 = vmatprep.subr.bf16.mxu0 0
    %609 = vmatpush1.bf16.msra.mxu0 0
    %610 = vmatprep.subr.bf16.mxu0 0
    %611 = vmatpush1.bf16.msra.mxu0 0
    %612 = vmatprep.subr.bf16.mxu0 0
    %613 = vmatpush1.bf16.msra.mxu0 0
    %614 = vmatprep.subr.bf16.mxu0 0
    %615 = vmatpush1.bf16.msra.mxu0 0
    %616 = vmatprep.mubr.bf16.mxu0 0
    %617 = vmatmul.mubr.bf16.gmra.mrb[0].mxu0 %v583
    %v618 = vpop.f32.mrb[0].mxu0
    %v619 = vadd.f32 %v269, %v618
    %v620 = vpop.f32.mrb[0].mxu0
    %v621 = vadd.f32 %v273, %v620
    %v622 = vpop.f32.mrb[0].mxu0
    %v623 = vpop.f32.mrb[0].mxu0
    %624 = vdwg.mxu0
    %s625 = scalar_lea.vmem [#allocation2], 16
    %v626 = vld [vmem:[%s625] sm:$0xff]
    %v627 = vadd.f32 %v626, %v619
    %v628 = vxor.u32 %v627, 2147483648
    %v629 = vmul.f32 %v628, 1.442695
    %v630 = vpow.pop %v629
    %v631 = vadd.f32 %v630, 1.0
    %v632 = vrcp.pop %v631
    %v633 = vmul.f32 1.0, %v632
    %635 = vrot.lane.b32.xlu0 %v619, 64
    %v636 = vpop.permute.xlu0 %635
    %v638 = vmul.f32 %v633, %v636
    %640 = vrot.lane.b32.xlu0 %v638, 64
    %v641 = vpop.permute.xlu0 %640
    %v643 = vadd.f32 %v626, %v641
    %v644 = vtanh.pop %v643
    %v645 = vsub.f32 1.0, %v633
    %647 = vrot.lane.b32.xlu0 %v644, 96
    %v648 = vpop.permute.xlu0 %647
    %v650 = vmul.f32 %v645, %v648
    %652 = vrot.lane.b32.xlu0 %v582, 32
    %v653 = vpop.permute.xlu0 %652
    %v655 = vmul.f32 %v633, %v653
    %v656 = vadd.f32 %v650, %v655
    %s657 = scalar_lea.vmem [#allocation3], 40
    %v658 = vld [vmem:[%s657] sm:$0xff]
    %v659 = vadd.f32 %v658, %v621
    %v660 = vxor.u32 %v659, 2147483648
    %v661 = vmul.f32 %v660, 1.442695
    %v662 = vpow.pop %v661
    %v663 = vadd.f32 %v662, 1.0
    %v664 = vrcp.pop %v663
    %v665 = vmul.f32 1.0, %v664
    %667 = vrot.lane.b32.xlu0 %v621, 64
    %v668 = vpop.permute.xlu0 %667
    %v670 = vmul.f32 %v665, %v668
    %672 = vrot.lane.b32.xlu0 %v670, 64
    %v673 = vpop.permute.xlu0 %672
    %v675 = vadd.f32 %v658, %v673
    %v676 = vtanh.pop %v675
    %v677 = vsub.f32 1.0, %v665
    %679 = vrot.lane.b32.xlu0 %v676, 96
    %v680 = vpop.permute.xlu0 %679
    %v682 = vmul.f32 %v677, %v680
    %v683 = vmul.f32 %v665, %v582
    %v684 = vadd.f32 %v682, %v683
    %686 = vrot.lane.b32.xlu0 %v656, 96
    %v687 = vpop.permute.xlu0 %686
    %s689 = scalar_lea.vmem [#allocation4], 16
    %690 = vst.msk [vmem:[%s689] sm:$0xff] %vm456, %v687
    %692 = vrot.lane.b32.xlu0 %v684, 96
    %v693 = vpop.permute.xlu0 %692
    %s695 = scalar_lea.vmem [#allocation5], 40
    %696 = vst.msk [vmem:[%s695] sm:$0xff] %vm456, %v693
    %v697 = vsel %vm456, %v687, %v684
    %v698 = vsel %vm465, %v697, 0.0
    %v699 = vpack.c.bf16 %v698, %v698
    %700 = vmatprep.subr.bf16.mxu0 %v325
    %701 = vmatpush1.bf16.msra.mxu0 %v324
    %702 = vmatprep.subr.bf16.mxu0 %v327
    %703 = vmatpush1.bf16.msra.mxu0 %v326
    %704 = vmatprep.subr.bf16.mxu0 %v329
    %705 = vmatpush1.bf16.msra.mxu0 %v328
    %706 = vmatprep.subr.bf16.mxu0 %v331
    %707 = vmatpush1.bf16.msra.mxu0 %v330
    %708 = vmatprep.subr.bf16.mxu0 %v333
    %709 = vmatpush1.bf16.msra.mxu0 %v332
    %710 = vmatprep.subr.bf16.mxu0 %v335
    %711 = vmatpush1.bf16.msra.mxu0 %v334
    %712 = vmatprep.subr.bf16.mxu0 %v337
    %713 = vmatpush1.bf16.msra.mxu0 %v336
    %714 = vmatprep.subr.bf16.mxu0 %v339
    %715 = vmatpush1.bf16.msra.mxu0 %v338
    %716 = vmatprep.subr.bf16.mxu0 0
    %717 = vmatpush1.bf16.msra.mxu0 0
    %718 = vmatprep.subr.bf16.mxu0 0
    %719 = vmatpush1.bf16.msra.mxu0 0
    %720 = vmatprep.subr.bf16.mxu0 0
    %721 = vmatpush1.bf16.msra.mxu0 0
    %722 = vmatprep.subr.bf16.mxu0 0
    %723 = vmatpush1.bf16.msra.mxu0 0
    %724 = vmatprep.subr.bf16.mxu0 0
    %725 = vmatpush1.bf16.msra.mxu0 0
    %726 = vmatprep.subr.bf16.mxu0 0
    %727 = vmatpush1.bf16.msra.mxu0 0
    %728 = vmatprep.subr.bf16.mxu0 0
    %729 = vmatpush1.bf16.msra.mxu0 0
    %730 = vmatprep.subr.bf16.mxu0 0
    %731 = vmatpush1.bf16.msra.mxu0 0
    %732 = vmatprep.mubr.bf16.mxu0 0
    %733 = vmatmul.mubr.bf16.gmra.mrb[0].mxu0 %v699
    %v734 = vpop.f32.mrb[0].mxu0
    %v735 = vadd.f32 %v269, %v734
    %v736 = vpop.f32.mrb[0].mxu0
    %v737 = vadd.f32 %v273, %v736
    %v738 = vpop.f32.mrb[0].mxu0
    %v739 = vpop.f32.mrb[0].mxu0
    %740 = vdwg.mxu0
    %s741 = scalar_lea.vmem [#allocation2], 24
    %v742 = vld [vmem:[%s741] sm:$0xff]
    %v743 = vadd.f32 %v742, %v735
    %v744 = vxor.u32 %v743, 2147483648
    %v745 = vmul.f32 %v744, 1.442695
    %v746 = vpow.pop %v745
    %v747 = vadd.f32 %v746, 1.0
    %v748 = vrcp.pop %v747
    %v749 = vmul.f32 1.0, %v748
    %751 = vrot.lane.b32.xlu0 %v735, 64
    %v752 = vpop.permute.xlu0 %751
    %v754 = vmul.f32 %v749, %v752
    %756 = vrot.lane.b32.xlu0 %v754, 64
    %v757 = vpop.permute.xlu0 %756
    %v759 = vadd.f32 %v742, %v757
    %v760 = vtanh.pop %v759
    %v761 = vsub.f32 1.0, %v749
    %763 = vrot.lane.b32.xlu0 %v760, 96
    %v764 = vpop.permute.xlu0 %763
    %v766 = vmul.f32 %v761, %v764
    %768 = vrot.lane.b32.xlu0 %v698, 32
    %v769 = vpop.permute.xlu0 %768
    %v771 = vmul.f32 %v749, %v769
    %v772 = vadd.f32 %v766, %v771
    %s773 = scalar_lea.vmem [#allocation3], 32
    %v774 = vld [vmem:[%s773] sm:$0xff]
    %v775 = vadd.f32 %v774, %v737
    %v776 = vxor.u32 %v775, 2147483648
    %v777 = vmul.f32 %v776, 1.442695
    %v778 = vpow.pop %v777
    %v779 = vadd.f32 %v778, 1.0
    %v780 = vrcp.pop %v779
    %v781 = vmul.f32 1.0, %v780
    %783 = vrot.lane.b32.xlu0 %v737, 64
    %v784 = vpop.permute.xlu0 %783
    %v786 = vmul.f32 %v781, %v784
    %788 = vrot.lane.b32.xlu0 %v786, 64
    %v789 = vpop.permute.xlu0 %788
    %v791 = vadd.f32 %v774, %v789
    %v792 = vtanh.pop %v791
    %v793 = vsub.f32 1.0, %v781
    %795 = vrot.lane.b32.xlu0 %v792, 96
    %v796 = vpop.permute.xlu0 %795
    %v798 = vmul.f32 %v793, %v796
    %v799 = vmul.f32 %v781, %v698
    %v800 = vadd.f32 %v798, %v799
    %802 = vrot.lane.b32.xlu0 %v772, 96
    %v803 = vpop.permute.xlu0 %802
    %s805 = scalar_lea.vmem [#allocation4], 24
    %806 = vst.msk [vmem:[%s805] sm:$0xff] %vm456, %v803
    %808 = vrot.lane.b32.xlu0 %v800, 96
    %v809 = vpop.permute.xlu0 %808
    %s811 = scalar_lea.vmem [#allocation5], 32
    %812 = vst.msk [vmem:[%s811] sm:$0xff] %vm456, %v809
    %v813 = vsel %vm456, %v803, %v800
    %v814 = vsel %vm465, %v813, 0.0
    %v815 = vpack.c.bf16 %v814, %v814
    %816 = vmatprep.subr.bf16.mxu0 %v325
    %817 = vmatpush1.bf16.msra.mxu0 %v324
    %818 = vmatprep.subr.bf16.mxu0 %v327
    %819 = vmatpush1.bf16.msra.mxu0 %v326
    %820 = vmatprep.subr.bf16.mxu0 %v329
    %821 = vmatpush1.bf16.msra.mxu0 %v328
    %822 = vmatprep.subr.bf16.mxu0 %v331
    %823 = vmatpush1.bf16.msra.mxu0 %v330
    %824 = vmatprep.subr.bf16.mxu0 %v333
    %825 = vmatpush1.bf16.msra.mxu0 %v332
    %826 = vmatprep.subr.bf16.mxu0 %v335
    %827 = vmatpush1.bf16.msra.mxu0 %v334
    %828 = vmatprep.subr.bf16.mxu0 %v337
    %829 = vmatpush1.bf16.msra.mxu0 %v336
    %830 = vmatprep.subr.bf16.mxu0 %v339
    %831 = vmatpush1.bf16.msra.mxu0 %v338
    %832 = vmatprep.subr.bf16.mxu0 0
    %833 = vmatpush1.bf16.msra.mxu0 0
    %834 = vmatprep.subr.bf16.mxu0 0
    %835 = vmatpush1.bf16.msra.mxu0 0
    %836 = vmatprep.subr.bf16.mxu0 0
    %837 = vmatpush1.bf16.msra.mxu0 0
    %838 = vmatprep.subr.bf16.mxu0 0
    %839 = vmatpush1.bf16.msra.mxu0 0
    %840 = vmatprep.subr.bf16.mxu0 0
    %841 = vmatpush1.bf16.msra.mxu0 0
    %842 = vmatprep.subr.bf16.mxu0 0
    %843 = vmatpush1.bf16.msra.mxu0 0
    %844 = vmatprep.subr.bf16.mxu0 0
    %845 = vmatpush1.bf16.msra.mxu0 0
    %846 = vmatprep.subr.bf16.mxu0 0
    %847 = vmatpush1.bf16.msra.mxu0 0
    %848 = vmatprep.mubr.bf16.mxu0 0
    %849 = vmatmul.mubr.bf16.gmra.mrb[0].mxu0 %v815
    %v850 = vpop.f32.mrb[0].mxu0
    %v851 = vadd.f32 %v269, %v850
    %v852 = vpop.f32.mrb[0].mxu0
    %v853 = vadd.f32 %v273, %v852
    %v854 = vpop.f32.mrb[0].mxu0
    %v855 = vpop.f32.mrb[0].mxu0
    %856 = vdwg.mxu0
    %s857 = scalar_lea.vmem [#allocation2], 32
    %v858 = vld [vmem:[%s857] sm:$0xff]
    %v859 = vadd.f32 %v858, %v851
    %v860 = vxor.u32 %v859, 2147483648
    %v861 = vmul.f32 %v860, 1.442695
    %v862 = vpow.pop %v861
    %v863 = vadd.f32 %v862, 1.0
    %v864 = vrcp.pop %v863
    %v865 = vmul.f32 1.0, %v864
    %867 = vrot.lane.b32.xlu0 %v851, 64
    %v868 = vpop.permute.xlu0 %867
    %v870 = vmul.f32 %v865, %v868
    %872 = vrot.lane.b32.xlu0 %v870, 64
    %v873 = vpop.permute.xlu0 %872
    %v875 = vadd.f32 %v858, %v873
    %v876 = vtanh.pop %v875
    %v877 = vsub.f32 1.0, %v865
    %879 = vrot.lane.b32.xlu0 %v876, 96
    %v880 = vpop.permute.xlu0 %879
    %v882 = vmul.f32 %v877, %v880
    %884 = vrot.lane.b32.xlu0 %v814, 32
    %v885 = vpop.permute.xlu0 %884
    %v887 = vmul.f32 %v865, %v885
    %v888 = vadd.f32 %v882, %v887
    %s889 = scalar_lea.vmem [#allocation3], 24
    %v890 = vld [vmem:[%s889] sm:$0xff]
    %v891 = vadd.f32 %v890, %v853
    %v892 = vxor.u32 %v891, 2147483648
    %v893 = vmul.f32 %v892, 1.442695
    %v894 = vpow.pop %v893
    %v895 = vadd.f32 %v894, 1.0
    %v896 = vrcp.pop %v895
    %v897 = vmul.f32 1.0, %v896
    %899 = vrot.lane.b32.xlu0 %v853, 64
    %v900 = vpop.permute.xlu0 %899
    %v902 = vmul.f32 %v897, %v900
    %904 = vrot.lane.b32.xlu0 %v902, 64
    %v905 = vpop.permute.xlu0 %904
    %v907 = vadd.f32 %v890, %v905
    %v908 = vtanh.pop %v907
    %v909 = vsub.f32 1.0, %v897
    %911 = vrot.lane.b32.xlu0 %v908, 96
    %v912 = vpop.permute.xlu0 %911
    %v914 = vmul.f32 %v909, %v912
    %v915 = vmul.f32 %v897, %v814
    %v916 = vadd.f32 %v914, %v915
    %918 = vrot.lane.b32.xlu0 %v888, 96
    %v919 = vpop.permute.xlu0 %918
    %s921 = scalar_lea.vmem [#allocation4], 32
    %922 = vst.msk [vmem:[%s921] sm:$0xff] %vm456, %v919
    %924 = vrot.lane.b32.xlu0 %v916, 96
    %v925 = vpop.permute.xlu0 %924
    %s927 = scalar_lea.vmem [#allocation5], 24
    %928 = vst.msk [vmem:[%s927] sm:$0xff] %vm456, %v925
    %v929 = vsel %vm456, %v919, %v916
    %v930 = vsel %vm465, %v929, 0.0
    %v931 = vpack.c.bf16 %v930, %v930
    %932 = vmatprep.subr.bf16.mxu0 %v325
    %933 = vmatpush1.bf16.msra.mxu0 %v324
    %934 = vmatprep.subr.bf16.mxu0 %v327
    %935 = vmatpush1.bf16.msra.mxu0 %v326
    %936 = vmatprep.subr.bf16.mxu0 %v329
    %937 = vmatpush1.bf16.msra.mxu0 %v328
    %938 = vmatprep.subr.bf16.mxu0 %v331
    %939 = vmatpush1.bf16.msra.mxu0 %v330
    %940 = vmatprep.subr.bf16.mxu0 %v333
    %941 = vmatpush1.bf16.msra.mxu0 %v332
    %942 = vmatprep.subr.bf16.mxu0 %v335
    %943 = vmatpush1.bf16.msra.mxu0 %v334
    %944 = vmatprep.subr.bf16.mxu0 %v337
    %945 = vmatpush1.bf16.msra.mxu0 %v336
    %946 = vmatprep.subr.bf16.mxu0 %v339
    %947 = vmatpush1.bf16.msra.mxu0 %v338
    %948 = vmatprep.subr.bf16.mxu0 0
    %949 = vmatpush1.bf16.msra.mxu0 0
    %950 = vmatprep.subr.bf16.mxu0 0
    %951 = vmatpush1.bf16.msra.mxu0 0
    %952 = vmatprep.subr.bf16.mxu0 0
    %953 = vmatpush1.bf16.msra.mxu0 0
    %954 = vmatprep.subr.bf16.mxu0 0
    %955 = vmatpush1.bf16.msra.mxu0 0
    %956 = vmatprep.subr.bf16.mxu0 0
    %957 = vmatpush1.bf16.msra.mxu0 0
    %958 = vmatprep.subr.bf16.mxu0 0
    %959 = vmatpush1.bf16.msra.mxu0 0
    %960 = vmatprep.subr.bf16.mxu0 0
    %961 = vmatpush1.bf16.msra.mxu0 0
    %962 = vmatprep.subr.bf16.mxu0 0
    %963 = vmatpush1.bf16.msra.mxu0 0
    %964 = vmatprep.mubr.bf16.mxu0 0
    %965 = vmatmul.mubr.bf16.gmra.mrb[0].mxu0 %v931
    %v966 = vpop.f32.mrb[0].mxu0
    %v967 = vadd.f32 %v269, %v966
    %v968 = vpop.f32.mrb[0].mxu0
    %v969 = vadd.f32 %v273, %v968
    %v970 = vpop.f32.mrb[0].mxu0
    %v971 = vpop.f32.mrb[0].mxu0
    %972 = vdwg.mxu0
    %s973 = scalar_lea.vmem [#allocation2], 40
    %v974 = vld [vmem:[%s973] sm:$0xff]
    %v975 = vadd.f32 %v974, %v967
    %v976 = vxor.u32 %v975, 2147483648
    %v977 = vmul.f32 %v976, 1.442695
    %v978 = vpow.pop %v977
    %v979 = vadd.f32 %v978, 1.0
    %v980 = vrcp.pop %v979
    %v981 = vmul.f32 1.0, %v980
    %983 = vrot.lane.b32.xlu0 %v967, 64
    %v984 = vpop.permute.xlu0 %983
    %v986 = vmul.f32 %v981, %v984
    %988 = vrot.lane.b32.xlu0 %v986, 64
    %v989 = vpop.permute.xlu0 %988
    %v991 = vadd.f32 %v974, %v989
    %v992 = vtanh.pop %v991
    %v993 = vsub.f32 1.0, %v981
    %995 = vrot.lane.b32.xlu0 %v992, 96
    %v996 = vpop.permute.xlu0 %995
    %v998 = vmul.f32 %v993, %v996
    %1000 = vrot.lane.b32.xlu0 %v930, 32
    %v1001 = vpop.permute.xlu0 %1000
    %v1003 = vmul.f32 %v981, %v1001
    %v1004 = vadd.f32 %v998, %v1003
    %s1005 = scalar_lea.vmem [#allocation3], 16
    %v1006 = vld [vmem:[%s1005] sm:$0xff]
    %v1007 = vadd.f32 %v1006, %v969
    %v1008 = vxor.u32 %v1007, 2147483648
    %v1009 = vmul.f32 %v1008, 1.442695
    %v1010 = vpow.pop %v1009
    %v1011 = vadd.f32 %v1010, 1.0
    %v1012 = vrcp.pop %v1011
    %v1013 = vmul.f32 1.0, %v1012
    %1015 = vrot.lane.b32.xlu0 %v969, 64
    %v1016 = vpop.permute.xlu0 %1015
    %v1018 = vmul.f32 %v1013, %v1016
    %1020 = vrot.lane.b32.xlu0 %v1018, 64
    %v1021 = vpop.permute.xlu0 %1020
    %v1023 = vadd.f32 %v1006, %v1021
    %v1024 = vtanh.pop %v1023
    %v1025 = vsub.f32 1.0, %v1013
    %1027 = vrot.lane.b32.xlu0 %v1024, 96
    %v1028 = vpop.permute.xlu0 %1027
    %v1030 = vmul.f32 %v1025, %v1028
    %v1031 = vmul.f32 %v1013, %v930
    %v1032 = vadd.f32 %v1030, %v1031
    %1034 = vrot.lane.b32.xlu0 %v1004, 96
    %v1035 = vpop.permute.xlu0 %1034
    %s1037 = scalar_lea.vmem [#allocation4], 40
    %1038 = vst.msk [vmem:[%s1037] sm:$0xff] %vm456, %v1035
    %1040 = vrot.lane.b32.xlu0 %v1032, 96
    %v1041 = vpop.permute.xlu0 %1040
    %s1043 = scalar_lea.vmem [#allocation5], 16
    %1044 = vst.msk [vmem:[%s1043] sm:$0xff] %vm456, %v1041
    %v1045 = vsel %vm456, %v1035, %v1032
    %v1046 = vsel %vm465, %v1045, 0.0
    %v1047 = vpack.c.bf16 %v1046, %v1046
    %1048 = vmatprep.subr.bf16.mxu0 %v325
    %1049 = vmatpush1.bf16.msra.mxu0 %v324
    %1050 = vmatprep.subr.bf16.mxu0 %v327
    %1051 = vmatpush1.bf16.msra.mxu0 %v326
    %1052 = vmatprep.subr.bf16.mxu0 %v329
    %1053 = vmatpush1.bf16.msra.mxu0 %v328
    %1054 = vmatprep.subr.bf16.mxu0 %v331
    %1055 = vmatpush1.bf16.msra.mxu0 %v330
    %1056 = vmatprep.subr.bf16.mxu0 %v333
    %1057 = vmatpush1.bf16.msra.mxu0 %v332
    %1058 = vmatprep.subr.bf16.mxu0 %v335
    %1059 = vmatpush1.bf16.msra.mxu0 %v334
    %1060 = vmatprep.subr.bf16.mxu0 %v337
    %1061 = vmatpush1.bf16.msra.mxu0 %v336
    %1062 = vmatprep.subr.bf16.mxu0 %v339
    %1063 = vmatpush1.bf16.msra.mxu0 %v338
    %1064 = vmatprep.subr.bf16.mxu0 0
    %1065 = vmatpush1.bf16.msra.mxu0 0
    %1066 = vmatprep.subr.bf16.mxu0 0
    %1067 = vmatpush1.bf16.msra.mxu0 0
    %1068 = vmatprep.subr.bf16.mxu0 0
    %1069 = vmatpush1.bf16.msra.mxu0 0
    %1070 = vmatprep.subr.bf16.mxu0 0
    %1071 = vmatpush1.bf16.msra.mxu0 0
    %1072 = vmatprep.subr.bf16.mxu0 0
    %1073 = vmatpush1.bf16.msra.mxu0 0
    %1074 = vmatprep.subr.bf16.mxu0 0
    %1075 = vmatpush1.bf16.msra.mxu0 0
    %1076 = vmatprep.subr.bf16.mxu0 0
    %1077 = vmatpush1.bf16.msra.mxu0 0
    %1078 = vmatprep.subr.bf16.mxu0 0
    %1079 = vmatpush1.bf16.msra.mxu0 0
    %1080 = vmatprep.mubr.bf16.mxu0 0
    %1081 = vmatmul.mubr.bf16.gmra.mrb[0].mxu0 %v1047
    %v1082 = vpop.f32.mrb[0].mxu0
    %v1083 = vadd.f32 %v269, %v1082
    %v1084 = vpop.f32.mrb[0].mxu0
    %v1085 = vadd.f32 %v273, %v1084
    %v1086 = vpop.f32.mrb[0].mxu0
    %v1087 = vpop.f32.mrb[0].mxu0
    %1088 = vdwg.mxu0
    %s1089 = scalar_lea.vmem [#allocation2], 48
    %v1090 = vld [vmem:[%s1089] sm:$0xff]
    %v1091 = vadd.f32 %v1090, %v1083
    %v1092 = vxor.u32 %v1091, 2147483648
    %v1093 = vmul.f32 %v1092, 1.442695
    %v1094 = vpow.pop %v1093
    %v1095 = vadd.f32 %v1094, 1.0
    %v1096 = vrcp.pop %v1095
    %v1097 = vmul.f32 1.0, %v1096
    %1099 = vrot.lane.b32.xlu0 %v1083, 64
    %v1100 = vpop.permute.xlu0 %1099
    %v1102 = vmul.f32 %v1097, %v1100
    %1104 = vrot.lane.b32.xlu0 %v1102, 64
    %v1105 = vpop.permute.xlu0 %1104
    %v1107 = vadd.f32 %v1090, %v1105
    %v1108 = vtanh.pop %v1107
    %v1109 = vsub.f32 1.0, %v1097
    %1111 = vrot.lane.b32.xlu0 %v1108, 96
    %v1112 = vpop.permute.xlu0 %1111
    %v1114 = vmul.f32 %v1109, %v1112
    %1116 = vrot.lane.b32.xlu0 %v1046, 32
    %v1117 = vpop.permute.xlu0 %1116
    %v1119 = vmul.f32 %v1097, %v1117
    %v1120 = vadd.f32 %v1114, %v1119
    %s1121 = scalar_lea.vmem [#allocation3], 8
    %v1122 = vld [vmem:[%s1121] sm:$0xff]
    %v1123 = vadd.f32 %v1122, %v1085
    %v1124 = vxor.u32 %v1123, 2147483648
    %v1125 = vmul.f32 %v1124, 1.442695
    %v1126 = vpow.pop %v1125
    %v1127 = vadd.f32 %v1126, 1.0
    %v1128 = vrcp.pop %v1127
    %v1129 = vmul.f32 1.0, %v1128
    %1131 = vrot.lane.b32.xlu0 %v1085, 64
    %v1132 = vpop.permute.xlu0 %1131
    %v1134 = vmul.f32 %v1129, %v1132
    %1136 = vrot.lane.b32.xlu0 %v1134, 64
    %v1137 = vpop.permute.xlu0 %1136
    %v1139 = vadd.f32 %v1122, %v1137
    %v1140 = vtanh.pop %v1139
    %v1141 = vsub.f32 1.0, %v1129
    %1143 = vrot.lane.b32.xlu0 %v1140, 96
    %v1144 = vpop.permute.xlu0 %1143
    %v1146 = vmul.f32 %v1141, %v1144
    %v1147 = vmul.f32 %v1129, %v1046
    %v1148 = vadd.f32 %v1146, %v1147
    %1150 = vrot.lane.b32.xlu0 %v1120, 96
    %v1151 = vpop.permute.xlu0 %1150
    %s1153 = scalar_lea.vmem [#allocation4], 48
    %1154 = vst.msk [vmem:[%s1153] sm:$0xff] %vm456, %v1151
    %1156 = vrot.lane.b32.xlu0 %v1148, 96
    %v1157 = vpop.permute.xlu0 %1156
    %s1159 = scalar_lea.vmem [#allocation5], 8
    %1160 = vst.msk [vmem:[%s1159] sm:$0xff] %vm456, %v1157
    %v1161 = vsel %vm456, %v1151, %v1148
    %v1162 = vsel %vm465, %v1161, 0.0
    %v1163 = vpack.c.bf16 %v1162, %v1162
    %1164 = vmatprep.subr.bf16.mxu0 %v325
    %1165 = vmatpush1.bf16.msra.mxu0 %v324
    %1166 = vmatprep.subr.bf16.mxu0 %v327
    %1167 = vmatpush1.bf16.msra.mxu0 %v326
    %1168 = vmatprep.subr.bf16.mxu0 %v329
    %1169 = vmatpush1.bf16.msra.mxu0 %v328
    %1170 = vmatprep.subr.bf16.mxu0 %v331
    %1171 = vmatpush1.bf16.msra.mxu0 %v330
    %1172 = vmatprep.subr.bf16.mxu0 %v333
    %1173 = vmatpush1.bf16.msra.mxu0 %v332
    %1174 = vmatprep.subr.bf16.mxu0 %v335
    %1175 = vmatpush1.bf16.msra.mxu0 %v334
    %1176 = vmatprep.subr.bf16.mxu0 %v337
    %1177 = vmatpush1.bf16.msra.mxu0 %v336
    %1178 = vmatprep.subr.bf16.mxu0 %v339
    %1179 = vmatpush1.bf16.msra.mxu0 %v338
    %1180 = vmatprep.subr.bf16.mxu0 0
    %1181 = vmatpush1.bf16.msra.mxu0 0
    %1182 = vmatprep.subr.bf16.mxu0 0
    %1183 = vmatpush1.bf16.msra.mxu0 0
    %1184 = vmatprep.subr.bf16.mxu0 0
    %1185 = vmatpush1.bf16.msra.mxu0 0
    %1186 = vmatprep.subr.bf16.mxu0 0
    %1187 = vmatpush1.bf16.msra.mxu0 0
    %1188 = vmatprep.subr.bf16.mxu0 0
    %1189 = vmatpush1.bf16.msra.mxu0 0
    %1190 = vmatprep.subr.bf16.mxu0 0
    %1191 = vmatpush1.bf16.msra.mxu0 0
    %1192 = vmatprep.subr.bf16.mxu0 0
    %1193 = vmatpush1.bf16.msra.mxu0 0
    %1194 = vmatprep.subr.bf16.mxu0 0
    %1195 = vmatpush1.bf16.msra.mxu0 0
    %1196 = vmatprep.mubr.bf16.mxu0 0
    %1197 = vmatmul.mubr.bf16.gmra.mrb[0].mxu0 %v1163
    %v1198 = vpop.f32.mrb[0].mxu0
    %v1199 = vadd.f32 %v269, %v1198
    %v1200 = vpop.f32.mrb[0].mxu0
    %v1201 = vadd.f32 %v273, %v1200
    %v1202 = vpop.f32.mrb[0].mxu0
    %v1203 = vpop.f32.mrb[0].mxu0
    %1204 = vdwg.mxu0
    %s1205 = scalar_lea.vmem [#allocation2], 56
    %v1206 = vld [vmem:[%s1205] sm:$0xff]
    %v1207 = vadd.f32 %v1206, %v1199
    %v1208 = vxor.u32 %v1207, 2147483648
    %v1209 = vmul.f32 %v1208, 1.442695
    %v1210 = vpow.pop %v1209
    %v1211 = vadd.f32 %v1210, 1.0
    %v1212 = vrcp.pop %v1211
    %v1213 = vmul.f32 1.0, %v1212
    %1215 = vrot.lane.b32.xlu0 %v1199, 64
    %v1216 = vpop.permute.xlu0 %1215
    %v1218 = vmul.f32 %v1213, %v1216
    %1220 = vrot.lane.b32.xlu0 %v1218, 64
    %v1221 = vpop.permute.xlu0 %1220
    %v1223 = vadd.f32 %v1206, %v1221
    %v1224 = vtanh.pop %v1223
    %v1225 = vsub.f32 1.0, %v1213
    %1227 = vrot.lane.b32.xlu0 %v1224, 96
    %v1228 = vpop.permute.xlu0 %1227
    %v1230 = vmul.f32 %v1225, %v1228
    %1232 = vrot.lane.b32.xlu0 %v1162, 32
    %v1233 = vpop.permute.xlu0 %1232
    %v1235 = vmul.f32 %v1213, %v1233
    %v1236 = vadd.f32 %v1230, %v1235
    %v1237 = vld [vmem:[#allocation3] sm:$0xff]
    %v1238 = vadd.f32 %v1237, %v1201
    %v1239 = vxor.u32 %v1238, 2147483648
    %v1240 = vmul.f32 %v1239, 1.442695
    %v1241 = vpow.pop %v1240
    %v1242 = vadd.f32 %v1241, 1.0
    %v1243 = vrcp.pop %v1242
    %v1244 = vmul.f32 1.0, %v1243
    %1246 = vrot.lane.b32.xlu0 %v1201, 64
    %v1247 = vpop.permute.xlu0 %1246
    %v1249 = vmul.f32 %v1244, %v1247
    %1251 = vrot.lane.b32.xlu0 %v1249, 64
    %v1252 = vpop.permute.xlu0 %1251
    %v1254 = vadd.f32 %v1237, %v1252
    %v1255 = vtanh.pop %v1254
    %v1256 = vsub.f32 1.0, %v1244
    %1258 = vrot.lane.b32.xlu0 %v1255, 96
    %v1259 = vpop.permute.xlu0 %1258
    %v1261 = vmul.f32 %v1256, %v1259
    %v1262 = vmul.f32 %v1244, %v1162
    %v1263 = vadd.f32 %v1261, %v1262
    %1265 = vrot.lane.b32.xlu0 %v1236, 96
    %v1266 = vpop.permute.xlu0 %1265
    %s1268 = scalar_lea.vmem [#allocation4], 56
    %1269 = vst.msk [vmem:[%s1268] sm:$0xff] %vm456, %v1266
    %1271 = vrot.lane.b32.xlu0 %v1263, 96
    %v1272 = vpop.permute.xlu0 %1271
    %1274 = vst.msk [vmem:[#allocation5] sm:$0xff] %vm456, %v1272
    %v1275 = vsel %vm456, %v1266, %v1263
    %v1276 = vsel %vm465, %v1275, 0.0
    %v1277 = vld [vmem:[#allocation4] sm:$0xff]
    %v1278 = vld [vmem:[#allocation4 + $0x8] sm:$0xff]
    %v1279 = vld [vmem:[#allocation4 + $0x10] sm:$0xff]
    %v1280 = vld [vmem:[#allocation4 + $0x18] sm:$0xff]
    %v1281 = vld [vmem:[#allocation4 + $0x20] sm:$0xff]
    %v1282 = vld [vmem:[#allocation4 + $0x28] sm:$0xff]
    %v1283 = vld [vmem:[#allocation4 + $0x30] sm:$0xff]
    %v1284 = vld [vmem:[#allocation4 + $0x38] sm:$0xff]
    %v1285 = vld [vmem:[#allocation5] sm:$0xff]
    %v1286 = vld [vmem:[#allocation5 + $0x8] sm:$0xff]
    %v1287 = vld [vmem:[#allocation5 + $0x10] sm:$0xff]
    %v1288 = vld [vmem:[#allocation5 + $0x18] sm:$0xff]
    %v1289 = vld [vmem:[#allocation5 + $0x20] sm:$0xff]
    %v1290 = vld [vmem:[#allocation5 + $0x28] sm:$0xff]
    %v1291 = vld [vmem:[#allocation5 + $0x30] sm:$0xff]
    %v1292 = vld [vmem:[#allocation5 + $0x38] sm:$0xff]
    %1301 = vrot.lane.b32.xlu0 %v1285, 32
    %v1302 = vpop.permute.xlu0 %1301
    %1303 = vrot.lane.b32.xlu0 %v1286, 32
    %v1304 = vpop.permute.xlu0 %1303
    %1305 = vrot.lane.b32.xlu0 %v1287, 32
    %v1306 = vpop.permute.xlu0 %1305
    %1307 = vrot.lane.b32.xlu0 %v1288, 32
    %v1308 = vpop.permute.xlu0 %1307
    %1309 = vrot.lane.b32.xlu0 %v1289, 32
    %v1310 = vpop.permute.xlu0 %1309
    %1311 = vrot.lane.b32.xlu0 %v1290, 32
    %v1312 = vpop.permute.xlu0 %1311
    %1313 = vrot.lane.b32.xlu0 %v1291, 32
    %v1314 = vpop.permute.xlu0 %1313
    %1315 = vrot.lane.b32.xlu0 %v1292, 32
    %v1316 = vpop.permute.xlu0 %1315
    %v1325 = vsel %vm456, %v1277, %v1302
    %v1326 = vsel %vm456, %v1278, %v1304
    %v1327 = vsel %vm456, %v1279, %v1306
    %v1328 = vsel %vm456, %v1280, %v1308
    %v1329 = vsel %vm456, %v1281, %v1310
    %v1330 = vsel %vm456, %v1282, %v1312
    %v1331 = vsel %vm456, %v1283, %v1314
    %v1332 = vsel %vm456, %v1284, %v1316
    %v1333 = vsel %vm465, %v1325, 0.0
    %v1334 = vsel %vm465, %v1326, 0.0
    %v1335 = vsel %vm465, %v1327, 0.0
    %v1336 = vsel %vm465, %v1328, 0.0
    %v1337 = vsel %vm465, %v1329, 0.0
    %v1338 = vsel %vm465, %v1330, 0.0
    %v1339 = vsel %vm465, %v1331, 0.0
    %v1340 = vsel %vm465, %v1332, 0.0
    %v1341 = vpack.c.bf16 %v1334, %v1333
    %v1342 = vpack.c.bf16 %v1336, %v1335
    %v1343 = vpack.c.bf16 %v1338, %v1337
    %v1344 = vpack.c.bf16 %v1340, %v1339
    %v1345 = vld [vmem:[#allocation8] sm:$0xff]
    %v1346 = vld [vmem:[#allocation8 + $0x8] sm:$0xff]
    %v1347 = vld [vmem:[#allocation8 + $0x10] sm:$0xff]
    %v1348 = vld [vmem:[#allocation8 + $0x18] sm:$0xff]
    %v1349 = vld [vmem:[#allocation8 + $0x20] sm:$0xff]
    %v1350 = vld [vmem:[#allocation8 + $0x28] sm:$0xff]
    %v1351 = vld [vmem:[#allocation8 + $0x30] sm:$0xff]
    %v1352 = vld [vmem:[#allocation8 + $0x38] sm:$0xff]
    %v1353 = vld [vmem:[#allocation8 + $0x40] sm:$0xff]
    %v1354 = vld [vmem:[#allocation8 + $0x48] sm:$0xff]
    %v1355 = vld [vmem:[#allocation8 + $0x50] sm:$0xff]
    %v1356 = vld [vmem:[#allocation8 + $0x58] sm:$0xff]
    %v1357 = vld [vmem:[#allocation8 + $0x60] sm:$0xff]
    %v1358 = vld [vmem:[#allocation8 + $0x68] sm:$0xff]
    %v1359 = vld [vmem:[#allocation8 + $0x70] sm:$0xff]
    %v1360 = vld [vmem:[#allocation8 + $0x78] sm:$0xff]
    %v1361 = vld [vmem:[%s7] sm:$0x3]
    %v1363 = vlaneseq
    %v1364 = vshrl.u32 %v1363, 7
    %v1365 = vsub.s32 0, %v1364
    %v1366 = vrot.slane %v1361, %v1365
    %v1367 = vlaneseq
    %v1368 = vshrl.u32 %v1367, 7
    %v1369 = vsub.s32 1, %v1368
    %v1370 = vrot.slane %v1361, %v1369
    %v1389 = vunpack.c.l.b16 %v1345
    %v1390 = vunpack.c.h.b16 %v1345
    %v1391 = vunpack.c.l.b16 %v1346
    %v1392 = vunpack.c.h.b16 %v1346
    %v1393 = vunpack.c.l.b16 %v1347
    %v1394 = vunpack.c.h.b16 %v1347
    %v1395 = vunpack.c.l.b16 %v1348
    %v1396 = vunpack.c.h.b16 %v1348
    %v1397 = vunpack.c.l.b16 %v1349
    %v1398 = vunpack.c.h.b16 %v1349
    %v1399 = vunpack.c.l.b16 %v1350
    %v1400 = vunpack.c.h.b16 %v1350
    %v1401 = vunpack.c.l.b16 %v1351
    %v1402 = vunpack.c.h.b16 %v1351
    %v1403 = vunpack.c.l.b16 %v1352
    %v1404 = vunpack.c.h.b16 %v1352
    %v1405 = vunpack.c.l.b16 %v1353
    %v1406 = vunpack.c.h.b16 %v1353
    %v1407 = vunpack.c.l.b16 %v1354
    %v1408 = vunpack.c.h.b16 %v1354
    %v1409 = vunpack.c.l.b16 %v1355
    %v1410 = vunpack.c.h.b16 %v1355
    %v1411 = vunpack.c.l.b16 %v1356
    %v1412 = vunpack.c.h.b16 %v1356
    %v1413 = vunpack.c.l.b16 %v1357
    %v1414 = vunpack.c.h.b16 %v1357
    %v1415 = vunpack.c.l.b16 %v1358
    %v1416 = vunpack.c.h.b16 %v1358
    %v1417 = vunpack.c.l.b16 %v1359
    %v1418 = vunpack.c.h.b16 %v1359
    %v1419 = vunpack.c.l.b16 %v1360
    %v1420 = vunpack.c.h.b16 %v1360
    %v1421 = vpack.c.b16 %v1391, %v1389
    %v1422 = vpack.c.b16 %v1392, %v1390
    %v1423 = vpack.c.b16 %v1395, %v1393
    %v1424 = vpack.c.b16 %v1396, %v1394
    %v1425 = vpack.c.b16 %v1399, %v1397
    %v1426 = vpack.c.b16 %v1400, %v1398
    %v1427 = vpack.c.b16 %v1403, %v1401
    %v1428 = vpack.c.b16 %v1404, %v1402
    %v1429 = vpack.c.b16 %v1407, %v1405
    %v1430 = vpack.c.b16 %v1408, %v1406
    %v1431 = vpack.c.b16 %v1411, %v1409
    %v1432 = vpack.c.b16 %v1412, %v1410
    %v1433 = vpack.c.b16 %v1415, %v1413
    %v1434 = vpack.c.b16 %v1416, %v1414
    %v1435 = vpack.c.b16 %v1419, %v1417
    %v1436 = vpack.c.b16 %v1420, %v1418
    %1453 = vmatprep.subr.bf16.mxu0 %v1422
    %1454 = vmatpush1.bf16.msra.mxu0 %v1421
    %1455 = vmatprep.subr.bf16.mxu0 %v1424
    %1456 = vmatpush1.bf16.msra.mxu0 %v1423
    %1457 = vmatprep.subr.bf16.mxu0 %v1426
    %1458 = vmatpush1.bf16.msra.mxu0 %v1425
    %1459 = vmatprep.subr.bf16.mxu0 %v1428
    %1460 = vmatpush1.bf16.msra.mxu0 %v1427
    %1461 = vmatprep.subr.bf16.mxu0 %v1430
    %1462 = vmatpush1.bf16.msra.mxu0 %v1429
    %1463 = vmatprep.subr.bf16.mxu0 %v1432
    %1464 = vmatpush1.bf16.msra.mxu0 %v1431
    %1465 = vmatprep.subr.bf16.mxu0 %v1434
    %1466 = vmatpush1.bf16.msra.mxu0 %v1433
    %1467 = vmatprep.subr.bf16.mxu0 %v1436
    %1468 = vmatpush1.bf16.msra.mxu0 %v1435
    %1469 = vmatprep.subr.bf16.mxu0 0
    %1470 = vmatpush1.bf16.msra.mxu0 0
    %1471 = vmatprep.subr.bf16.mxu0 0
    %1472 = vmatpush1.bf16.msra.mxu0 0
    %1473 = vmatprep.subr.bf16.mxu0 0
    %1474 = vmatpush1.bf16.msra.mxu0 0
    %1475 = vmatprep.subr.bf16.mxu0 0
    %1476 = vmatpush1.bf16.msra.mxu0 0
    %1477 = vmatprep.subr.bf16.mxu0 0
    %1478 = vmatpush1.bf16.msra.mxu0 0
    %1479 = vmatprep.subr.bf16.mxu0 0
    %1480 = vmatpush1.bf16.msra.mxu0 0
    %1481 = vmatprep.subr.bf16.mxu0 0
    %1482 = vmatpush1.bf16.msra.mxu0 0
    %1483 = vmatprep.subr.bf16.mxu0 0
    %1484 = vmatpush1.bf16.msra.mxu0 0
    %1485 = vmatprep.mubr.bf16.mxu0 0
    %1486 = vmatmul.mubr.bf16.gmra.mrb[0].mxu0 %v1341
    %v1487 = vpop.f32.mrb[0].mxu0
    %v1488 = vadd.f32 %v1366, %v1487
    %v1489 = vpop.f32.mrb[0].mxu0
    %v1490 = vadd.f32 %v1370, %v1489
    %v1491 = vpop.f32.mrb[0].mxu0
    %v1492 = vadd.f32 %v1366, %v1491
    %v1493 = vpop.f32.mrb[0].mxu0
    %v1494 = vadd.f32 %v1370, %v1493
    %1495 = vmatprep.mubr.bf16.mxu0 0
    %1496 = vmatmul.mubr.bf16.gmra.mrb[0].mxu0 %v1342
    %v1497 = vpop.f32.mrb[0].mxu0
    %v1498 = vadd.f32 %v1366, %v1497
    %v1499 = vpop.f32.mrb[0].mxu0
    %v1500 = vadd.f32 %v1370, %v1499
    %v1501 = vpop.f32.mrb[0].mxu0
    %v1502 = vadd.f32 %v1366, %v1501
    %v1503 = vpop.f32.mrb[0].mxu0
    %v1504 = vadd.f32 %v1370, %v1503
    %1505 = vmatprep.mubr.bf16.mxu0 0
    %1506 = vmatmul.mubr.bf16.gmra.mrb[0].mxu0 %v1343
    %v1507 = vpop.f32.mrb[0].mxu0
    %v1508 = vadd.f32 %v1366, %v1507
    %v1509 = vpop.f32.mrb[0].mxu0
    %v1510 = vadd.f32 %v1370, %v1509
    %v1511 = vpop.f32.mrb[0].mxu0
    %v1512 = vadd.f32 %v1366, %v1511
    %v1513 = vpop.f32.mrb[0].mxu0
    %v1514 = vadd.f32 %v1370, %v1513
    %1515 = vmatprep.mubr.bf16.mxu0 0
    %1516 = vmatmul.mubr.bf16.gmra.mrb[0].mxu0 %v1344
    %v1517 = vpop.f32.mrb[0].mxu0
    %v1518 = vadd.f32 %v1366, %v1517
    %v1519 = vpop.f32.mrb[0].mxu0
    %v1520 = vadd.f32 %v1370, %v1519
    %v1521 = vpop.f32.mrb[0].mxu0
    %v1522 = vadd.f32 %v1366, %v1521
    %v1523 = vpop.f32.mrb[0].mxu0
    %v1524 = vadd.f32 %v1370, %v1523
    %1525 = vdwg.mxu0
    %1526 = vst [vmem:[#allocation2] sm:$0xff] %v1488
    %1527 = vst [vmem:[#allocation2 + $0x8] sm:$0xff] %v1492
    %1528 = vst [vmem:[#allocation2 + $0x10] sm:$0xff] %v1498
    %1529 = vst [vmem:[#allocation2 + $0x18] sm:$0xff] %v1502
    %1530 = vst [vmem:[#allocation2 + $0x20] sm:$0xff] %v1508
    %1531 = vst [vmem:[#allocation2 + $0x28] sm:$0xff] %v1512
    %1532 = vst [vmem:[#allocation2 + $0x30] sm:$0xff] %v1518
    %1533 = vst [vmem:[#allocation2 + $0x38] sm:$0xff] %v1522
    %1534 = vst [vmem:[#allocation3] sm:$0xff] %v1490
    %1535 = vst [vmem:[#allocation3 + $0x8] sm:$0xff] %v1494
    %1536 = vst [vmem:[#allocation3 + $0x10] sm:$0xff] %v1500
    %1537 = vst [vmem:[#allocation3 + $0x18] sm:$0xff] %v1504
    %1538 = vst [vmem:[#allocation3 + $0x20] sm:$0xff] %v1510
    %1539 = vst [vmem:[#allocation3 + $0x28] sm:$0xff] %v1514
    %1540 = vst [vmem:[#allocation3 + $0x30] sm:$0xff] %v1520
    %1541 = vst [vmem:[#allocation3 + $0x38] sm:$0xff] %v1524
    %v1542 = vld [vmem:[#allocation10] sm:$0xff]
    %v1543 = vld [vmem:[#allocation10 + $0x8] sm:$0xff]
    %v1544 = vld [vmem:[#allocation10 + $0x10] sm:$0xff]
    %v1545 = vld [vmem:[#allocation10 + $0x18] sm:$0xff]
    %v1546 = vld [vmem:[#allocation10 + $0x20] sm:$0xff]
    %v1547 = vld [vmem:[#allocation10 + $0x28] sm:$0xff]
    %v1548 = vld [vmem:[#allocation10 + $0x30] sm:$0xff]
    %v1549 = vld [vmem:[#allocation10 + $0x38] sm:$0xff]
    %v1550 = vld [vmem:[#allocation10 + $0x40] sm:$0xff]
    %v1551 = vld [vmem:[#allocation10 + $0x48] sm:$0xff]
    %v1552 = vld [vmem:[#allocation10 + $0x50] sm:$0xff]
    %v1553 = vld [vmem:[#allocation10 + $0x58] sm:$0xff]
    %v1554 = vld [vmem:[#allocation10 + $0x60] sm:$0xff]
    %v1555 = vld [vmem:[#allocation10 + $0x68] sm:$0xff]
    %v1556 = vld [vmem:[#allocation10 + $0x70] sm:$0xff]
    %v1557 = vld [vmem:[#allocation10 + $0x78] sm:$0xff]
    %v1558 = vld [vmem:[%s8] sm:$0x3]
    %v1559 = vpack.c.bf16 %v1276, %v1276
    %v1561 = vlaneseq
    %v1562 = vshrl.u32 %v1561, 7
    %v1563 = vsub.s32 0, %v1562
    %v1564 = vrot.slane %v1558, %v1563
    %v1565 = vlaneseq
    %v1566 = vshrl.u32 %v1565, 7
    %v1567 = vsub.s32 1, %v1566
    %v1568 = vrot.slane %v1558, %v1567
    %v1587 = vunpack.c.l.b16 %v1542
    %v1588 = vunpack.c.h.b16 %v1542
    %v1589 = vunpack.c.l.b16 %v1543
    %v1590 = vunpack.c.h.b16 %v1543
    %v1591 = vunpack.c.l.b16 %v1544
    %v1592 = vunpack.c.h.b16 %v1544
    %v1593 = vunpack.c.l.b16 %v1545
    %v1594 = vunpack.c.h.b16 %v1545
    %v1595 = vunpack.c.l.b16 %v1546
    %v1596 = vunpack.c.h.b16 %v1546
    %v1597 = vunpack.c.l.b16 %v1547
    %v1598 = vunpack.c.h.b16 %v1547
    %v1599 = vunpack.c.l.b16 %v1548
    %v1600 = vunpack.c.h.b16 %v1548
    %v1601 = vunpack.c.l.b16 %v1549
    %v1602 = vunpack.c.h.b16 %v1549
    %v1603 = vunpack.c.l.b16 %v1550
    %v1604 = vunpack.c.h.b16 %v1550
    %v1605 = vunpack.c.l.b16 %v1551
    %v1606 = vunpack.c.h.b16 %v1551
    %v1607 = vunpack.c.l.b16 %v1552
    %v1608 = vunpack.c.h.b16 %v1552
    %v1609 = vunpack.c.l.b16 %v1553
    %v1610 = vunpack.c.h.b16 %v1553
    %v1611 = vunpack.c.l.b16 %v1554
    %v1612 = vunpack.c.h.b16 %v1554
    %v1613 = vunpack.c.l.b16 %v1555
    %v1614 = vunpack.c.h.b16 %v1555
    %v1615 = vunpack.c.l.b16 %v1556
    %v1616 = vunpack.c.h.b16 %v1556
    %v1617 = vunpack.c.l.b16 %v1557
    %v1618 = vunpack.c.h.b16 %v1557
    %v1619 = vpack.c.b16 %v1589, %v1587
    %v1620 = vpack.c.b16 %v1590, %v1588
    %v1621 = vpack.c.b16 %v1593, %v1591
    %v1622 = vpack.c.b16 %v1594, %v1592
    %v1623 = vpack.c.b16 %v1597, %v1595
    %v1624 = vpack.c.b16 %v1598, %v1596
    %v1625 = vpack.c.b16 %v1601, %v1599
    %v1626 = vpack.c.b16 %v1602, %v1600
    %v1627 = vpack.c.b16 %v1605, %v1603
    %v1628 = vpack.c.b16 %v1606, %v1604
    %v1629 = vpack.c.b16 %v1609, %v1607
    %v1630 = vpack.c.b16 %v1610, %v1608
    %v1631 = vpack.c.b16 %v1613, %v1611
    %v1632 = vpack.c.b16 %v1614, %v1612
    %v1633 = vpack.c.b16 %v1617, %v1615
    %v1634 = vpack.c.b16 %v1618, %v1616
    %1651 = vmatprep.subr.bf16.mxu0 %v1620
    %1652 = vmatpush1.bf16.msra.mxu0 %v1619
    %1653 = vmatprep.subr.bf16.mxu0 %v1622
    %1654 = vmatpush1.bf16.msra.mxu0 %v1621
    %1655 = vmatprep.subr.bf16.mxu0 %v1624
    %1656 = vmatpush1.bf16.msra.mxu0 %v1623
    %1657 = vmatprep.subr.bf16.mxu0 %v1626
    %1658 = vmatpush1.bf16.msra.mxu0 %v1625
    %1659 = vmatprep.subr.bf16.mxu0 %v1628
    %1660 = vmatpush1.bf16.msra.mxu0 %v1627
    %1661 = vmatprep.subr.bf16.mxu0 %v1630
    %1662 = vmatpush1.bf16.msra.mxu0 %v1629
    %1663 = vmatprep.subr.bf16.mxu0 %v1632
    %1664 = vmatpush1.bf16.msra.mxu0 %v1631
    %1665 = vmatprep.subr.bf16.mxu0 %v1634
    %1666 = vmatpush1.bf16.msra.mxu0 %v1633
    %1667 = vmatprep.subr.bf16.mxu0 0
    %1668 = vmatpush1.bf16.msra.mxu0 0
    %1669 = vmatprep.subr.bf16.mxu0 0
    %1670 = vmatpush1.bf16.msra.mxu0 0
    %1671 = vmatprep.subr.bf16.mxu0 0
    %1672 = vmatpush1.bf16.msra.mxu0 0
    %1673 = vmatprep.subr.bf16.mxu0 0
    %1674 = vmatpush1.bf16.msra.mxu0 0
    %1675 = vmatprep.subr.bf16.mxu0 0
    %1676 = vmatpush1.bf16.msra.mxu0 0
    %1677 = vmatprep.subr.bf16.mxu0 0
    %1678 = vmatpush1.bf16.msra.mxu0 0
    %1679 = vmatprep.subr.bf16.mxu0 0
    %1680 = vmatpush1.bf16.msra.mxu0 0
    %1681 = vmatprep.subr.bf16.mxu0 0
    %1682 = vmatpush1.bf16.msra.mxu0 0
    %1683 = vmatprep.mubr.bf16.mxu0 0
    %1684 = vmatmul.mubr.bf16.gmra.mrb[0].mxu0 %v1559
    %v1685 = vpop.f32.mrb[0].mxu0
    %v1686 = vadd.f32 %v1564, %v1685
    %v1687 = vpop.f32.mrb[0].mxu0
    %v1688 = vadd.f32 %v1568, %v1687
    %v1689 = vpop.f32.mrb[0].mxu0
    %v1690 = vpop.f32.mrb[0].mxu0
    %1691 = vdwg.mxu0
    %v1692 = vld [vmem:[#allocation2] sm:$0xff]
    %v1693 = vadd.f32 %v1692, %v1686
    %v1694 = vxor.u32 %v1693, 2147483648
    %v1695 = vmul.f32 %v1694, 1.442695
    %v1696 = vpow.pop %v1695
    %v1697 = vadd.f32 %v1696, 1.0
    %v1698 = vrcp.pop %v1697
    %v1699 = vmul.f32 1.0, %v1698
    %1701 = vrot.lane.b32.xlu0 %v1686, 64
    %v1702 = vpop.permute.xlu0 %1701
    %v1704 = vmul.f32 %v1699, %v1702
    %1706 = vrot.lane.b32.xlu0 %v1704, 64
    %v1707 = vpop.permute.xlu0 %1706
    %v1709 = vadd.f32 %v1692, %v1707
    %v1710 = vtanh.pop %v1709
    %v1711 = vsub.f32 1.0, %v1699
    %1713 = vrot.lane.b32.xlu0 %v1710, 96
    %v1714 = vpop.permute.xlu0 %1713
    %v1716 = vmul.f32 %v1711, %v1714
    %1718 = vrot.lane.b32.xlu0 %v1276, 32
    %v1719 = vpop.permute.xlu0 %1718
    %v1721 = vmul.f32 %v1699, %v1719
    %v1722 = vadd.f32 %v1716, %v1721
    %v1723 = vld [vmem:[%s424] sm:$0xff]
    %v1724 = vadd.f32 %v1723, %v1688
    %v1725 = vxor.u32 %v1724, 2147483648
    %v1726 = vmul.f32 %v1725, 1.442695
    %v1727 = vpow.pop %v1726
    %v1728 = vadd.f32 %v1727, 1.0
    %v1729 = vrcp.pop %v1728
    %v1730 = vmul.f32 1.0, %v1729
    %1732 = vrot.lane.b32.xlu0 %v1688, 64
    %v1733 = vpop.permute.xlu0 %1732
    %v1735 = vmul.f32 %v1730, %v1733
    %1737 = vrot.lane.b32.xlu0 %v1735, 64
    %v1738 = vpop.permute.xlu0 %1737
    %v1740 = vadd.f32 %v1723, %v1738
    %v1741 = vtanh.pop %v1740
    %v1742 = vsub.f32 1.0, %v1730
    %1744 = vrot.lane.b32.xlu0 %v1741, 96
    %v1745 = vpop.permute.xlu0 %1744
    %v1747 = vmul.f32 %v1742, %v1745
    %v1748 = vmul.f32 %v1730, %v1276
    %v1749 = vadd.f32 %v1747, %v1748
    %1751 = vrot.lane.b32.xlu0 %v1722, 96
    %v1752 = vpop.permute.xlu0 %1751
    %1754 = vst.msk [vmem:[#allocation4] sm:$0xff] %vm456, %v1752
    %1756 = vrot.lane.b32.xlu0 %v1749, 96
    %v1757 = vpop.permute.xlu0 %1756
    %1759 = vst.msk [vmem:[%s462] sm:$0xff] %vm456, %v1757
    %v1760 = vsel %vm456, %v1752, %v1749
    %v1761 = vsel %vm465, %v1760, 0.0
    %v1762 = vpack.c.bf16 %v1761, %v1761
    %1763 = vmatprep.subr.bf16.mxu0 %v1620
    %1764 = vmatpush1.bf16.msra.mxu0 %v1619
    %1765 = vmatprep.subr.bf16.mxu0 %v1622
    %1766 = vmatpush1.bf16.msra.mxu0 %v1621
    %1767 = vmatprep.subr.bf16.mxu0 %v1624
    %1768 = vmatpush1.bf16.msra.mxu0 %v1623
    %1769 = vmatprep.subr.bf16.mxu0 %v1626
    %1770 = vmatpush1.bf16.msra.mxu0 %v1625
    %1771 = vmatprep.subr.bf16.mxu0 %v1628
    %1772 = vmatpush1.bf16.msra.mxu0 %v1627
    %1773 = vmatprep.subr.bf16.mxu0 %v1630
    %1774 = vmatpush1.bf16.msra.mxu0 %v1629
    %1775 = vmatprep.subr.bf16.mxu0 %v1632
    %1776 = vmatpush1.bf16.msra.mxu0 %v1631
    %1777 = vmatprep.subr.bf16.mxu0 %v1634
    %1778 = vmatpush1.bf16.msra.mxu0 %v1633
    %1779 = vmatprep.subr.bf16.mxu0 0
    %1780 = vmatpush1.bf16.msra.mxu0 0
    %1781 = vmatprep.subr.bf16.mxu0 0
    %1782 = vmatpush1.bf16.msra.mxu0 0
    %1783 = vmatprep.subr.bf16.mxu0 0
    %1784 = vmatpush1.bf16.msra.mxu0 0
    %1785 = vmatprep.subr.bf16.mxu0 0
    %1786 = vmatpush1.bf16.msra.mxu0 0
    %1787 = vmatprep.subr.bf16.mxu0 0
    %1788 = vmatpush1.bf16.msra.mxu0 0
    %1789 = vmatprep.subr.bf16.mxu0 0
    %1790 = vmatpush1.bf16.msra.mxu0 0
    %1791 = vmatprep.subr.bf16.mxu0 0
    %1792 = vmatpush1.bf16.msra.mxu0 0
    %1793 = vmatprep.subr.bf16.mxu0 0
    %1794 = vmatpush1.bf16.msra.mxu0 0
    %1795 = vmatprep.mubr.bf16.mxu0 0
    %1796 = vmatmul.mubr.bf16.gmra.mrb[0].mxu0 %v1762
    %v1797 = vpop.f32.mrb[0].mxu0
    %v1798 = vadd.f32 %v1564, %v1797
    %v1799 = vpop.f32.mrb[0].mxu0
    %v1800 = vadd.f32 %v1568, %v1799
    %v1801 = vpop.f32.mrb[0].mxu0
    %v1802 = vpop.f32.mrb[0].mxu0
    %1803 = vdwg.mxu0
    %v1804 = vld [vmem:[%s509] sm:$0xff]
    %v1805 = vadd.f32 %v1804, %v1798
    %v1806 = vxor.u32 %v1805, 2147483648
    %v1807 = vmul.f32 %v1806, 1.442695
    %v1808 = vpow.pop %v1807
    %v1809 = vadd.f32 %v1808, 1.0
    %v1810 = vrcp.pop %v1809
    %v1811 = vmul.f32 1.0, %v1810
    %1813 = vrot.lane.b32.xlu0 %v1798, 64
    %v1814 = vpop.permute.xlu0 %1813
    %v1816 = vmul.f32 %v1811, %v1814
    %1818 = vrot.lane.b32.xlu0 %v1816, 64
    %v1819 = vpop.permute.xlu0 %1818
    %v1821 = vadd.f32 %v1804, %v1819
    %v1822 = vtanh.pop %v1821
    %v1823 = vsub.f32 1.0, %v1811
    %1825 = vrot.lane.b32.xlu0 %v1822, 96
    %v1826 = vpop.permute.xlu0 %1825
    %v1828 = vmul.f32 %v1823, %v1826
    %1830 = vrot.lane.b32.xlu0 %v1761, 32
    %v1831 = vpop.permute.xlu0 %1830
    %v1833 = vmul.f32 %v1811, %v1831
    %v1834 = vadd.f32 %v1828, %v1833
    %v1835 = vld [vmem:[%s541] sm:$0xff]
    %v1836 = vadd.f32 %v1835, %v1800
    %v1837 = vxor.u32 %v1836, 2147483648
    %v1838 = vmul.f32 %v1837, 1.442695
    %v1839 = vpow.pop %v1838
    %v1840 = vadd.f32 %v1839, 1.0
    %v1841 = vrcp.pop %v1840
    %v1842 = vmul.f32 1.0, %v1841
    %1844 = vrot.lane.b32.xlu0 %v1800, 64
    %v1845 = vpop.permute.xlu0 %1844
    %v1847 = vmul.f32 %v1842, %v1845
    %1849 = vrot.lane.b32.xlu0 %v1847, 64
    %v1850 = vpop.permute.xlu0 %1849
    %v1852 = vadd.f32 %v1835, %v1850
    %v1853 = vtanh.pop %v1852
    %v1854 = vsub.f32 1.0, %v1842
    %1856 = vrot.lane.b32.xlu0 %v1853, 96
    %v1857 = vpop.permute.xlu0 %1856
    %v1859 = vmul.f32 %v1854, %v1857
    %v1860 = vmul.f32 %v1842, %v1761
    %v1861 = vadd.f32 %v1859, %v1860
    %1863 = vrot.lane.b32.xlu0 %v1834, 96
    %v1864 = vpop.permute.xlu0 %1863
    %1866 = vst.msk [vmem:[%s573] sm:$0xff] %vm456, %v1864
    %1868 = vrot.lane.b32.xlu0 %v1861, 96
    %v1869 = vpop.permute.xlu0 %1868
    %1871 = vst.msk [vmem:[%s579] sm:$0xff] %vm456, %v1869
    %v1872 = vsel %vm456, %v1864, %v1861
    %v1873 = vsel %vm465, %v1872, 0.0
    %v1874 = vpack.c.bf16 %v1873, %v1873
    %1875 = vmatprep.subr.bf16.mxu0 %v1620
    %1876 = vmatpush1.bf16.msra.mxu0 %v1619
    %1877 = vmatprep.subr.bf16.mxu0 %v1622
    %1878 = vmatpush1.bf16.msra.mxu0 %v1621
    %1879 = vmatprep.subr.bf16.mxu0 %v1624
    %1880 = vmatpush1.bf16.msra.mxu0 %v1623
    %1881 = vmatprep.subr.bf16.mxu0 %v1626
    %1882 = vmatpush1.bf16.msra.mxu0 %v1625
    %1883 = vmatprep.subr.bf16.mxu0 %v1628
    %1884 = vmatpush1.bf16.msra.mxu0 %v1627
    %1885 = vmatprep.subr.bf16.mxu0 %v1630
    %1886 = vmatpush1.bf16.msra.mxu0 %v1629
    %1887 = vmatprep.subr.bf16.mxu0 %v1632
    %1888 = vmatpush1.bf16.msra.mxu0 %v1631
    %1889 = vmatprep.subr.bf16.mxu0 %v1634
    %1890 = vmatpush1.bf16.msra.mxu0 %v1633
    %1891 = vmatprep.subr.bf16.mxu0 0
    %1892 = vmatpush1.bf16.msra.mxu0 0
    %1893 = vmatprep.subr.bf16.mxu0 0
    %1894 = vmatpush1.bf16.msra.mxu0 0
    %1895 = vmatprep.subr.bf16.mxu0 0
    %1896 = vmatpush1.bf16.msra.mxu0 0
    %1897 = vmatprep.subr.bf16.mxu0 0
    %1898 = vmatpush1.bf16.msra.mxu0 0
    %1899 = vmatprep.subr.bf16.mxu0 0
    %1900 = vmatpush1.bf16.msra.mxu0 0
    %1901 = vmatprep.subr.bf16.mxu0 0
    %1902 = vmatpush1.bf16.msra.mxu0 0
    %1903 = vmatprep.subr.bf16.mxu0 0
    %1904 = vmatpush1.bf16.msra.mxu0 0
    %1905 = vmatprep.subr.bf16.mxu0 0
    %1906 = vmatpush1.bf16.msra.mxu0 0
    %1907 = vmatprep.mubr.bf16.mxu0 0
    %1908 = vmatmul.mubr.bf16.gmra.mrb[0].mxu0 %v1874
    %v1909 = vpop.f32.mrb[0].mxu0
    %v1910 = vadd.f32 %v1564, %v1909
    %v1911 = vpop.f32.mrb[0].mxu0
    %v1912 = vadd.f32 %v1568, %v1911
    %v1913 = vpop.f32.mrb[0].mxu0
    %v1914 = vpop.f32.mrb[0].mxu0
    %1915 = vdwg.mxu0
    %v1916 = vld [vmem:[%s625] sm:$0xff]
    %v1917 = vadd.f32 %v1916, %v1910
    %v1918 = vxor.u32 %v1917, 2147483648
    %v1919 = vmul.f32 %v1918, 1.442695
    %v1920 = vpow.pop %v1919
    %v1921 = vadd.f32 %v1920, 1.0
    %v1922 = vrcp.pop %v1921
    %v1923 = vmul.f32 1.0, %v1922
    %1925 = vrot.lane.b32.xlu0 %v1910, 64
    %v1926 = vpop.permute.xlu0 %1925
    %v1928 = vmul.f32 %v1923, %v1926
    %1930 = vrot.lane.b32.xlu0 %v1928, 64
    %v1931 = vpop.permute.xlu0 %1930
    %v1933 = vadd.f32 %v1916, %v1931
    %v1934 = vtanh.pop %v1933
    %v1935 = vsub.f32 1.0, %v1923
    %1937 = vrot.lane.b32.xlu0 %v1934, 96
    %v1938 = vpop.permute.xlu0 %1937
    %v1940 = vmul.f32 %v1935, %v1938
    %1942 = vrot.lane.b32.xlu0 %v1873, 32
    %v1943 = vpop.permute.xlu0 %1942
    %v1945 = vmul.f32 %v1923, %v1943
    %v1946 = vadd.f32 %v1940, %v1945
    %v1947 = vld [vmem:[%s657] sm:$0xff]
    %v1948 = vadd.f32 %v1947, %v1912
    %v1949 = vxor.u32 %v1948, 2147483648
    %v1950 = vmul.f32 %v1949, 1.442695
    %v1951 = vpow.pop %v1950
    %v1952 = vadd.f32 %v1951, 1.0
    %v1953 = vrcp.pop %v1952
    %v1954 = vmul.f32 1.0, %v1953
    %1956 = vrot.lane.b32.xlu0 %v1912, 64
    %v1957 = vpop.permute.xlu0 %1956
    %v1959 = vmul.f32 %v1954, %v1957
    %1961 = vrot.lane.b32.xlu0 %v1959, 64
    %v1962 = vpop.permute.xlu0 %1961
    %v1964 = vadd.f32 %v1947, %v1962
    %v1965 = vtanh.pop %v1964
    %v1966 = vsub.f32 1.0, %v1954
    %1968 = vrot.lane.b32.xlu0 %v1965, 96
    %v1969 = vpop.permute.xlu0 %1968
    %v1971 = vmul.f32 %v1966, %v1969
    %v1972 = vmul.f32 %v1954, %v1873
    %v1973 = vadd.f32 %v1971, %v1972
    %1975 = vrot.lane.b32.xlu0 %v1946, 96
    %v1976 = vpop.permute.xlu0 %1975
    %1978 = vst.msk [vmem:[%s689] sm:$0xff] %vm456, %v1976
    %1980 = vrot.lane.b32.xlu0 %v1973, 96
    %v1981 = vpop.permute.xlu0 %1980
    %1983 = vst.msk [vmem:[%s695] sm:$0xff] %vm456, %v1981
    %v1984 = vsel %vm456, %v1976, %v1973
    %v1985 = vsel %vm465, %v1984, 0.0
    %v1986 = vpack.c.bf16 %v1985, %v1985
    %1987 = vmatprep.subr.bf16.mxu0 %v1620
    %1988 = vmatpush1.bf16.msra.mxu0 %v1619
    %1989 = vmatprep.subr.bf16.mxu0 %v1622
    %1990 = vmatpush1.bf16.msra.mxu0 %v1621
    %1991 = vmatprep.subr.bf16.mxu0 %v1624
    %1992 = vmatpush1.bf16.msra.mxu0 %v1623
    %1993 = vmatprep.subr.bf16.mxu0 %v1626
    %1994 = vmatpush1.bf16.msra.mxu0 %v1625
    %1995 = vmatprep.subr.bf16.mxu0 %v1628
    %1996 = vmatpush1.bf16.msra.mxu0 %v1627
    %1997 = vmatprep.subr.bf16.mxu0 %v1630
    %1998 = vmatpush1.bf16.msra.mxu0 %v1629
    %1999 = vmatprep.subr.bf16.mxu0 %v1632
    %2000 = vmatpush1.bf16.msra.mxu0 %v1631
    %2001 = vmatprep.subr.bf16.mxu0 %v1634
    %2002 = vmatpush1.bf16.msra.mxu0 %v1633
    %2003 = vmatprep.subr.bf16.mxu0 0
    %2004 = vmatpush1.bf16.msra.mxu0 0
    %2005 = vmatprep.subr.bf16.mxu0 0
    %2006 = vmatpush1.bf16.msra.mxu0 0
    %2007 = vmatprep.subr.bf16.mxu0 0
    %2008 = vmatpush1.bf16.msra.mxu0 0
    %2009 = vmatprep.subr.bf16.mxu0 0
    %2010 = vmatpush1.bf16.msra.mxu0 0
    %2011 = vmatprep.subr.bf16.mxu0 0
    %2012 = vmatpush1.bf16.msra.mxu0 0
    %2013 = vmatprep.subr.bf16.mxu0 0
    %2014 = vmatpush1.bf16.msra.mxu0 0
    %2015 = vmatprep.subr.bf16.mxu0 0
    %2016 = vmatpush1.bf16.msra.mxu0 0
    %2017 = vmatprep.subr.bf16.mxu0 0
    %2018 = vmatpush1.bf16.msra.mxu0 0
    %2019 = vmatprep.mubr.bf16.mxu0 0
    %2020 = vmatmul.mubr.bf16.gmra.mrb[0].mxu0 %v1986
    %v2021 = vpop.f32.mrb[0].mxu0
    %v2022 = vadd.f32 %v1564, %v2021
    %v2023 = vpop.f32.mrb[0].mxu0
    %v2024 = vadd.f32 %v1568, %v2023
    %v2025 = vpop.f32.mrb[0].mxu0
    %v2026 = vpop.f32.mrb[0].mxu0
    %2027 = vdwg.mxu0
    %v2028 = vld [vmem:[%s741] sm:$0xff]
    %v2029 = vadd.f32 %v2028, %v2022
    %v2030 = vxor.u32 %v2029, 2147483648
    %v2031 = vmul.f32 %v2030, 1.442695
    %v2032 = vpow.pop %v2031
    %v2033 = vadd.f32 %v2032, 1.0
    %v2034 = vrcp.pop %v2033
    %v2035 = vmul.f32 1.0, %v2034
    %2037 = vrot.lane.b32.xlu0 %v2022, 64
    %v2038 = vpop.permute.xlu0 %2037
    %v2040 = vmul.f32 %v2035, %v2038
    %2042 = vrot.lane.b32.xlu0 %v2040, 64
    %v2043 = vpop.permute.xlu0 %2042
    %v2045 = vadd.f32 %v2028, %v2043
    %v2046 = vtanh.pop %v2045
    %v2047 = vsub.f32 1.0, %v2035
    %2049 = vrot.lane.b32.xlu0 %v2046, 96
    %v2050 = vpop.permute.xlu0 %2049
    %v2052 = vmul.f32 %v2047, %v2050
    %2054 = vrot.lane.b32.xlu0 %v1985, 32
    %v2055 = vpop.permute.xlu0 %2054
    %v2057 = vmul.f32 %v2035, %v2055
    %v2058 = vadd.f32 %v2052, %v2057
    %v2059 = vld [vmem:[%s773] sm:$0xff]
    %v2060 = vadd.f32 %v2059, %v2024
    %v2061 = vxor.u32 %v2060, 2147483648
    %v2062 = vmul.f32 %v2061, 1.442695
    %v2063 = vpow.pop %v2062
    %v2064 = vadd.f32 %v2063, 1.0
    %v2065 = vrcp.pop %v2064
    %v2066 = vmul.f32 1.0, %v2065
    %2068 = vrot.lane.b32.xlu0 %v2024, 64
    %v2069 = vpop.permute.xlu0 %2068
    %v2071 = vmul.f32 %v2066, %v2069
    %2073 = vrot.lane.b32.xlu0 %v2071, 64
    %v2074 = vpop.permute.xlu0 %2073
    %v2076 = vadd.f32 %v2059, %v2074
    %v2077 = vtanh.pop %v2076
    %v2078 = vsub.f32 1.0, %v2066
    %2080 = vrot.lane.b32.xlu0 %v2077, 96
    %v2081 = vpop.permute.xlu0 %2080
    %v2083 = vmul.f32 %v2078, %v2081
    %v2084 = vmul.f32 %v2066, %v1985
    %v2085 = vadd.f32 %v2083, %v2084
    %2087 = vrot.lane.b32.xlu0 %v2058, 96
    %v2088 = vpop.permute.xlu0 %2087
    %2090 = vst.msk [vmem:[%s805] sm:$0xff] %vm456, %v2088
    %2092 = vrot.lane.b32.xlu0 %v2085, 96
    %v2093 = vpop.permute.xlu0 %2092
    %2095 = vst.msk [vmem:[%s811] sm:$0xff] %vm456, %v2093
    %v2096 = vsel %vm456, %v2088, %v2085
    %v2097 = vsel %vm465, %v2096, 0.0
    %v2098 = vpack.c.bf16 %v2097, %v2097
    %2099 = vmatprep.subr.bf16.mxu0 %v1620
    %2100 = vmatpush1.bf16.msra.mxu0 %v1619
    %2101 = vmatprep.subr.bf16.mxu0 %v1622
    %2102 = vmatpush1.bf16.msra.mxu0 %v1621
    %2103 = vmatprep.subr.bf16.mxu0 %v1624
    %2104 = vmatpush1.bf16.msra.mxu0 %v1623
    %2105 = vmatprep.subr.bf16.mxu0 %v1626
    %2106 = vmatpush1.bf16.msra.mxu0 %v1625
    %2107 = vmatprep.subr.bf16.mxu0 %v1628
    %2108 = vmatpush1.bf16.msra.mxu0 %v1627
    %2109 = vmatprep.subr.bf16.mxu0 %v1630
    %2110 = vmatpush1.bf16.msra.mxu0 %v1629
    %2111 = vmatprep.subr.bf16.mxu0 %v1632
    %2112 = vmatpush1.bf16.msra.mxu0 %v1631
    %2113 = vmatprep.subr.bf16.mxu0 %v1634
    %2114 = vmatpush1.bf16.msra.mxu0 %v1633
    %2115 = vmatprep.subr.bf16.mxu0 0
    %2116 = vmatpush1.bf16.msra.mxu0 0
    %2117 = vmatprep.subr.bf16.mxu0 0
    %2118 = vmatpush1.bf16.msra.mxu0 0
    %2119 = vmatprep.subr.bf16.mxu0 0
    %2120 = vmatpush1.bf16.msra.mxu0 0
    %2121 = vmatprep.subr.bf16.mxu0 0
    %2122 = vmatpush1.bf16.msra.mxu0 0
    %2123 = vmatprep.subr.bf16.mxu0 0
    %2124 = vmatpush1.bf16.msra.mxu0 0
    %2125 = vmatprep.subr.bf16.mxu0 0
    %2126 = vmatpush1.bf16.msra.mxu0 0
    %2127 = vmatprep.subr.bf16.mxu0 0
    %2128 = vmatpush1.bf16.msra.mxu0 0
    %2129 = vmatprep.subr.bf16.mxu0 0
    %2130 = vmatpush1.bf16.msra.mxu0 0
    %2131 = vmatprep.mubr.bf16.mxu0 0
    %2132 = vmatmul.mubr.bf16.gmra.mrb[0].mxu0 %v2098
    %v2133 = vpop.f32.mrb[0].mxu0
    %v2134 = vadd.f32 %v1564, %v2133
    %v2135 = vpop.f32.mrb[0].mxu0
    %v2136 = vadd.f32 %v1568, %v2135
    %v2137 = vpop.f32.mrb[0].mxu0
    %v2138 = vpop.f32.mrb[0].mxu0
    %2139 = vdwg.mxu0
    %v2140 = vld [vmem:[%s857] sm:$0xff]
    %v2141 = vadd.f32 %v2140, %v2134
    %v2142 = vxor.u32 %v2141, 2147483648
    %v2143 = vmul.f32 %v2142, 1.442695
    %v2144 = vpow.pop %v2143
    %v2145 = vadd.f32 %v2144, 1.0
    %v2146 = vrcp.pop %v2145
    %v2147 = vmul.f32 1.0, %v2146
    %2149 = vrot.lane.b32.xlu0 %v2134, 64
    %v2150 = vpop.permute.xlu0 %2149
    %v2152 = vmul.f32 %v2147, %v2150
    %2154 = vrot.lane.b32.xlu0 %v2152, 64
    %v2155 = vpop.permute.xlu0 %2154
    %v2157 = vadd.f32 %v2140, %v2155
    %v2158 = vtanh.pop %v2157
    %v2159 = vsub.f32 1.0, %v2147
    %2161 = vrot.lane.b32.xlu0 %v2158, 96
    %v2162 = vpop.permute.xlu0 %2161
    %v2164 = vmul.f32 %v2159, %v2162
    %2166 = vrot.lane.b32.xlu0 %v2097, 32
    %v2167 = vpop.permute.xlu0 %2166
    %v2169 = vmul.f32 %v2147, %v2167
    %v2170 = vadd.f32 %v2164, %v2169
    %v2171 = vld [vmem:[%s889] sm:$0xff]
    %v2172 = vadd.f32 %v2171, %v2136
    %v2173 = vxor.u32 %v2172, 2147483648
    %v2174 = vmul.f32 %v2173, 1.442695
    %v2175 = vpow.pop %v2174
    %v2176 = vadd.f32 %v2175, 1.0
    %v2177 = vrcp.pop %v2176
    %v2178 = vmul.f32 1.0, %v2177
    %2180 = vrot.lane.b32.xlu0 %v2136, 64
    %v2181 = vpop.permute.xlu0 %2180
    %v2183 = vmul.f32 %v2178, %v2181
    %2185 = vrot.lane.b32.xlu0 %v2183, 64
    %v2186 = vpop.permute.xlu0 %2185
    %v2188 = vadd.f32 %v2171, %v2186
    %v2189 = vtanh.pop %v2188
    %v2190 = vsub.f32 1.0, %v2178
    %2192 = vrot.lane.b32.xlu0 %v2189, 96
    %v2193 = vpop.permute.xlu0 %2192
    %v2195 = vmul.f32 %v2190, %v2193
    %v2196 = vmul.f32 %v2178, %v2097
    %v2197 = vadd.f32 %v2195, %v2196
    %2199 = vrot.lane.b32.xlu0 %v2170, 96
    %v2200 = vpop.permute.xlu0 %2199
    %2202 = vst.msk [vmem:[%s921] sm:$0xff] %vm456, %v2200
    %2204 = vrot.lane.b32.xlu0 %v2197, 96
    %v2205 = vpop.permute.xlu0 %2204
    %2207 = vst.msk [vmem:[%s927] sm:$0xff] %vm456, %v2205
    %v2208 = vsel %vm456, %v2200, %v2197
    %v2209 = vsel %vm465, %v2208, 0.0
    %v2210 = vpack.c.bf16 %v2209, %v2209
    %2211 = vmatprep.subr.bf16.mxu0 %v1620
    %2212 = vmatpush1.bf16.msra.mxu0 %v1619
    %2213 = vmatprep.subr.bf16.mxu0 %v1622
    %2214 = vmatpush1.bf16.msra.mxu0 %v1621
    %2215 = vmatprep.subr.bf16.mxu0 %v1624
    %2216 = vmatpush1.bf16.msra.mxu0 %v1623
    %2217 = vmatprep.subr.bf16.mxu0 %v1626
    %2218 = vmatpush1.bf16.msra.mxu0 %v1625
    %2219 = vmatprep.subr.bf16.mxu0 %v1628
    %2220 = vmatpush1.bf16.msra.mxu0 %v1627
    %2221 = vmatprep.subr.bf16.mxu0 %v1630
    %2222 = vmatpush1.bf16.msra.mxu0 %v1629
    %2223 = vmatprep.subr.bf16.mxu0 %v1632
    %2224 = vmatpush1.bf16.msra.mxu0 %v1631
    %2225 = vmatprep.subr.bf16.mxu0 %v1634
    %2226 = vmatpush1.bf16.msra.mxu0 %v1633
    %2227 = vmatprep.subr.bf16.mxu0 0
    %2228 = vmatpush1.bf16.msra.mxu0 0
    %2229 = vmatprep.subr.bf16.mxu0 0
    %2230 = vmatpush1.bf16.msra.mxu0 0
    %2231 = vmatprep.subr.bf16.mxu0 0
    %2232 = vmatpush1.bf16.msra.mxu0 0
    %2233 = vmatprep.subr.bf16.mxu0 0
    %2234 = vmatpush1.bf16.msra.mxu0 0
    %2235 = vmatprep.subr.bf16.mxu0 0
    %2236 = vmatpush1.bf16.msra.mxu0 0
    %2237 = vmatprep.subr.bf16.mxu0 0
    %2238 = vmatpush1.bf16.msra.mxu0 0
    %2239 = vmatprep.subr.bf16.mxu0 0
    %2240 = vmatpush1.bf16.msra.mxu0 0
    %2241 = vmatprep.subr.bf16.mxu0 0
    %2242 = vmatpush1.bf16.msra.mxu0 0
    %2243 = vmatprep.mubr.bf16.mxu0 0
    %2244 = vmatmul.mubr.bf16.gmra.mrb[0].mxu0 %v2210
    %v2245 = vpop.f32.mrb[0].mxu0
    %v2246 = vadd.f32 %v1564, %v2245
    %v2247 = vpop.f32.mrb[0].mxu0
    %v2248 = vadd.f32 %v1568, %v2247
    %v2249 = vpop.f32.mrb[0].mxu0
    %v2250 = vpop.f32.mrb[0].mxu0
    %2251 = vdwg.mxu0
    %v2252 = vld [vmem:[%s973] sm:$0xff]
    %v2253 = vadd.f32 %v2252, %v2246
    %v2254 = vxor.u32 %v2253, 2147483648
    %v2255 = vmul.f32 %v2254, 1.442695
    %v2256 = vpow.pop %v2255
    %v2257 = vadd.f32 %v2256, 1.0
    %v2258 = vrcp.pop %v2257
    %v2259 = vmul.f32 1.0, %v2258
    %2261 = vrot.lane.b32.xlu0 %v2246, 64
    %v2262 = vpop.permute.xlu0 %2261
    %v2264 = vmul.f32 %v2259, %v2262
    %2266 = vrot.lane.b32.xlu0 %v2264, 64
    %v2267 = vpop.permute.xlu0 %2266
    %v2269 = vadd.f32 %v2252, %v2267
    %v2270 = vtanh.pop %v2269
    %v2271 = vsub.f32 1.0, %v2259
    %2273 = vrot.lane.b32.xlu0 %v2270, 96
    %v2274 = vpop.permute.xlu0 %2273
    %v2276 = vmul.f32 %v2271, %v2274
    %2278 = vrot.lane.b32.xlu0 %v2209, 32
    %v2279 = vpop.permute.xlu0 %2278
    %v2281 = vmul.f32 %v2259, %v2279
    %v2282 = vadd.f32 %v2276, %v2281
    %v2283 = vld [vmem:[%s1005] sm:$0xff]
    %v2284 = vadd.f32 %v2283, %v2248
    %v2285 = vxor.u32 %v2284, 2147483648
    %v2286 = vmul.f32 %v2285, 1.442695
    %v2287 = vpow.pop %v2286
    %v2288 = vadd.f32 %v2287, 1.0
    %v2289 = vrcp.pop %v2288
    %v2290 = vmul.f32 1.0, %v2289
    %2292 = vrot.lane.b32.xlu0 %v2248, 64
    %v2293 = vpop.permute.xlu0 %2292
    %v2295 = vmul.f32 %v2290, %v2293
    %2297 = vrot.lane.b32.xlu0 %v2295, 64
    %v2298 = vpop.permute.xlu0 %2297
    %v2300 = vadd.f32 %v2283, %v2298
    %v2301 = vtanh.pop %v2300
    %v2302 = vsub.f32 1.0, %v2290
    %2304 = vrot.lane.b32.xlu0 %v2301, 96
    %v2305 = vpop.permute.xlu0 %2304
    %v2307 = vmul.f32 %v2302, %v2305
    %v2308 = vmul.f32 %v2290, %v2209
    %v2309 = vadd.f32 %v2307, %v2308
    %2311 = vrot.lane.b32.xlu0 %v2282, 96
    %v2312 = vpop.permute.xlu0 %2311
    %2314 = vst.msk [vmem:[%s1037] sm:$0xff] %vm456, %v2312
    %2316 = vrot.lane.b32.xlu0 %v2309, 96
    %v2317 = vpop.permute.xlu0 %2316
    %2319 = vst.msk [vmem:[%s1043] sm:$0xff] %vm456, %v2317
    %v2320 = vsel %vm456, %v2312, %v2309
    %v2321 = vsel %vm465, %v2320, 0.0
    %v2322 = vpack.c.bf16 %v2321, %v2321
    %2323 = vmatprep.subr.bf16.mxu0 %v1620
    %2324 = vmatpush1.bf16.msra.mxu0 %v1619
    %2325 = vmatprep.subr.bf16.mxu0 %v1622
    %2326 = vmatpush1.bf16.msra.mxu0 %v1621
    %2327 = vmatprep.subr.bf16.mxu0 %v1624
    %2328 = vmatpush1.bf16.msra.mxu0 %v1623
    %2329 = vmatprep.subr.bf16.mxu0 %v1626
    %2330 = vmatpush1.bf16.msra.mxu0 %v1625
    %2331 = vmatprep.subr.bf16.mxu0 %v1628
    %2332 = vmatpush1.bf16.msra.mxu0 %v1627
    %2333 = vmatprep.subr.bf16.mxu0 %v1630
    %2334 = vmatpush1.bf16.msra.mxu0 %v1629
    %2335 = vmatprep.subr.bf16.mxu0 %v1632
    %2336 = vmatpush1.bf16.msra.mxu0 %v1631
    %2337 = vmatprep.subr.bf16.mxu0 %v1634
    %2338 = vmatpush1.bf16.msra.mxu0 %v1633
    %2339 = vmatprep.subr.bf16.mxu0 0
    %2340 = vmatpush1.bf16.msra.mxu0 0
    %2341 = vmatprep.subr.bf16.mxu0 0
    %2342 = vmatpush1.bf16.msra.mxu0 0
    %2343 = vmatprep.subr.bf16.mxu0 0
    %2344 = vmatpush1.bf16.msra.mxu0 0
    %2345 = vmatprep.subr.bf16.mxu0 0
    %2346 = vmatpush1.bf16.msra.mxu0 0
    %2347 = vmatprep.subr.bf16.mxu0 0
    %2348 = vmatpush1.bf16.msra.mxu0 0
    %2349 = vmatprep.subr.bf16.mxu0 0
    %2350 = vmatpush1.bf16.msra.mxu0 0
    %2351 = vmatprep.subr.bf16.mxu0 0
    %2352 = vmatpush1.bf16.msra.mxu0 0
    %2353 = vmatprep.subr.bf16.mxu0 0
    %2354 = vmatpush1.bf16.msra.mxu0 0
    %2355 = vmatprep.mubr.bf16.mxu0 0
    %2356 = vmatmul.mubr.bf16.gmra.mrb[0].mxu0 %v2322
    %v2357 = vpop.f32.mrb[0].mxu0
    %v2358 = vadd.f32 %v1564, %v2357
    %v2359 = vpop.f32.mrb[0].mxu0
    %v2360 = vadd.f32 %v1568, %v2359
    %v2361 = vpop.f32.mrb[0].mxu0
    %v2362 = vpop.f32.mrb[0].mxu0
    %2363 = vdwg.mxu0
    %v2364 = vld [vmem:[%s1089] sm:$0xff]
    %v2365 = vadd.f32 %v2364, %v2358
    %v2366 = vxor.u32 %v2365, 2147483648
    %v2367 = vmul.f32 %v2366, 1.442695
    %v2368 = vpow.pop %v2367
    %v2369 = vadd.f32 %v2368, 1.0
    %v2370 = vrcp.pop %v2369
    %v2371 = vmul.f32 1.0, %v2370
    %2373 = vrot.lane.b32.xlu0 %v2358, 64
    %v2374 = vpop.permute.xlu0 %2373
    %v2376 = vmul.f32 %v2371, %v2374
    %2378 = vrot.lane.b32.xlu0 %v2376, 64
    %v2379 = vpop.permute.xlu0 %2378
    %v2381 = vadd.f32 %v2364, %v2379
    %v2382 = vtanh.pop %v2381
    %v2383 = vsub.f32 1.0, %v2371
    %2385 = vrot.lane.b32.xlu0 %v2382, 96
    %v2386 = vpop.permute.xlu0 %2385
    %v2388 = vmul.f32 %v2383, %v2386
    %2390 = vrot.lane.b32.xlu0 %v2321, 32
    %v2391 = vpop.permute.xlu0 %2390
    %v2393 = vmul.f32 %v2371, %v2391
    %v2394 = vadd.f32 %v2388, %v2393
    %v2395 = vld [vmem:[%s1121] sm:$0xff]
    %v2396 = vadd.f32 %v2395, %v2360
    %v2397 = vxor.u32 %v2396, 2147483648
    %v2398 = vmul.f32 %v2397, 1.442695
    %v2399 = vpow.pop %v2398
    %v2400 = vadd.f32 %v2399, 1.0
    %v2401 = vrcp.pop %v2400
    %v2402 = vmul.f32 1.0, %v2401
    %2404 = vrot.lane.b32.xlu0 %v2360, 64
    %v2405 = vpop.permute.xlu0 %2404
    %v2407 = vmul.f32 %v2402, %v2405
    %2409 = vrot.lane.b32.xlu0 %v2407, 64
    %v2410 = vpop.permute.xlu0 %2409
    %v2412 = vadd.f32 %v2395, %v2410
    %v2413 = vtanh.pop %v2412
    %v2414 = vsub.f32 1.0, %v2402
    %2416 = vrot.lane.b32.xlu0 %v2413, 96
    %v2417 = vpop.permute.xlu0 %2416
    %v2419 = vmul.f32 %v2414, %v2417
    %v2420 = vmul.f32 %v2402, %v2321
    %v2421 = vadd.f32 %v2419, %v2420
    %2423 = vrot.lane.b32.xlu0 %v2394, 96
    %v2424 = vpop.permute.xlu0 %2423
    %2426 = vst.msk [vmem:[%s1153] sm:$0xff] %vm456, %v2424
    %2428 = vrot.lane.b32.xlu0 %v2421, 96
    %v2429 = vpop.permute.xlu0 %2428
    %2431 = vst.msk [vmem:[%s1159] sm:$0xff] %vm456, %v2429
    %v2432 = vsel %vm456, %v2424, %v2421
    %v2433 = vsel %vm465, %v2432, 0.0
    %v2434 = vpack.c.bf16 %v2433, %v2433
    %2435 = vmatprep.subr.bf16.mxu0 %v1620
    %2436 = vmatpush1.bf16.msra.mxu0 %v1619
    %2437 = vmatprep.subr.bf16.mxu0 %v1622
    %2438 = vmatpush1.bf16.msra.mxu0 %v1621
    %2439 = vmatprep.subr.bf16.mxu0 %v1624
    %2440 = vmatpush1.bf16.msra.mxu0 %v1623
    %2441 = vmatprep.subr.bf16.mxu0 %v1626
    %2442 = vmatpush1.bf16.msra.mxu0 %v1625
    %2443 = vmatprep.subr.bf16.mxu0 %v1628
    %2444 = vmatpush1.bf16.msra.mxu0 %v1627
    %2445 = vmatprep.subr.bf16.mxu0 %v1630
    %2446 = vmatpush1.bf16.msra.mxu0 %v1629
    %2447 = vmatprep.subr.bf16.mxu0 %v1632
    %2448 = vmatpush1.bf16.msra.mxu0 %v1631
    %2449 = vmatprep.subr.bf16.mxu0 %v1634
    %2450 = vmatpush1.bf16.msra.mxu0 %v1633
    %2451 = vmatprep.subr.bf16.mxu0 0
    %2452 = vmatpush1.bf16.msra.mxu0 0
    %2453 = vmatprep.subr.bf16.mxu0 0
    %2454 = vmatpush1.bf16.msra.mxu0 0
    %2455 = vmatprep.subr.bf16.mxu0 0
    %2456 = vmatpush1.bf16.msra.mxu0 0
    %2457 = vmatprep.subr.bf16.mxu0 0
    %2458 = vmatpush1.bf16.msra.mxu0 0
    %2459 = vmatprep.subr.bf16.mxu0 0
    %2460 = vmatpush1.bf16.msra.mxu0 0
    %2461 = vmatprep.subr.bf16.mxu0 0
    %2462 = vmatpush1.bf16.msra.mxu0 0
    %2463 = vmatprep.subr.bf16.mxu0 0
    %2464 = vmatpush1.bf16.msra.mxu0 0
    %2465 = vmatprep.subr.bf16.mxu0 0
    %2466 = vmatpush1.bf16.msra.mxu0 0
    %2467 = vmatprep.mubr.bf16.mxu0 0
    %2468 = vmatmul.mubr.bf16.gmra.mrb[0].mxu0 %v2434
    %v2469 = vpop.f32.mrb[0].mxu0
    %v2470 = vadd.f32 %v1564, %v2469
    %v2471 = vpop.f32.mrb[0].mxu0
    %v2472 = vadd.f32 %v1568, %v2471
    %v2473 = vpop.f32.mrb[0].mxu0
    %v2474 = vpop.f32.mrb[0].mxu0
    %2475 = vdwg.mxu0
    %v2476 = vld [vmem:[%s1205] sm:$0xff]
    %v2477 = vadd.f32 %v2476, %v2470
    %v2478 = vxor.u32 %v2477, 2147483648
    %v2479 = vmul.f32 %v2478, 1.442695
    %v2480 = vpow.pop %v2479
    %v2481 = vadd.f32 %v2480, 1.0
    %v2482 = vrcp.pop %v2481
    %v2483 = vmul.f32 1.0, %v2482
    %2485 = vrot.lane.b32.xlu0 %v2470, 64
    %v2486 = vpop.permute.xlu0 %2485
    %v2488 = vmul.f32 %v2483, %v2486
    %2490 = vrot.lane.b32.xlu0 %v2488, 64
    %v2491 = vpop.permute.xlu0 %2490
    %v2493 = vadd.f32 %v2476, %v2491
    %v2494 = vtanh.pop %v2493
    %v2495 = vsub.f32 1.0, %v2483
    %2497 = vrot.lane.b32.xlu0 %v2494, 96
    %v2498 = vpop.permute.xlu0 %2497
    %v2500 = vmul.f32 %v2495, %v2498
    %2502 = vrot.lane.b32.xlu0 %v2433, 32
    %v2503 = vpop.permute.xlu0 %2502
    %v2505 = vmul.f32 %v2483, %v2503
    %v2506 = vadd.f32 %v2500, %v2505
    %v2507 = vld [vmem:[#allocation3] sm:$0xff]
    %v2508 = vadd.f32 %v2507, %v2472
    %v2509 = vxor.u32 %v2508, 2147483648
    %v2510 = vmul.f32 %v2509, 1.442695
    %v2511 = vpow.pop %v2510
    %v2512 = vadd.f32 %v2511, 1.0
    %v2513 = vrcp.pop %v2512
    %v2514 = vmul.f32 1.0, %v2513
    %2516 = vrot.lane.b32.xlu0 %v2472, 64
    %v2517 = vpop.permute.xlu0 %2516
    %v2519 = vmul.f32 %v2514, %v2517
    %2521 = vrot.lane.b32.xlu0 %v2519, 64
    %v2522 = vpop.permute.xlu0 %2521
    %v2524 = vadd.f32 %v2507, %v2522
    %v2525 = vtanh.pop %v2524
    %v2526 = vsub.f32 1.0, %v2514
    %2528 = vrot.lane.b32.xlu0 %v2525, 96
    %v2529 = vpop.permute.xlu0 %2528
    %v2531 = vmul.f32 %v2526, %v2529
    %v2532 = vmul.f32 %v2514, %v2433
    %v2533 = vadd.f32 %v2531, %v2532
    %2535 = vrot.lane.b32.xlu0 %v2506, 96
    %v2536 = vpop.permute.xlu0 %2535
    %2538 = vst.msk [vmem:[%s1268] sm:$0xff] %vm456, %v2536
    %2540 = vrot.lane.b32.xlu0 %v2533, 96
    %v2541 = vpop.permute.xlu0 %2540
    %2543 = vst.msk [vmem:[#allocation5] sm:$0xff] %vm456, %v2541
    %v2544 = vld [vmem:[#allocation4 + $0x18] sm:$0xff]
    %v2545 = vld [vmem:[#allocation4 + $0x38] sm:$0xff]
    %v2546 = vadd.f32 %v1280, %v2544
    %v2547 = vadd.f32 %v1284, %v2545
    %v2548 = vld [vmem:[#allocation5] sm:$0xff]
    %v2549 = vld [vmem:[#allocation5 + $0x20] sm:$0xff]
    %v2550 = vadd.f32 %v1285, %v2548
    %v2551 = vadd.f32 %v1289, %v2549
    %2553 = vrot.lane.b32.xlu0 %v2550, 32
    %v2554 = vpop.permute.xlu0 %2553
    %v2556 = vsel %vm456, %v2546, %v2554
    %v2557 = vsel %vm465, %v2556, 0.0
    %v2558 = vld [vmem:[#allocation11] sm:$0xff]
    %v2559 = vld [vmem:[#allocation11 + $0x8] sm:$0xff]
    %v2560 = vld [vmem:[#allocation11 + $0x10] sm:$0xff]
    %v2561 = vld [vmem:[#allocation11 + $0x18] sm:$0xff]
    %v2562 = vld [vmem:[#allocation11 + $0x20] sm:$0xff]
    %v2563 = vld [vmem:[#allocation11 + $0x28] sm:$0xff]
    %v2564 = vld [vmem:[#allocation11 + $0x30] sm:$0xff]
    %v2565 = vld [vmem:[#allocation11 + $0x38] sm:$0xff]
    %v2566 = vld [vmem:[#allocation11 + $0x40] sm:$0xff]
    %v2567 = vld [vmem:[#allocation11 + $0x48] sm:$0xff]
    %v2568 = vld [vmem:[#allocation11 + $0x50] sm:$0xff]
    %v2569 = vld [vmem:[#allocation11 + $0x58] sm:$0xff]
    %v2570 = vld [vmem:[#allocation11 + $0x60] sm:$0xff]
    %v2571 = vld [vmem:[#allocation11 + $0x68] sm:$0xff]
    %v2572 = vld [vmem:[#allocation11 + $0x70] sm:$0xff]
    %v2573 = vld [vmem:[#allocation11 + $0x78] sm:$0xff]
    %v2574 = vld [vmem:[%s10] sm:$0x1]
    %v2576 = vlaneseq
    %v2577 = vshrl.u32 %v2576, 7
    %v2578 = vsub.s32 0, %v2577
    %v2579 = vrot.slane %v2574, %v2578
    %2581 = vmatprep.subr.mxu0 0.0
    %2582 = vmatpush1.msra.mxu0 %v2558
    %2583 = vmatprep.subr.mxu0 0.0
    %2584 = vmatpush1.msra.mxu0 %v2559
    %2585 = vmatprep.subr.mxu0 0.0
    %2586 = vmatpush1.msra.mxu0 %v2560
    %2587 = vmatprep.subr.mxu0 0.0
    %2588 = vmatpush1.msra.mxu0 %v2561
    %2589 = vmatprep.subr.mxu0 0.0
    %2590 = vmatpush1.msra.mxu0 %v2562
    %2591 = vmatprep.subr.mxu0 0.0
    %2592 = vmatpush1.msra.mxu0 %v2563
    %2593 = vmatprep.subr.mxu0 0.0
    %2594 = vmatpush1.msra.mxu0 %v2564
    %2595 = vmatprep.subr.mxu0 0.0
    %2596 = vmatpush1.msra.mxu0 %v2565
    %2597 = vmatprep.subr.mxu0 0.0
    %2598 = vmatpush1.msra.mxu0 %v2566
    %2599 = vmatprep.subr.mxu0 0.0
    %2600 = vmatpush1.msra.mxu0 %v2567
    %2601 = vmatprep.subr.mxu0 0.0
    %2602 = vmatpush1.msra.mxu0 %v2568
    %2603 = vmatprep.subr.mxu0 0.0
    %2604 = vmatpush1.msra.mxu0 %v2569
    %2605 = vmatprep.subr.mxu0 0.0
    %2606 = vmatpush1.msra.mxu0 %v2570
    %2607 = vmatprep.subr.mxu0 0.0
    %2608 = vmatpush1.msra.mxu0 %v2571
    %2609 = vmatprep.subr.mxu0 0.0
    %2610 = vmatpush1.msra.mxu0 %v2572
    %2611 = vmatprep.subr.mxu0 0.0
    %2612 = vmatpush1.msra.mxu0 %v2573
    %2613 = vmatprep.subr.mxu0 0.0
    %2614 = vmatpush1.msra.mxu0 0.0
    %2615 = vmatprep.subr.mxu0 0.0
    %2616 = vmatpush1.msra.mxu0 0.0
    %2617 = vmatprep.subr.mxu0 0.0
    %2618 = vmatpush1.msra.mxu0 0.0
    %2619 = vmatprep.subr.mxu0 0.0
    %2620 = vmatpush1.msra.mxu0 0.0
    %2621 = vmatprep.subr.mxu0 0.0
    %2622 = vmatpush1.msra.mxu0 0.0
    %2623 = vmatprep.subr.mxu0 0.0
    %2624 = vmatpush1.msra.mxu0 0.0
    %2625 = vmatprep.subr.mxu0 0.0
    %2626 = vmatpush1.msra.mxu0 0.0
    %2627 = vmatprep.subr.mxu0 0.0
    %2628 = vmatpush1.msra.mxu0 0.0
    %2629 = vmatprep.subr.mxu0 0.0
    %2630 = vmatpush1.msra.mxu0 0.0
    %2631 = vmatprep.subr.mxu0 0.0
    %2632 = vmatpush1.msra.mxu0 0.0
    %2633 = vmatprep.subr.mxu0 0.0
    %2634 = vmatpush1.msra.mxu0 0.0
    %2635 = vmatprep.subr.mxu0 0.0
    %2636 = vmatpush1.msra.mxu0 0.0
    %2637 = vmatprep.subr.mxu0 0.0
    %2638 = vmatpush1.msra.mxu0 0.0
    %2639 = vmatprep.subr.mxu0 0.0
    %2640 = vmatpush1.msra.mxu0 0.0
    %2641 = vmatprep.subr.mxu0 0.0
    %2642 = vmatpush1.msra.mxu0 0.0
    %2643 = vmatprep.subr.mxu0 0.0
    %2644 = vmatpush1.msra.mxu0 0.0
    %2645 = vmatprep.mubr.f32.mxu0 0.0
    %2646 = vmatmul.mubr.f32.gmra.mrb[0].mxu0 %v2557
    %v2647 = vpop.f32.mrb[0].mxu0
    %v2648 = vadd.f32 %v2579, %v2647
    %v2649 = vpop.f32.mrb[0].mxu0
    %2650 = vdwg.mxu0
    %2651 = vst [vmem:[%s11] sm:$0xff] %v2648
    %v2652 = vsel %vm456, %v2547, 0.0
    %v2653 = vsel %vm465, %v2652, 0.0
    %s2654 = scalar_lea.vmem [#allocation11], 128
    %v2655 = vld [vmem:[%s2654] sm:$0xff]
    %v2656 = vld [vmem:[%s2654 + $0x8] sm:$0xff]
    %v2657 = vld [vmem:[%s2654 + $0x10] sm:$0xff]
    %v2658 = vld [vmem:[%s2654 + $0x18] sm:$0xff]
    %v2659 = vld [vmem:[%s2654 + $0x20] sm:$0xff]
    %v2660 = vld [vmem:[%s2654 + $0x28] sm:$0xff]
    %v2661 = vld [vmem:[%s2654 + $0x30] sm:$0xff]
    %v2662 = vld [vmem:[%s2654 + $0x38] sm:$0xff]
    %v2663 = vld [vmem:[%s2654 + $0x40] sm:$0xff]
    %v2664 = vld [vmem:[%s2654 + $0x48] sm:$0xff]
    %v2665 = vld [vmem:[%s2654 + $0x50] sm:$0xff]
    %v2666 = vld [vmem:[%s2654 + $0x58] sm:$0xff]
    %v2667 = vld [vmem:[%s2654 + $0x60] sm:$0xff]
    %v2668 = vld [vmem:[%s2654 + $0x68] sm:$0xff]
    %v2669 = vld [vmem:[%s2654 + $0x70] sm:$0xff]
    %v2670 = vld [vmem:[%s2654 + $0x78] sm:$0xff]
    %s2671 = scalar_lea.vmem %s10, 1
    %v2672 = vld [vmem:[%s2671] sm:$0x1]
    %v2674 = vlaneseq
    %v2675 = vshrl.u32 %v2674, 7
    %v2676 = vsub.s32 0, %v2675
    %v2677 = vrot.slane %v2672, %v2676
    %2679 = vmatprep.subr.mxu0 0.0
    %2680 = vmatpush1.msra.mxu0 %v2655
    %2681 = vmatprep.subr.mxu0 0.0
    %2682 = vmatpush1.msra.mxu0 %v2656
    %2683 = vmatprep.subr.mxu0 0.0
    %2684 = vmatpush1.msra.mxu0 %v2657
    %2685 = vmatprep.subr.mxu0 0.0
    %2686 = vmatpush1.msra.mxu0 %v2658
    %2687 = vmatprep.subr.mxu0 0.0
    %2688 = vmatpush1.msra.mxu0 %v2659
    %2689 = vmatprep.subr.mxu0 0.0
    %2690 = vmatpush1.msra.mxu0 %v2660
    %2691 = vmatprep.subr.mxu0 0.0
    %2692 = vmatpush1.msra.mxu0 %v2661
    %2693 = vmatprep.subr.mxu0 0.0
    %2694 = vmatpush1.msra.mxu0 %v2662
    %2695 = vmatprep.subr.mxu0 0.0
    %2696 = vmatpush1.msra.mxu0 %v2663
    %2697 = vmatprep.subr.mxu0 0.0
    %2698 = vmatpush1.msra.mxu0 %v2664
    %2699 = vmatprep.subr.mxu0 0.0
    %2700 = vmatpush1.msra.mxu0 %v2665
    %2701 = vmatprep.subr.mxu0 0.0
    %2702 = vmatpush1.msra.mxu0 %v2666
    %2703 = vmatprep.subr.mxu0 0.0
    %2704 = vmatpush1.msra.mxu0 %v2667
    %2705 = vmatprep.subr.mxu0 0.0
    %2706 = vmatpush1.msra.mxu0 %v2668
    %2707 = vmatprep.subr.mxu0 0.0
    %2708 = vmatpush1.msra.mxu0 %v2669
    %2709 = vmatprep.subr.mxu0 0.0
    %2710 = vmatpush1.msra.mxu0 %v2670
    %2711 = vmatprep.subr.mxu0 0.0
    %2712 = vmatpush1.msra.mxu0 0.0
    %2713 = vmatprep.subr.mxu0 0.0
    %2714 = vmatpush1.msra.mxu0 0.0
    %2715 = vmatprep.subr.mxu0 0.0
    %2716 = vmatpush1.msra.mxu0 0.0
    %2717 = vmatprep.subr.mxu0 0.0
    %2718 = vmatpush1.msra.mxu0 0.0
    %2719 = vmatprep.subr.mxu0 0.0
    %2720 = vmatpush1.msra.mxu0 0.0
    %2721 = vmatprep.subr.mxu0 0.0
    %2722 = vmatpush1.msra.mxu0 0.0
    %2723 = vmatprep.subr.mxu0 0.0
    %2724 = vmatpush1.msra.mxu0 0.0
    %2725 = vmatprep.subr.mxu0 0.0
    %2726 = vmatpush1.msra.mxu0 0.0
    %2727 = vmatprep.subr.mxu0 0.0
    %2728 = vmatpush1.msra.mxu0 0.0
    %2729 = vmatprep.subr.mxu0 0.0
    %2730 = vmatpush1.msra.mxu0 0.0
    %2731 = vmatprep.subr.mxu0 0.0
    %2732 = vmatpush1.msra.mxu0 0.0
    %2733 = vmatprep.subr.mxu0 0.0
    %2734 = vmatpush1.msra.mxu0 0.0
    %2735 = vmatprep.subr.mxu0 0.0
    %2736 = vmatpush1.msra.mxu0 0.0
    %2737 = vmatprep.subr.mxu0 0.0
    %2738 = vmatpush1.msra.mxu0 0.0
    %2739 = vmatprep.subr.mxu0 0.0
    %2740 = vmatpush1.msra.mxu0 0.0
    %2741 = vmatprep.subr.mxu0 0.0
    %2742 = vmatpush1.msra.mxu0 0.0
    %2743 = vmatprep.mubr.f32.mxu0 0.0
    %2744 = vmatmul.mubr.f32.gmra.mrb[0].mxu0 %v2653
    %v2745 = vpop.f32.mrb[0].mxu0
    %v2746 = vadd.f32 %v2677, %v2745
    %v2747 = vpop.f32.mrb[0].mxu0
    %2748 = vdwg.mxu0
    %s2749 = scalar_lea.vmem %s11, 8
    %2750 = vst [vmem:[%s2749] sm:$0xff] %v2746
    %2752 = vrot.lane.b32.xlu0 %v2551, 32
    %v2753 = vpop.permute.xlu0 %2752
    %v2755 = vsel %vm456, 0.0, %v2753
    %v2756 = vsel %vm465, %v2755, 0.0
    %s2757 = scalar_lea.vmem [#allocation11], 256
    %v2758 = vld [vmem:[%s2757] sm:$0xff]
    %v2759 = vld [vmem:[%s2757 + $0x8] sm:$0xff]
    %v2760 = vld [vmem:[%s2757 + $0x10] sm:$0xff]
    %v2761 = vld [vmem:[%s2757 + $0x18] sm:$0xff]
    %v2762 = vld [vmem:[%s2757 + $0x20] sm:$0xff]
    %v2763 = vld [vmem:[%s2757 + $0x28] sm:$0xff]
    %v2764 = vld [vmem:[%s2757 + $0x30] sm:$0xff]
    %v2765 = vld [vmem:[%s2757 + $0x38] sm:$0xff]
    %v2766 = vld [vmem:[%s2757 + $0x40] sm:$0xff]
    %v2767 = vld [vmem:[%s2757 + $0x48] sm:$0xff]
    %v2768 = vld [vmem:[%s2757 + $0x50] sm:$0xff]
    %v2769 = vld [vmem:[%s2757 + $0x58] sm:$0xff]
    %v2770 = vld [vmem:[%s2757 + $0x60] sm:$0xff]
    %v2771 = vld [vmem:[%s2757 + $0x68] sm:$0xff]
    %v2772 = vld [vmem:[%s2757 + $0x70] sm:$0xff]
    %v2773 = vld [vmem:[%s2757 + $0x78] sm:$0xff]
    %s2774 = scalar_lea.vmem %s10, 2
    %v2775 = vld [vmem:[%s2774] sm:$0x1]
    %v2777 = vlaneseq
    %v2778 = vshrl.u32 %v2777, 7
    %v2779 = vsub.s32 0, %v2778
    %v2780 = vrot.slane %v2775, %v2779
    %2782 = vmatprep.subr.mxu0 0.0
    %2783 = vmatpush1.msra.mxu0 %v2758
    %2784 = vmatprep.subr.mxu0 0.0
    %2785 = vmatpush1.msra.mxu0 %v2759
    %2786 = vmatprep.subr.mxu0 0.0
    %2787 = vmatpush1.msra.mxu0 %v2760
    %2788 = vmatprep.subr.mxu0 0.0
    %2789 = vmatpush1.msra.mxu0 %v2761
    %2790 = vmatprep.subr.mxu0 0.0
    %2791 = vmatpush1.msra.mxu0 %v2762
    %2792 = vmatprep.subr.mxu0 0.0
    %2793 = vmatpush1.msra.mxu0 %v2763
    %2794 = vmatprep.subr.mxu0 0.0
    %2795 = vmatpush1.msra.mxu0 %v2764
    %2796 = vmatprep.subr.mxu0 0.0
    %2797 = vmatpush1.msra.mxu0 %v2765
    %2798 = vmatprep.subr.mxu0 0.0
    %2799 = vmatpush1.msra.mxu0 %v2766
    %2800 = vmatprep.subr.mxu0 0.0
    %2801 = vmatpush1.msra.mxu0 %v2767
    %2802 = vmatprep.subr.mxu0 0.0
    %2803 = vmatpush1.msra.mxu0 %v2768
    %2804 = vmatprep.subr.mxu0 0.0
    %2805 = vmatpush1.msra.mxu0 %v2769
    %2806 = vmatprep.subr.mxu0 0.0
    %2807 = vmatpush1.msra.mxu0 %v2770
    %2808 = vmatprep.subr.mxu0 0.0
    %2809 = vmatpush1.msra.mxu0 %v2771
    %2810 = vmatprep.subr.mxu0 0.0
    %2811 = vmatpush1.msra.mxu0 %v2772
    %2812 = vmatprep.subr.mxu0 0.0
    %2813 = vmatpush1.msra.mxu0 %v2773
    %2814 = vmatprep.subr.mxu0 0.0
    %2815 = vmatpush1.msra.mxu0 0.0
    %2816 = vmatprep.subr.mxu0 0.0
    %2817 = vmatpush1.msra.mxu0 0.0
    %2818 = vmatprep.subr.mxu0 0.0
    %2819 = vmatpush1.msra.mxu0 0.0
    %2820 = vmatprep.subr.mxu0 0.0
    %2821 = vmatpush1.msra.mxu0 0.0
    %2822 = vmatprep.subr.mxu0 0.0
    %2823 = vmatpush1.msra.mxu0 0.0
    %2824 = vmatprep.subr.mxu0 0.0
    %2825 = vmatpush1.msra.mxu0 0.0
    %2826 = vmatprep.subr.mxu0 0.0
    %2827 = vmatpush1.msra.mxu0 0.0
    %2828 = vmatprep.subr.mxu0 0.0
    %2829 = vmatpush1.msra.mxu0 0.0
    %2830 = vmatprep.subr.mxu0 0.0
    %2831 = vmatpush1.msra.mxu0 0.0
    %2832 = vmatprep.subr.mxu0 0.0
    %2833 = vmatpush1.msra.mxu0 0.0
    %2834 = vmatprep.subr.mxu0 0.0
    %2835 = vmatpush1.msra.mxu0 0.0
    %2836 = vmatprep.subr.mxu0 0.0
    %2837 = vmatpush1.msra.mxu0 0.0
    %2838 = vmatprep.subr.mxu0 0.0
    %2839 = vmatpush1.msra.mxu0 0.0
    %2840 = vmatprep.subr.mxu0 0.0
    %2841 = vmatpush1.msra.mxu0 0.0
    %2842 = vmatprep.subr.mxu0 0.0
    %2843 = vmatpush1.msra.mxu0 0.0
    %2844 = vmatprep.subr.mxu0 0.0
    %2845 = vmatpush1.msra.mxu0 0.0
    %2846 = vmatprep.mubr.f32.mxu0 0.0
    %2847 = vmatmul.mubr.f32.gmra.mrb[0].mxu0 %v2756
    %v2848 = vpop.f32.mrb[0].mxu0
    %v2849 = vadd.f32 %v2780, %v2848
    %v2850 = vpop.f32.mrb[0].mxu0
    %2851 = vdwg.mxu0
    %s2852 = scalar_lea.vmem %s11, 16
    %2853 = vst [vmem:[%s2852] sm:$0xff] %v2849
    // Predicated region
    $region62: #{_lambda_.1} parent=1 // pred_check
      _
    $region63: #{_lambda_.1} parent=1 // pred_check_branch
      %2855 = sbr.rel (0) target = $region65
    $region64: #{_lambda_.1} parent=1 // pred_region
      _
    $region65: #{_lambda_.1} parent=1 // pred_fallthru
      _
    // Predicated region
    $region66: #{_lambda_.1} parent=1 // pred_check
      _
    $region67: #{_lambda_.1} parent=1 // pred_check_branch
      %2857 = sbr.rel (0) target = $region69
    $region68: #{_lambda_.1} parent=1 // pred_region
      _
    $region69: #{_lambda_.1} parent=1 // pred_fallthru
      _
    %2858 = vsyncpa [#allocation7], 1
    %2859 = vsyncpa [#allocation9], 1
    %2860 = vsyncpa [#allocation12], 1

</llo_original>
